<compile_context>
chip_gen: v7x
topology: tpu7x:2x2x1
jax: 0.10.0
libtpu: 0.0.40
codegen_flags: <defaults>
</compile_context>

<pallas_src>
import functools
import numpy as np
import jax
import jax.numpy as jnp
from jax.experimental import pallas as pl
from jax.experimental.pallas import tpu as pltpu


# MXU operand dtype: bf16 inputs (f32 accumulation) ~3x MXU throughput on
# v6e/v7x.  Set to jnp.float32 for exact-to-2e-3 numerics.
MXU_DTYPE = jnp.bfloat16


# ----------------------------------------------------------------------------
# Prep-time (outside the kernel) weight / constant reorganization
# ----------------------------------------------------------------------------

def _expand_conv_weight(w_oihw, w_in, k_pad=None):
    """(Cout, Cin, KH, KW) -> (KH, W_in*Cin [pad to k_pad], OW*Cout) slabs.

    big[kh, wi*Cin + ci, ow*Cout + co] = w[co, ci, kh, wi - ow]  (0 if OOB)
    so that  conv[oh, ow*Cout+co] = sum_kh x_rows[oh+kh, :] @ big[kh].
    """
    cout, cin, kh, kw = w_oihw.shape
    ow = w_in - kw + 1
    wi = jnp.arange(w_in)[:, None]
    owi = jnp.arange(ow)[None, :]
    tap = wi - owi                                   # (W_in, OW)
    valid = (tap >= 0) & (tap < kw)
    tap_c = jnp.clip(tap, 0, kw - 1)
    g = w_oihw[:, :, :, tap_c]                       # (Cout, Cin, KH, W_in, OW)
    g = jnp.where(valid[None, None, None], g, 0.0)
    g = jnp.transpose(g, (2, 3, 1, 4, 0))            # (KH, W_in, Cin, OW, Cout)
    g = g.reshape(kh, w_in * cin, ow * cout)
    if k_pad is not None and k_pad > w_in * cin:
        g = jnp.pad(g, ((0, 0), (0, k_pad - w_in * cin), (0, 0)))
    return g.astype(jnp.float32)


def _col_pool_sel(ow, c, parity):
    """(OW*C, (OW//2)*C) one-hot: picks col (2*pw+parity)*C + ch for (pw, ch)."""
    pw = ow // 2
    src_w = np.arange(ow * c) // c
    src_c = np.arange(ow * c) % c
    dst_w = np.arange(pw * c) // c
    dst_c = np.arange(pw * c) % c
    sel = (src_w[:, None] == 2 * dst_w[None, :] + parity) & \
          (src_c[:, None] == dst_c[None, :])
    return jnp.asarray(sel.astype(np.float32))


def prepare_params(params, out_pad=128):
    """Reorganize PyTorch-layout params into kernel-resident constants."""
    l1 = params["fc1_w"].shape[0]
    md = MXU_DTYPE

    w1 = _expand_conv_weight(params["conv1_w"], 32, k_pad=128).astype(md)   # (5,128,168)
    b1 = jnp.tile(params["conv1_b"], 28).reshape(1, -1).astype(jnp.float32)  # (1,168)
    w2 = _expand_conv_weight(params["conv2_w"], 14).astype(md)               # (5,84,160)
    b2 = jnp.tile(params["conv2_b"], 10).reshape(1, -1).astype(jnp.float32)  # (1,160)

    # Column-pool one-hot selectors (exact selection; 1.0/0.0 exact in bf16).
    c1 = jnp.stack([_col_pool_sel(28, 6, 0), _col_pool_sel(28, 6, 1)]).astype(md)    # (2,168,84)
    c2 = jnp.stack([_col_pool_sel(10, 16, 0), _col_pool_sel(10, 16, 1)]).astype(md)  # (2,160,80)

    # PyTorch flattens (c, h, w); our pooled activation columns are (w*16 + c)
    # per row h -> pre-permute fc1_w instead of transposing activations.
    fw1 = jnp.transpose(params["fc1_w"].reshape(l1, 16, 5, 5),
                        (2, 3, 1, 0)).reshape(5, 80, l1).astype(md)           # (5,80,120)
    fb1 = params["fc1_b"].reshape(1, -1).astype(jnp.float32)                  # (1,120)
    fw2 = params["fc2_w"].T.astype(md)                                        # (120,84)
    fb2 = params["fc2_b"].reshape(1, -1).astype(jnp.float32)                  # (1,84)
    n_cls = params["fc3_w"].shape[0]
    fw3 = jnp.pad(params["fc3_w"].T, ((0, 0), (0, out_pad - n_cls))).astype(md)        # (84,128)
    fb3 = jnp.pad(params["fc3_b"], (0, out_pad - n_cls)).reshape(1, -1).astype(jnp.float32)  # (1,128)

    return (w1, b1, c1, w2, b2, c2, fw1, fb1, fw2, fb2, fw3, fb3)


# ----------------------------------------------------------------------------
# Fused kernel: conv1+pool1 -> conv2+pool2 -> fc1/fc2/fc3, B images per step
# ----------------------------------------------------------------------------

def lenet_kernel(x_ref,
                 w1_ref, b1_ref, c1_ref,
                 w2_ref, b2_ref, c2_ref,
                 fw1_ref, fb1_ref, fw2_ref, fb2_ref, fw3_ref, fb3_ref,
                 o_ref):
    f32 = jnp.float32
    md = MXU_DTYPE

    h_in, bsz, k_in = x_ref.shape        # (32, B, 128)
    kh_taps = w1_ref.shape[0]            # 5
    oh1 = h_in - kh_taps + 1             # 28
    ph1 = oh1 // 2                       # 14
    oh2 = ph1 - kh_taps + 1              # 10
    ph2 = oh2 // 2                       # 5

    def dot(a, b):
        return jnp.dot(a, b, preferred_element_type=f32)

    # Flatten (h, b) -> rows (row = h*B + b); layout-preserving since B%8==0.
    x2 = x_ref[...].reshape(h_in * bsz, k_in)

    # --- conv1: 5 batched row-band dots (28*B, 128) @ (128, 168) -------------
    conv1 = jnp.zeros((oh1 * bsz, w1_ref.shape[2]), f32)
    for kh in range(kh_taps):
        conv1 = conv1 + dot(x2[kh * bsz:(kh + oh1) * bsz, :], w1_ref[kh])

    # --- pool1: row max on the VPU, column max via one-hot matmuls -----------
    # relu/bias commute with max; selection picks single elements -> exact.
    c3 = conv1.reshape(ph1, 2 * bsz, conv1.shape[-1])
    rmax1 = jnp.maximum(c3[:, :bsz, :], c3[:, bsz:, :]).reshape(ph1 * bsz, -1)
    rmax1 = jnp.maximum(rmax1 + b1_ref[...], 0.0).astype(md)
    pool1 = jnp.maximum(dot(rmax1, c1_ref[0]),
                        dot(rmax1, c1_ref[1])).astype(md)
    # pool1: (14*B, 84), row = h*B + b, col = w*6 + c  -> feeds conv2 directly.

    # --- conv2: 5 batched row-band dots (10*B, 84) @ (84, 160) ---------------
    conv2 = jnp.zeros((oh2 * bsz, w2_ref.shape[2]), f32)
    for kh in range(kh_taps):
        conv2 = conv2 + dot(pool1[kh * bsz:(kh + oh2) * bsz, :], w2_ref[kh])

    c3 = conv2.reshape(ph2, 2 * bsz, conv2.shape[-1])
    rmax2 = jnp.maximum(c3[:, :bsz, :], c3[:, bsz:, :]).reshape(ph2 * bsz, -1)
    rmax2 = jnp.maximum(rmax2 + b2_ref[...], 0.0).astype(md)
    pool2 = jnp.maximum(dot(rmax2, c2_ref[0]),
                        dot(rmax2, c2_ref[1])).astype(md)
    # pool2: (5*B, 80), row = h*B + b, col = w*16 + c

    # --- fc1: 5 batched dots (B, 80) @ (80, 120) (contraction over h) --------
    acc = jnp.zeros((bsz, fw1_ref.shape[2]), f32)
    for h in range(ph2):
        acc = acc + dot(pool2[h * bsz:(h + 1) * bsz, :], fw1_ref[h])
    h1 = jnp.maximum(acc + fb1_ref[...], 0.0).astype(md)
    h2 = jnp.maximum(dot(h1, fw2_ref[...]) + fb2_ref[...], 0.0).astype(md)
    out = dot(h2, fw3_ref[...]) + fb3_ref[...]          # (B, 128), padded lanes
    o_ref[...] = out.astype(o_ref.dtype)


def _resident_spec(a):
    nd = a.ndim
    return pl.BlockSpec(a.shape, lambda i, nd=nd: (0,) * nd)


def lenet_pallas(x_stage, consts, block_b):
    """x_stage: (32, N_pad, 128) MXU_DTYPE, layout (H, N, W*Cin padded)."""
    h, n_pad, kc = x_stage.shape
    out_pad = consts[-1].shape[-1]                       # 128
    in_specs = [pl.BlockSpec((h, block_b, kc), lambda i: (0, i, 0))]
    in_specs += [_resident_spec(a) for a in consts]
    return pl.pallas_call(
        lenet_kernel,
        out_shape=jax.ShapeDtypeStruct((n_pad, out_pad), jnp.float32),
        grid=(n_pad // block_b,),
        in_specs=in_specs,
        out_specs=pl.BlockSpec((block_b, out_pad), lambda i: (i, 0)),
        compiler_params=pltpu.CompilerParams(
            dimension_semantics=("parallel",)),
    )(x_stage, *consts)


@functools.partial(jax.jit, static_argnames=("block_b", "n_classes"))
def net_forward(x_nchw, consts, block_b=8, n_classes=10):
    n, c, h, w = x_nchw.shape
    n_pad = pl.cdiv(n, block_b) * block_b
    # Network-input glue: NCHW -> (H, N, W*Cin) lane-dense rows,
    # pad W*Cin 96 -> 128 and N up to a multiple of block_b.
    x_rows = jnp.transpose(x_nchw, (2, 0, 3, 1)).reshape(h, n, w * c)
    x_rows = jnp.pad(x_rows, ((0, 0), (0, n_pad - n), (0, 128 - w * c)))
    out = lenet_pallas(x_rows.astype(MXU_DTYPE), consts, block_b)
    return out[:n, :n_classes]


# ----------------------------------------------------------------------------
# Init + pure-JAX reference
# ----------------------------------------------------------------------------

def init_params(key, l1=120, l2=84):
    ks = jax.random.split(key, 10)

    def u(k, shape, fan_in):
        bound = 1.0 / np.sqrt(fan_in)
        return jax.random.uniform(k, shape, jnp.float32, -bound, bound)

    return dict(
        conv1_w=u(ks[0], (6, 3, 5, 5), 3 * 25),        # PyTorch OIHW
        conv1_b=u(ks[1], (6,), 3 * 25),
        conv2_w=u(ks[2], (16, 6, 5, 5), 6 * 25),
        conv2_b=u(ks[3], (16,), 6 * 25),
        fc1_w=u(ks[4], (l1, 16 * 5 * 5), 16 * 5 * 5),  # PyTorch (out, in)
        fc1_b=u(ks[5], (l1,), 16 * 5 * 5),
        fc2_w=u(ks[6], (l2, l1), l1),
        fc2_b=u(ks[7], (l2,), l1),
        fc3_w=u(ks[8], (10, l2), l2),
        fc3_b=u(ks[9], (10,), l2),
    )


def reference_forward(x, params):
    def conv(x, w, b):
        y = jax.lax.conv_general_dilated(
            x, w, (1, 1), "VALID",
            dimension_numbers=("NCHW", "OIHW", "NCHW"))
        return jax.nn.relu(y + b[None, :, None, None])

    def pool(x):
        n, c, h, w = x.shape
        return x.reshape(n, c, h // 2, 2, w // 2, 2).max(axis=(3, 5))

    y = pool(conv(x, params["conv1_w"], params["conv1_b"]))
    y = pool(conv(y, params["conv2_w"], params["conv2_b"]))
    y = y.reshape(y.shape[0], -1)
    y = jax.nn.relu(y @ params["fc1_w"].T + params["fc1_b"])
    y = jax.nn.relu(y @ params["fc2_w"].T + params["fc2_b"])
    return y @ params["fc3_w"].T + params["fc3_b"]


if __name__ == "__main__":
    key = jax.random.PRNGKey(0)
    pkey, xkey = jax.random.split(key)
    params = init_params(pkey)
    # 32x32 spatial is required by the module (flatten to 16*5*5).
    # N=16 with block_b=8 -> 2 grid steps (keeps both v7x TCs busy); larger N
    # should use block_b 32-128 (multiple of 8) for better MXU fill.
    x = jax.random.normal(xkey, (16, 3, 32, 32), jnp.float32)

    consts = prepare_params(params)            # one-time weight reorganization
    out = jax.block_until_ready(net_forward(x, consts, block_b=8))
    assert out.shape == (16, 10), out.shape

    ref = reference_forward(x, params)
    # bf16 MXU operands (f32 accumulation) trade ~1e-2 abs error for ~3x MXU
    # throughput; set MXU_DTYPE=jnp.float32 above for 2e-3-tight numerics.
    tol = 5e-2 if MXU_DTYPE == jnp.bfloat16 else 2e-3
    max_diff = float(jnp.max(jnp.abs(out - ref)))
    assert np.allclose(np.asarray(out), np.asarray(ref), rtol=tol, atol=tol), \
        f"mismatch vs reference, max abs diff {max_diff}"

    print("KERNEL_OK")
</pallas_src>

<mosaic_0001>
module attributes {stable_mosaic.version = 11 : i64} {
  func.func @lenet_kernel(%arg0: i32, %arg1: memref<32x8x128xbf16, #tpu.memory_space<vmem>>, %arg2: memref<5x128x168xbf16, #tpu.memory_space<vmem>>, %arg3: memref<1x168xf32, #tpu.memory_space<vmem>>, %arg4: memref<2x168x84xbf16, #tpu.memory_space<vmem>>, %arg5: memref<5x84x160xbf16, #tpu.memory_space<vmem>>, %arg6: memref<1x160xf32, #tpu.memory_space<vmem>>, %arg7: memref<2x160x80xbf16, #tpu.memory_space<vmem>>, %arg8: memref<5x80x120xbf16, #tpu.memory_space<vmem>>, %arg9: memref<1x120xf32, #tpu.memory_space<vmem>>, %arg10: memref<120x84xbf16, #tpu.memory_space<vmem>>, %arg11: memref<1x84xf32, #tpu.memory_space<vmem>>, %arg12: memref<84x128xbf16, #tpu.memory_space<vmem>>, %arg13: memref<1x128xf32, #tpu.memory_space<vmem>>, %arg14: memref<8x128xf32, #tpu.memory_space<vmem>>) attributes {dimension_semantics = [#tpu.dimension_semantics<parallel>], iteration_bounds = array<i64: 2>, scalar_prefetch = 0 : i64, scratch_operands = 0 : i64, tpu.core_type = #tpu.core_type<tc>, window_params = [{transform_indices = @transform_0, window_bounds = array<i64: 32, 8, 128>}, {pipeline_mode = #tpu.pipeline_mode<synchronous>, transform_indices = @transform_1, window_bounds = array<i64: 5, 128, 168>}, {pipeline_mode = #tpu.pipeline_mode<synchronous>, transform_indices = @transform_2, window_bounds = array<i64: 1, 168>}, {pipeline_mode = #tpu.pipeline_mode<synchronous>, transform_indices = @transform_3, window_bounds = array<i64: 2, 168, 84>}, {pipeline_mode = #tpu.pipeline_mode<synchronous>, transform_indices = @transform_4, window_bounds = array<i64: 5, 84, 160>}, {pipeline_mode = #tpu.pipeline_mode<synchronous>, transform_indices = @transform_5, window_bounds = array<i64: 1, 160>}, {pipeline_mode = #tpu.pipeline_mode<synchronous>, transform_indices = @transform_6, window_bounds = array<i64: 2, 160, 80>}, {pipeline_mode = #tpu.pipeline_mode<synchronous>, transform_indices = @transform_7, window_bounds = array<i64: 5, 80, 120>}, {pipeline_mode = #tpu.pipeline_mode<synchronous>, transform_indices = @transform_8, window_bounds = array<i64: 1, 120>}, {pipeline_mode = #tpu.pipeline_mode<synchronous>, transform_indices = @transform_9, window_bounds = array<i64: 120, 84>}, {pipeline_mode = #tpu.pipeline_mode<synchronous>, transform_indices = @transform_10, window_bounds = array<i64: 1, 84>}, {pipeline_mode = #tpu.pipeline_mode<synchronous>, transform_indices = @transform_11, window_bounds = array<i64: 84, 128>}, {pipeline_mode = #tpu.pipeline_mode<synchronous>, transform_indices = @transform_12, window_bounds = array<i64: 1, 128>}, {transform_indices = @transform_13, window_bounds = array<i64: 8, 128>}]} {
    %c0 = arith.constant 0 : index
    %c0_0 = arith.constant 0 : index
    %c0_1 = arith.constant 0 : index
    %0 = vector.load %arg1[%c0, %c0_0, %c0_1] : memref<32x8x128xbf16, #tpu.memory_space<vmem>>, vector<32x8x128xbf16>
    %1 = vector.shape_cast %0 : vector<32x8x128xbf16> to vector<256x128xbf16>
    %cst = arith.constant 0.000000e+00 : f32
    %2 = vector.broadcast %cst : f32 to vector<224x168xf32>
    %3 = vector.extract_strided_slice %1 {offsets = [0, 0], sizes = [224, 128], strides = [1, 1]} : vector<256x128xbf16> to vector<224x128xbf16>
    %c0_2 = arith.constant 0 : index
    %c0_3 = arith.constant 0 : index
    %c0_4 = arith.constant 0 : index
    %4 = vector.load %arg2[%c0_2, %c0_3, %c0_4] : memref<5x128x168xbf16, #tpu.memory_space<vmem>>, vector<1x128x168xbf16>
    %5 = vector.shape_cast %4 : vector<1x128x168xbf16> to vector<128x168xbf16>
    %cst_5 = arith.constant dense<0.000000e+00> : vector<224x168xf32>
    %6 = tpu.matmul %3, %5, %cst_5 {dimension_numbers = #tpu.dot_dimension_numbers<[1], [0], [0], [1], [0, 0, 1, 1], [], []>} : vector<224x128xbf16>, vector<128x168xbf16>, vector<224x168xf32> -> vector<224x168xf32>
    %7 = arith.addf %2, %6 : vector<224x168xf32>
    %8 = vector.extract_strided_slice %1 {offsets = [8, 0], sizes = [224, 128], strides = [1, 1]} : vector<256x128xbf16> to vector<224x128xbf16>
    %c1 = arith.constant 1 : index
    %c0_6 = arith.constant 0 : index
    %c0_7 = arith.constant 0 : index
    %9 = vector.load %arg2[%c1, %c0_6, %c0_7] : memref<5x128x168xbf16, #tpu.memory_space<vmem>>, vector<1x128x168xbf16>
    %10 = vector.shape_cast %9 : vector<1x128x168xbf16> to vector<128x168xbf16>
    %cst_8 = arith.constant dense<0.000000e+00> : vector<224x168xf32>
    %11 = tpu.matmul %8, %10, %cst_8 {dimension_numbers = #tpu.dot_dimension_numbers<[1], [0], [0], [1], [0, 0, 1, 1], [], []>} : vector<224x128xbf16>, vector<128x168xbf16>, vector<224x168xf32> -> vector<224x168xf32>
    %12 = arith.addf %7, %11 : vector<224x168xf32>
    %13 = vector.extract_strided_slice %1 {offsets = [16, 0], sizes = [224, 128], strides = [1, 1]} : vector<256x128xbf16> to vector<224x128xbf16>
    %c2 = arith.constant 2 : index
    %c0_9 = arith.constant 0 : index
    %c0_10 = arith.constant 0 : index
    %14 = vector.load %arg2[%c2, %c0_9, %c0_10] : memref<5x128x168xbf16, #tpu.memory_space<vmem>>, vector<1x128x168xbf16>
    %15 = vector.shape_cast %14 : vector<1x128x168xbf16> to vector<128x168xbf16>
    %cst_11 = arith.constant dense<0.000000e+00> : vector<224x168xf32>
    %16 = tpu.matmul %13, %15, %cst_11 {dimension_numbers = #tpu.dot_dimension_numbers<[1], [0], [0], [1], [0, 0, 1, 1], [], []>} : vector<224x128xbf16>, vector<128x168xbf16>, vector<224x168xf32> -> vector<224x168xf32>
    %17 = arith.addf %12, %16 : vector<224x168xf32>
    %18 = vector.extract_strided_slice %1 {offsets = [24, 0], sizes = [224, 128], strides = [1, 1]} : vector<256x128xbf16> to vector<224x128xbf16>
    %c3 = arith.constant 3 : index
    %c0_12 = arith.constant 0 : index
    %c0_13 = arith.constant 0 : index
    %19 = vector.load %arg2[%c3, %c0_12, %c0_13] : memref<5x128x168xbf16, #tpu.memory_space<vmem>>, vector<1x128x168xbf16>
    %20 = vector.shape_cast %19 : vector<1x128x168xbf16> to vector<128x168xbf16>
    %cst_14 = arith.constant dense<0.000000e+00> : vector<224x168xf32>
    %21 = tpu.matmul %18, %20, %cst_14 {dimension_numbers = #tpu.dot_dimension_numbers<[1], [0], [0], [1], [0, 0, 1, 1], [], []>} : vector<224x128xbf16>, vector<128x168xbf16>, vector<224x168xf32> -> vector<224x168xf32>
    %22 = arith.addf %17, %21 : vector<224x168xf32>
    %23 = vector.extract_strided_slice %1 {offsets = [32, 0], sizes = [224, 128], strides = [1, 1]} : vector<256x128xbf16> to vector<224x128xbf16>
    %c4 = arith.constant 4 : index
    %c0_15 = arith.constant 0 : index
    %c0_16 = arith.constant 0 : index
    %24 = vector.load %arg2[%c4, %c0_15, %c0_16] : memref<5x128x168xbf16, #tpu.memory_space<vmem>>, vector<1x128x168xbf16>
    %25 = vector.shape_cast %24 : vector<1x128x168xbf16> to vector<128x168xbf16>
    %cst_17 = arith.constant dense<0.000000e+00> : vector<224x168xf32>
    %26 = tpu.matmul %23, %25, %cst_17 {dimension_numbers = #tpu.dot_dimension_numbers<[1], [0], [0], [1], [0, 0, 1, 1], [], []>} : vector<224x128xbf16>, vector<128x168xbf16>, vector<224x168xf32> -> vector<224x168xf32>
    %27 = arith.addf %22, %26 : vector<224x168xf32>
    %28 = vector.shape_cast %27 : vector<224x168xf32> to vector<14x16x168xf32>
    %29 = vector.extract_strided_slice %28 {offsets = [0, 0, 0], sizes = [14, 8, 168], strides = [1, 1, 1]} : vector<14x16x168xf32> to vector<14x8x168xf32>
    %30 = vector.extract_strided_slice %28 {offsets = [0, 8, 0], sizes = [14, 8, 168], strides = [1, 1, 1]} : vector<14x16x168xf32> to vector<14x8x168xf32>
    %31 = arith.maximumf %29, %30 : vector<14x8x168xf32>
    %32 = vector.shape_cast %31 : vector<14x8x168xf32> to vector<112x168xf32>
    %c0_18 = arith.constant 0 : index
    %c0_19 = arith.constant 0 : index
    %33 = vector.load %arg3[%c0_18, %c0_19] : memref<1x168xf32, #tpu.memory_space<vmem>>, vector<1x168xf32>
    %34 = vector.broadcast %33 : vector<1x168xf32> to vector<112x168xf32>
    %35 = arith.addf %32, %34 : vector<112x168xf32>
    %cst_20 = arith.constant 0.000000e+00 : f32
    %36 = vector.broadcast %cst_20 : f32 to vector<112x168xf32>
    %37 = arith.maximumf %35, %36 : vector<112x168xf32>
    %38 = arith.truncf %37 : vector<112x168xf32> to vector<112x168xbf16>
    %c0_21 = arith.constant 0 : index
    %c0_22 = arith.constant 0 : index
    %c0_23 = arith.constant 0 : index
    %39 = vector.load %arg4[%c0_21, %c0_22, %c0_23] : memref<2x168x84xbf16, #tpu.memory_space<vmem>>, vector<1x168x84xbf16>
    %40 = vector.shape_cast %39 : vector<1x168x84xbf16> to vector<168x84xbf16>
    %cst_24 = arith.constant dense<0.000000e+00> : vector<112x84xf32>
    %41 = tpu.matmul %38, %40, %cst_24 {dimension_numbers = #tpu.dot_dimension_numbers<[1], [0], [0], [1], [0, 0, 1, 1], [], []>} : vector<112x168xbf16>, vector<168x84xbf16>, vector<112x84xf32> -> vector<112x84xf32>
    %c1_25 = arith.constant 1 : index
    %c0_26 = arith.constant 0 : index
    %c0_27 = arith.constant 0 : index
    %42 = vector.load %arg4[%c1_25, %c0_26, %c0_27] : memref<2x168x84xbf16, #tpu.memory_space<vmem>>, vector<1x168x84xbf16>
    %43 = vector.shape_cast %42 : vector<1x168x84xbf16> to vector<168x84xbf16>
    %cst_28 = arith.constant dense<0.000000e+00> : vector<112x84xf32>
    %44 = tpu.matmul %38, %43, %cst_28 {dimension_numbers = #tpu.dot_dimension_numbers<[1], [0], [0], [1], [0, 0, 1, 1], [], []>} : vector<112x168xbf16>, vector<168x84xbf16>, vector<112x84xf32> -> vector<112x84xf32>
    %45 = arith.maximumf %41, %44 : vector<112x84xf32>
    %46 = arith.truncf %45 : vector<112x84xf32> to vector<112x84xbf16>
    %cst_29 = arith.constant 0.000000e+00 : f32
    %47 = vector.broadcast %cst_29 : f32 to vector<80x160xf32>
    %48 = vector.extract_strided_slice %46 {offsets = [0, 0], sizes = [80, 84], strides = [1, 1]} : vector<112x84xbf16> to vector<80x84xbf16>
    %c0_30 = arith.constant 0 : index
    %c0_31 = arith.constant 0 : index
    %c0_32 = arith.constant 0 : index
    %49 = vector.load %arg5[%c0_30, %c0_31, %c0_32] : memref<5x84x160xbf16, #tpu.memory_space<vmem>>, vector<1x84x160xbf16>
    %50 = vector.shape_cast %49 : vector<1x84x160xbf16> to vector<84x160xbf16>
    %cst_33 = arith.constant dense<0.000000e+00> : vector<80x160xf32>
    %51 = tpu.matmul %48, %50, %cst_33 {dimension_numbers = #tpu.dot_dimension_numbers<[1], [0], [0], [1], [0, 0, 1, 1], [], []>} : vector<80x84xbf16>, vector<84x160xbf16>, vector<80x160xf32> -> vector<80x160xf32>
    %52 = arith.addf %47, %51 : vector<80x160xf32>
    %53 = vector.extract_strided_slice %46 {offsets = [8, 0], sizes = [80, 84], strides = [1, 1]} : vector<112x84xbf16> to vector<80x84xbf16>
    %c1_34 = arith.constant 1 : index
    %c0_35 = arith.constant 0 : index
    %c0_36 = arith.constant 0 : index
    %54 = vector.load %arg5[%c1_34, %c0_35, %c0_36] : memref<5x84x160xbf16, #tpu.memory_space<vmem>>, vector<1x84x160xbf16>
    %55 = vector.shape_cast %54 : vector<1x84x160xbf16> to vector<84x160xbf16>
    %cst_37 = arith.constant dense<0.000000e+00> : vector<80x160xf32>
    %56 = tpu.matmul %53, %55, %cst_37 {dimension_numbers = #tpu.dot_dimension_numbers<[1], [0], [0], [1], [0, 0, 1, 1], [], []>} : vector<80x84xbf16>, vector<84x160xbf16>, vector<80x160xf32> -> vector<80x160xf32>
    %57 = arith.addf %52, %56 : vector<80x160xf32>
    %58 = vector.extract_strided_slice %46 {offsets = [16, 0], sizes = [80, 84], strides = [1, 1]} : vector<112x84xbf16> to vector<80x84xbf16>
    %c2_38 = arith.constant 2 : index
    %c0_39 = arith.constant 0 : index
    %c0_40 = arith.constant 0 : index
    %59 = vector.load %arg5[%c2_38, %c0_39, %c0_40] : memref<5x84x160xbf16, #tpu.memory_space<vmem>>, vector<1x84x160xbf16>
    %60 = vector.shape_cast %59 : vector<1x84x160xbf16> to vector<84x160xbf16>
    %cst_41 = arith.constant dense<0.000000e+00> : vector<80x160xf32>
    %61 = tpu.matmul %58, %60, %cst_41 {dimension_numbers = #tpu.dot_dimension_numbers<[1], [0], [0], [1], [0, 0, 1, 1], [], []>} : vector<80x84xbf16>, vector<84x160xbf16>, vector<80x160xf32> -> vector<80x160xf32>
    %62 = arith.addf %57, %61 : vector<80x160xf32>
    %63 = vector.extract_strided_slice %46 {offsets = [24, 0], sizes = [80, 84], strides = [1, 1]} : vector<112x84xbf16> to vector<80x84xbf16>
    %c3_42 = arith.constant 3 : index
    %c0_43 = arith.constant 0 : index
    %c0_44 = arith.constant 0 : index
    %64 = vector.load %arg5[%c3_42, %c0_43, %c0_44] : memref<5x84x160xbf16, #tpu.memory_space<vmem>>, vector<1x84x160xbf16>
    %65 = vector.shape_cast %64 : vector<1x84x160xbf16> to vector<84x160xbf16>
    %cst_45 = arith.constant dense<0.000000e+00> : vector<80x160xf32>
    %66 = tpu.matmul %63, %65, %cst_45 {dimension_numbers = #tpu.dot_dimension_numbers<[1], [0], [0], [1], [0, 0, 1, 1], [], []>} : vector<80x84xbf16>, vector<84x160xbf16>, vector<80x160xf32> -> vector<80x160xf32>
    %67 = arith.addf %62, %66 : vector<80x160xf32>
    %68 = vector.extract_strided_slice %46 {offsets = [32, 0], sizes = [80, 84], strides = [1, 1]} : vector<112x84xbf16> to vector<80x84xbf16>
    %c4_46 = arith.constant 4 : index
    %c0_47 = arith.constant 0 : index
    %c0_48 = arith.constant 0 : index
    %69 = vector.load %arg5[%c4_46, %c0_47, %c0_48] : memref<5x84x160xbf16, #tpu.memory_space<vmem>>, vector<1x84x160xbf16>
    %70 = vector.shape_cast %69 : vector<1x84x160xbf16> to vector<84x160xbf16>
    %cst_49 = arith.constant dense<0.000000e+00> : vector<80x160xf32>
    %71 = tpu.matmul %68, %70, %cst_49 {dimension_numbers = #tpu.dot_dimension_numbers<[1], [0], [0], [1], [0, 0, 1, 1], [], []>} : vector<80x84xbf16>, vector<84x160xbf16>, vector<80x160xf32> -> vector<80x160xf32>
    %72 = arith.addf %67, %71 : vector<80x160xf32>
    %73 = vector.shape_cast %72 : vector<80x160xf32> to vector<5x16x160xf32>
    %74 = vector.extract_strided_slice %73 {offsets = [0, 0, 0], sizes = [5, 8, 160], strides = [1, 1, 1]} : vector<5x16x160xf32> to vector<5x8x160xf32>
    %75 = vector.extract_strided_slice %73 {offsets = [0, 8, 0], sizes = [5, 8, 160], strides = [1, 1, 1]} : vector<5x16x160xf32> to vector<5x8x160xf32>
    %76 = arith.maximumf %74, %75 : vector<5x8x160xf32>
    %77 = vector.shape_cast %76 : vector<5x8x160xf32> to vector<40x160xf32>
    %c0_50 = arith.constant 0 : index
    %c0_51 = arith.constant 0 : index
    %78 = vector.load %arg6[%c0_50, %c0_51] : memref<1x160xf32, #tpu.memory_space<vmem>>, vector<1x160xf32>
    %79 = vector.broadcast %78 : vector<1x160xf32> to vector<40x160xf32>
    %80 = arith.addf %77, %79 : vector<40x160xf32>
    %cst_52 = arith.constant 0.000000e+00 : f32
    %81 = vector.broadcast %cst_52 : f32 to vector<40x160xf32>
    %82 = arith.maximumf %80, %81 : vector<40x160xf32>
    %83 = arith.truncf %82 : vector<40x160xf32> to vector<40x160xbf16>
    %c0_53 = arith.constant 0 : index
    %c0_54 = arith.constant 0 : index
    %c0_55 = arith.constant 0 : index
    %84 = vector.load %arg7[%c0_53, %c0_54, %c0_55] : memref<2x160x80xbf16, #tpu.memory_space<vmem>>, vector<1x160x80xbf16>
    %85 = vector.shape_cast %84 : vector<1x160x80xbf16> to vector<160x80xbf16>
    %cst_56 = arith.constant dense<0.000000e+00> : vector<40x80xf32>
    %86 = tpu.matmul %83, %85, %cst_56 {dimension_numbers = #tpu.dot_dimension_numbers<[1], [0], [0], [1], [0, 0, 1, 1], [], []>} : vector<40x160xbf16>, vector<160x80xbf16>, vector<40x80xf32> -> vector<40x80xf32>
    %c1_57 = arith.constant 1 : index
    %c0_58 = arith.constant 0 : index
    %c0_59 = arith.constant 0 : index
    %87 = vector.load %arg7[%c1_57, %c0_58, %c0_59] : memref<2x160x80xbf16, #tpu.memory_space<vmem>>, vector<1x160x80xbf16>
    %88 = vector.shape_cast %87 : vector<1x160x80xbf16> to vector<160x80xbf16>
    %cst_60 = arith.constant dense<0.000000e+00> : vector<40x80xf32>
    %89 = tpu.matmul %83, %88, %cst_60 {dimension_numbers = #tpu.dot_dimension_numbers<[1], [0], [0], [1], [0, 0, 1, 1], [], []>} : vector<40x160xbf16>, vector<160x80xbf16>, vector<40x80xf32> -> vector<40x80xf32>
    %90 = arith.maximumf %86, %89 : vector<40x80xf32>
    %91 = arith.truncf %90 : vector<40x80xf32> to vector<40x80xbf16>
    %cst_61 = arith.constant 0.000000e+00 : f32
    %92 = vector.broadcast %cst_61 : f32 to vector<8x120xf32>
    %93 = vector.extract_strided_slice %91 {offsets = [0, 0], sizes = [8, 80], strides = [1, 1]} : vector<40x80xbf16> to vector<8x80xbf16>
    %c0_62 = arith.constant 0 : index
    %c0_63 = arith.constant 0 : index
    %c0_64 = arith.constant 0 : index
    %94 = vector.load %arg8[%c0_62, %c0_63, %c0_64] : memref<5x80x120xbf16, #tpu.memory_space<vmem>>, vector<1x80x120xbf16>
    %95 = vector.shape_cast %94 : vector<1x80x120xbf16> to vector<80x120xbf16>
    %cst_65 = arith.constant dense<0.000000e+00> : vector<8x120xf32>
    %96 = tpu.matmul %93, %95, %cst_65 {dimension_numbers = #tpu.dot_dimension_numbers<[1], [0], [0], [1], [0, 0, 1, 1], [], []>} : vector<8x80xbf16>, vector<80x120xbf16>, vector<8x120xf32> -> vector<8x120xf32>
    %97 = arith.addf %92, %96 : vector<8x120xf32>
    %98 = vector.extract_strided_slice %91 {offsets = [8, 0], sizes = [8, 80], strides = [1, 1]} : vector<40x80xbf16> to vector<8x80xbf16>
    %c1_66 = arith.constant 1 : index
    %c0_67 = arith.constant 0 : index
    %c0_68 = arith.constant 0 : index
    %99 = vector.load %arg8[%c1_66, %c0_67, %c0_68] : memref<5x80x120xbf16, #tpu.memory_space<vmem>>, vector<1x80x120xbf16>
    %100 = vector.shape_cast %99 : vector<1x80x120xbf16> to vector<80x120xbf16>
    %cst_69 = arith.constant dense<0.000000e+00> : vector<8x120xf32>
    %101 = tpu.matmul %98, %100, %cst_69 {dimension_numbers = #tpu.dot_dimension_numbers<[1], [0], [0], [1], [0, 0, 1, 1], [], []>} : vector<8x80xbf16>, vector<80x120xbf16>, vector<8x120xf32> -> vector<8x120xf32>
    %102 = arith.addf %97, %101 : vector<8x120xf32>
    %103 = vector.extract_strided_slice %91 {offsets = [16, 0], sizes = [8, 80], strides = [1, 1]} : vector<40x80xbf16> to vector<8x80xbf16>
    %c2_70 = arith.constant 2 : index
    %c0_71 = arith.constant 0 : index
    %c0_72 = arith.constant 0 : index
    %104 = vector.load %arg8[%c2_70, %c0_71, %c0_72] : memref<5x80x120xbf16, #tpu.memory_space<vmem>>, vector<1x80x120xbf16>
    %105 = vector.shape_cast %104 : vector<1x80x120xbf16> to vector<80x120xbf16>
    %cst_73 = arith.constant dense<0.000000e+00> : vector<8x120xf32>
    %106 = tpu.matmul %103, %105, %cst_73 {dimension_numbers = #tpu.dot_dimension_numbers<[1], [0], [0], [1], [0, 0, 1, 1], [], []>} : vector<8x80xbf16>, vector<80x120xbf16>, vector<8x120xf32> -> vector<8x120xf32>
    %107 = arith.addf %102, %106 : vector<8x120xf32>
    %108 = vector.extract_strided_slice %91 {offsets = [24, 0], sizes = [8, 80], strides = [1, 1]} : vector<40x80xbf16> to vector<8x80xbf16>
    %c3_74 = arith.constant 3 : index
    %c0_75 = arith.constant 0 : index
    %c0_76 = arith.constant 0 : index
    %109 = vector.load %arg8[%c3_74, %c0_75, %c0_76] : memref<5x80x120xbf16, #tpu.memory_space<vmem>>, vector<1x80x120xbf16>
    %110 = vector.shape_cast %109 : vector<1x80x120xbf16> to vector<80x120xbf16>
    %cst_77 = arith.constant dense<0.000000e+00> : vector<8x120xf32>
    %111 = tpu.matmul %108, %110, %cst_77 {dimension_numbers = #tpu.dot_dimension_numbers<[1], [0], [0], [1], [0, 0, 1, 1], [], []>} : vector<8x80xbf16>, vector<80x120xbf16>, vector<8x120xf32> -> vector<8x120xf32>
    %112 = arith.addf %107, %111 : vector<8x120xf32>
    %113 = vector.extract_strided_slice %91 {offsets = [32, 0], sizes = [8, 80], strides = [1, 1]} : vector<40x80xbf16> to vector<8x80xbf16>
    %c4_78 = arith.constant 4 : index
    %c0_79 = arith.constant 0 : index
    %c0_80 = arith.constant 0 : index
    %114 = vector.load %arg8[%c4_78, %c0_79, %c0_80] : memref<5x80x120xbf16, #tpu.memory_space<vmem>>, vector<1x80x120xbf16>
    %115 = vector.shape_cast %114 : vector<1x80x120xbf16> to vector<80x120xbf16>
    %cst_81 = arith.constant dense<0.000000e+00> : vector<8x120xf32>
    %116 = tpu.matmul %113, %115, %cst_81 {dimension_numbers = #tpu.dot_dimension_numbers<[1], [0], [0], [1], [0, 0, 1, 1], [], []>} : vector<8x80xbf16>, vector<80x120xbf16>, vector<8x120xf32> -> vector<8x120xf32>
    %117 = arith.addf %112, %116 : vector<8x120xf32>
    %c0_82 = arith.constant 0 : index
    %c0_83 = arith.constant 0 : index
    %118 = vector.load %arg9[%c0_82, %c0_83] : memref<1x120xf32, #tpu.memory_space<vmem>>, vector<1x120xf32>
    %119 = vector.broadcast %118 : vector<1x120xf32> to vector<8x120xf32>
    %120 = arith.addf %117, %119 : vector<8x120xf32>
    %cst_84 = arith.constant 0.000000e+00 : f32
    %121 = vector.broadcast %cst_84 : f32 to vector<8x120xf32>
    %122 = arith.maximumf %120, %121 : vector<8x120xf32>
    %123 = arith.truncf %122 : vector<8x120xf32> to vector<8x120xbf16>
    %c0_85 = arith.constant 0 : index
    %c0_86 = arith.constant 0 : index
    %124 = vector.load %arg10[%c0_85, %c0_86] : memref<120x84xbf16, #tpu.memory_space<vmem>>, vector<120x84xbf16>
    %cst_87 = arith.constant dense<0.000000e+00> : vector<8x84xf32>
    %125 = tpu.matmul %123, %124, %cst_87 {dimension_numbers = #tpu.dot_dimension_numbers<[1], [0], [0], [1], [0, 0, 1, 1], [], []>} : vector<8x120xbf16>, vector<120x84xbf16>, vector<8x84xf32> -> vector<8x84xf32>
    %c0_88 = arith.constant 0 : index
    %c0_89 = arith.constant 0 : index
    %126 = vector.load %arg11[%c0_88, %c0_89] : memref<1x84xf32, #tpu.memory_space<vmem>>, vector<1x84xf32>
    %127 = vector.broadcast %126 : vector<1x84xf32> to vector<8x84xf32>
    %128 = arith.addf %125, %127 : vector<8x84xf32>
    %cst_90 = arith.constant 0.000000e+00 : f32
    %129 = vector.broadcast %cst_90 : f32 to vector<8x84xf32>
    %130 = arith.maximumf %128, %129 : vector<8x84xf32>
    %131 = arith.truncf %130 : vector<8x84xf32> to vector<8x84xbf16>
    %c0_91 = arith.constant 0 : index
    %c0_92 = arith.constant 0 : index
    %132 = vector.load %arg12[%c0_91, %c0_92] : memref<84x128xbf16, #tpu.memory_space<vmem>>, vector<84x128xbf16>
    %cst_93 = arith.constant dense<0.000000e+00> : vector<8x128xf32>
    %133 = tpu.matmul %131, %132, %cst_93 {dimension_numbers = #tpu.dot_dimension_numbers<[1], [0], [0], [1], [0, 0, 1, 1], [], []>} : vector<8x84xbf16>, vector<84x128xbf16>, vector<8x128xf32> -> vector<8x128xf32>
    %c0_94 = arith.constant 0 : index
    %c0_95 = arith.constant 0 : index
    %134 = vector.load %arg13[%c0_94, %c0_95] : memref<1x128xf32, #tpu.memory_space<vmem>>, vector<1x128xf32>
    %135 = vector.broadcast %134 : vector<1x128xf32> to vector<8x128xf32>
    %136 = arith.addf %133, %135 : vector<8x128xf32>
    %c0_96 = arith.constant 0 : index
    %c0_97 = arith.constant 0 : index
    %137 = vector.load %arg14[%c0_96, %c0_97] : memref<8x128xf32, #tpu.memory_space<vmem>>, vector<8x128xf32>
    tpu.vector_store %arg14[%c0_96, %c0_97], %136 {strides = array<i32>} : memref<8x128xf32, #tpu.memory_space<vmem>>, vector<8x128xf32>,
    return
  }
  func.func @transform_0(%arg0: i32) -> (i32, i32, i32) {
    %c0_i32 = arith.constant 0 : i32
    %c0_i32_0 = arith.constant 0 : i32
    %c0_i32_1 = arith.constant 0 : i32
    return %c0_i32, %arg0, %c0_i32_0 : i32, i32, i32
  }
  func.func @transform_1(%arg0: i32) -> (i32, i32, i32) {
    %c0_i32 = arith.constant 0 : i32
    %c0_i32_0 = arith.constant 0 : i32
    %c0_i32_1 = arith.constant 0 : i32
    %c0_i32_2 = arith.constant 0 : i32
    return %c0_i32, %c0_i32_0, %c0_i32_1 : i32, i32, i32
  }
  func.func @transform_2(%arg0: i32) -> (i32, i32) {
    %c0_i32 = arith.constant 0 : i32
    %c0_i32_0 = arith.constant 0 : i32
    %c0_i32_1 = arith.constant 0 : i32
    return %c0_i32, %c0_i32_0 : i32, i32
  }
  func.func @transform_3(%arg0: i32) -> (i32, i32, i32) {
    %c0_i32 = arith.constant 0 : i32
    %c0_i32_0 = arith.constant 0 : i32
    %c0_i32_1 = arith.constant 0 : i32
    %c0_i32_2 = arith.constant 0 : i32
    return %c0_i32, %c0_i32_0, %c0_i32_1 : i32, i32, i32
  }
  func.func @transform_4(%arg0: i32) -> (i32, i32, i32) {
    %c0_i32 = arith.constant 0 : i32
    %c0_i32_0 = arith.constant 0 : i32
    %c0_i32_1 = arith.constant 0 : i32
    %c0_i32_2 = arith.constant 0 : i32
    return %c0_i32, %c0_i32_0, %c0_i32_1 : i32, i32, i32
  }
  func.func @transform_5(%arg0: i32) -> (i32, i32) {
    %c0_i32 = arith.constant 0 : i32
    %c0_i32_0 = arith.constant 0 : i32
    %c0_i32_1 = arith.constant 0 : i32
    return %c0_i32, %c0_i32_0 : i32, i32
  }
  func.func @transform_6(%arg0: i32) -> (i32, i32, i32) {
    %c0_i32 = arith.constant 0 : i32
    %c0_i32_0 = arith.constant 0 : i32
    %c0_i32_1 = arith.constant 0 : i32
    %c0_i32_2 = arith.constant 0 : i32
    return %c0_i32, %c0_i32_0, %c0_i32_1 : i32, i32, i32
  }
  func.func @transform_7(%arg0: i32) -> (i32, i32, i32) {
    %c0_i32 = arith.constant 0 : i32
    %c0_i32_0 = arith.constant 0 : i32
    %c0_i32_1 = arith.constant 0 : i32
    %c0_i32_2 = arith.constant 0 : i32
    return %c0_i32, %c0_i32_0, %c0_i32_1 : i32, i32, i32
  }
  func.func @transform_8(%arg0: i32) -> (i32, i32) {
    %c0_i32 = arith.constant 0 : i32
    %c0_i32_0 = arith.constant 0 : i32
    %c0_i32_1 = arith.constant 0 : i32
    return %c0_i32, %c0_i32_0 : i32, i32
  }
  func.func @transform_9(%arg0: i32) -> (i32, i32) {
    %c0_i32 = arith.constant 0 : i32
    %c0_i32_0 = arith.constant 0 : i32
    %c0_i32_1 = arith.constant 0 : i32
    return %c0_i32, %c0_i32_0 : i32, i32
  }
  func.func @transform_10(%arg0: i32) -> (i32, i32) {
    %c0_i32 = arith.constant 0 : i32
    %c0_i32_0 = arith.constant 0 : i32
    %c0_i32_1 = arith.constant 0 : i32
    return %c0_i32, %c0_i32_0 : i32, i32
  }
  func.func @transform_11(%arg0: i32) -> (i32, i32) {
    %c0_i32 = arith.constant 0 : i32
    %c0_i32_0 = arith.constant 0 : i32
    %c0_i32_1 = arith.constant 0 : i32
    return %c0_i32, %c0_i32_0 : i32, i32
  }
  func.func @transform_12(%arg0: i32) -> (i32, i32) {
    %c0_i32 = arith.constant 0 : i32
    %c0_i32_0 = arith.constant 0 : i32
    %c0_i32_1 = arith.constant 0 : i32
    return %c0_i32, %c0_i32_0 : i32, i32
  }
  func.func @transform_13(%arg0: i32) -> (i32, i32) {
    %c0_i32 = arith.constant 0 : i32
    %c0_i32_0 = arith.constant 0 : i32
    return %arg0, %c0_i32 : i32, i32
  }
}

</mosaic_0001>

<llo_original>
// kernel: net_forward.1
$region0: #{net_forward.1}
  #allocation0 [shape = 'u32[]', space=smem, size = 0x4, offset = 0x4, fixed_abs, tag = 'smem constant byte address 0x4 - core index']
  #allocation1 [shape = 'u32[144,128]{1,0:T(1,128)}', space=vmem, size = 0x12000, scoped, tag = 'internal scratch']
  %s0 = inlined_call_operand.vmem [shape: bf16[32,16,128], index: 0, kind: input, shape index: {}]
  %s1 = inlined_call_operand.vmem [shape: bf16[5,128,168], index: 1, kind: input, shape index: {}]
  %s2 = inlined_call_operand.vmem [shape: f32[1,168], index: 2, kind: input, shape index: {}]
  %s3 = inlined_call_operand.vmem [shape: bf16[2,168,84], index: 3, kind: input, shape index: {}]
  %s4 = inlined_call_operand.vmem [shape: bf16[5,84,160], index: 4, kind: input, shape index: {}]
  %s5 = inlined_call_operand.vmem [shape: f32[1,160], index: 5, kind: input, shape index: {}]
  %s6 = inlined_call_operand.vmem [shape: bf16[2,160,80], index: 6, kind: input, shape index: {}]
  %s7 = inlined_call_operand.vmem [shape: bf16[5,80,120], index: 7, kind: input, shape index: {}]
  %s8 = inlined_call_operand.vmem [shape: f32[1,120], index: 8, kind: input, shape index: {}]
  %s9 = inlined_call_operand.vmem [shape: bf16[120,84], index: 9, kind: input, shape index: {}]
  %s10 = inlined_call_operand.vmem [shape: f32[1,84], index: 10, kind: input, shape index: {}]
  %s11 = inlined_call_operand.vmem [shape: bf16[84,128], index: 11, kind: input, shape index: {}]
  %s12 = inlined_call_operand.vmem [shape: f32[1,128], index: 12, kind: input, shape index: {}]
  %s13 = inlined_call_operand.hbm [shape: f32[16,128], index: 13, kind: output, shape index: {}]
  %s14 = sld [smem:[#allocation0]]
  $region126: #{net_forward.1} parent=0
    _
  %s16 = ssub.s32 1, %s14
  %s17 = scalar_select 0, %s16, %s14
  $region1: #{net_forward.1} parent=0
    #allocation2 [shape = 'u8[131072]{0}', space=vmem, size = 0x20000, scoped, tag = 'input window, operand 0']
    #allocation3 [shape = 'u8[8192]{0}', space=vmem, size = 0x2000, scoped, tag = 'output window, operand 0']
    #allocation4 [shape = 's32[2]{0}', space=sflag, size = 0x8, scoped, tag = 'scoped memory for net_forward.1']
    %18 = vsyncpa [#allocation4], 0
    %s19 = scalar_lea.sflag [#allocation4], 1
    %20 = vsyncpa %s19, 0
    loop: start=0, step=1, limit=4
    $region2: #{net_forward.1} parent=1 // loop_pre_header
      _
    $region3: #{net_forward.1} parent=1 // loop_header
      %s22 = sphi 0, %s26
      %p23 = scmp.ge.s32.totalorder %s22, 4
      %s32 = sphi 0, %s34
      %s35 = sphi 0, %s32
      %s36 = sphi 0, %s35
      %s52 = sphi 0, %s36
      %s56 = sphi 0, %s56
      %s58 = sphi 0, %s56
      %s59 = sphi 0, %s58
      %s73 = sphi 0, %s59
      %s77 = sphi 0, %s77
      %s79 = sphi 0, %s77
      %s80 = sphi 0, %s79
      %s94 = sphi 0, %s80
      %s98 = sphi 0, %s98
      %s100 = sphi 0, %s98
      %s101 = sphi 0, %s100
      %s115 = sphi 0, %s101
      %s119 = sphi 0, %s119
      %s121 = sphi 0, %s119
      %s122 = sphi 0, %s121
      %s136 = sphi 0, %s122
      %s140 = sphi 0, %s140
      %s142 = sphi 0, %s140
      %s143 = sphi 0, %s142
      %s157 = sphi 0, %s143
      %s161 = sphi 0, %s161
      %s163 = sphi 0, %s161
      %s164 = sphi 0, %s163
      %s178 = sphi 0, %s164
      %s182 = sphi 0, %s182
      %s184 = sphi 0, %s182
      %s185 = sphi 0, %s184
      %s199 = sphi 0, %s185
      %s203 = sphi 0, %s203
      %s205 = sphi 0, %s203
      %s206 = sphi 0, %s205
      %s220 = sphi 0, %s206
      %s224 = sphi 0, %s224
      %s226 = sphi 0, %s224
      %s227 = sphi 0, %s226
      %s241 = sphi 0, %s227
      %s245 = sphi 0, %s245
      %s247 = sphi 0, %s245
      %s248 = sphi 0, %s247
      %s262 = sphi 0, %s248
      %s266 = sphi 0, %s266
      %s268 = sphi 0, %s266
      %s269 = sphi 0, %s268
      %s283 = sphi 0, %s269
      %s287 = sphi 0, %s287
      %s289 = sphi 0, %s287
      %s290 = sphi 0, %s289
      %s304 = sphi 0, %s290
      %s310 = sphi 0, %s312
      %s313 = sphi 0, %s310
      %s314 = sphi 0, %s313
      %s330 = sphi 0, %s314
    $region4: #{net_forward.1} parent=1 // loop_header_branch
      %25 = sbr.rel (%p23) target = $region8
    $region5: #{net_forward.1} parent=1 // loop_body
      %s27 = ssub.s32 %s22, 1
      %s28 = ssub.s32 %s22, 2
      %s29 = sadd.s32 %s22, 1
      %s30 = ssub.s32 %s22, %s29
      %p31 = scmp.eq.s32.totalorder %s30, 0
      %s33 = sadd.s32 %s32, 1
      %s34 = scalar_select %p31, %s32, %s33
      %p37 = pneg %p31
      %p38 = scmp.eq.s32.totalorder %s22, 1
      %p39 = por %p37, %p38
      %p40 = scmp.ne.s32.totalorder %s32, %s35
      %p41 = scmp.eq.s32.totalorder %s22, 0
      %p42 = por %p40, %p41
      %p43 = scmp.ne.s32.totalorder %s32, %s35
      %p44 = scmp.eq.s32.totalorder %s27, 1
      %p45 = por %p43, %p44
      %p46 = scmp.ne.s32.totalorder %s35, %s36
      %p47 = scmp.eq.s32.totalorder %s27, 0
      %p48 = por %p46, %p47
      %p49 = scmp.ne.s32.totalorder %s35, %s36
      %p50 = scmp.eq.s32.totalorder %s28, 1
      %p51 = por %p49, %p50
      %p53 = scmp.ne.s32.totalorder %s36, %s52
      %p54 = scmp.eq.s32.totalorder %s28, 0
      %p55 = por %p53, %p54
      %s57 = sadd.s32 %s56, 1
      %p60 = scmp.eq.s32.totalorder %s22, 1
      %p61 = scmp.ne.s32.totalorder %s56, %s58
      %p62 = scmp.eq.s32.totalorder %s22, 0
      %p63 = por %p61, %p62
      %p64 = scmp.ne.s32.totalorder %s56, %s58
      %p65 = scmp.eq.s32.totalorder %s27, 1
      %p66 = por %p64, %p65
      %p67 = scmp.ne.s32.totalorder %s58, %s59
      %p68 = scmp.eq.s32.totalorder %s27, 0
      %p69 = por %p67, %p68
      %p70 = scmp.ne.s32.totalorder %s58, %s59
      %p71 = scmp.eq.s32.totalorder %s28, 1
      %p72 = por %p70, %p71
      %p74 = scmp.ne.s32.totalorder %s59, %s73
      %p75 = scmp.eq.s32.totalorder %s28, 0
      %p76 = por %p74, %p75
      %s78 = sadd.s32 %s77, 1
      %p81 = scmp.eq.s32.totalorder %s22, 1
      %p82 = scmp.ne.s32.totalorder %s77, %s79
      %p83 = scmp.eq.s32.totalorder %s22, 0
      %p84 = por %p82, %p83
      %p85 = scmp.ne.s32.totalorder %s77, %s79
      %p86 = scmp.eq.s32.totalorder %s27, 1
      %p87 = por %p85, %p86
      %p88 = scmp.ne.s32.totalorder %s79, %s80
      %p89 = scmp.eq.s32.totalorder %s27, 0
      %p90 = por %p88, %p89
      %p91 = scmp.ne.s32.totalorder %s79, %s80
      %p92 = scmp.eq.s32.totalorder %s28, 1
      %p93 = por %p91, %p92
      %p95 = scmp.ne.s32.totalorder %s80, %s94
      %p96 = scmp.eq.s32.totalorder %s28, 0
      %p97 = por %p95, %p96
      %s99 = sadd.s32 %s98, 1
      %p102 = scmp.eq.s32.totalorder %s22, 1
      %p103 = scmp.ne.s32.totalorder %s98, %s100
      %p104 = scmp.eq.s32.totalorder %s22, 0
      %p105 = por %p103, %p104
      %p106 = scmp.ne.s32.totalorder %s98, %s100
      %p107 = scmp.eq.s32.totalorder %s27, 1
      %p108 = por %p106, %p107
      %p109 = scmp.ne.s32.totalorder %s100, %s101
      %p110 = scmp.eq.s32.totalorder %s27, 0
      %p111 = por %p109, %p110
      %p112 = scmp.ne.s32.totalorder %s100, %s101
      %p113 = scmp.eq.s32.totalorder %s28, 1
      %p114 = por %p112, %p113
      %p116 = scmp.ne.s32.totalorder %s101, %s115
      %p117 = scmp.eq.s32.totalorder %s28, 0
      %p118 = por %p116, %p117
      %s120 = sadd.s32 %s119, 1
      %p123 = scmp.eq.s32.totalorder %s22, 1
      %p124 = scmp.ne.s32.totalorder %s119, %s121
      %p125 = scmp.eq.s32.totalorder %s22, 0
      %p126 = por %p124, %p125
      %p127 = scmp.ne.s32.totalorder %s119, %s121
      %p128 = scmp.eq.s32.totalorder %s27, 1
      %p129 = por %p127, %p128
      %p130 = scmp.ne.s32.totalorder %s121, %s122
      %p131 = scmp.eq.s32.totalorder %s27, 0
      %p132 = por %p130, %p131
      %p133 = scmp.ne.s32.totalorder %s121, %s122
      %p134 = scmp.eq.s32.totalorder %s28, 1
      %p135 = por %p133, %p134
      %p137 = scmp.ne.s32.totalorder %s122, %s136
      %p138 = scmp.eq.s32.totalorder %s28, 0
      %p139 = por %p137, %p138
      %s141 = sadd.s32 %s140, 1
      %p144 = scmp.eq.s32.totalorder %s22, 1
      %p145 = scmp.ne.s32.totalorder %s140, %s142
      %p146 = scmp.eq.s32.totalorder %s22, 0
      %p147 = por %p145, %p146
      %p148 = scmp.ne.s32.totalorder %s140, %s142
      %p149 = scmp.eq.s32.totalorder %s27, 1
      %p150 = por %p148, %p149
      %p151 = scmp.ne.s32.totalorder %s142, %s143
      %p152 = scmp.eq.s32.totalorder %s27, 0
      %p153 = por %p151, %p152
      %p154 = scmp.ne.s32.totalorder %s142, %s143
      %p155 = scmp.eq.s32.totalorder %s28, 1
      %p156 = por %p154, %p155
      %p158 = scmp.ne.s32.totalorder %s143, %s157
      %p159 = scmp.eq.s32.totalorder %s28, 0
      %p160 = por %p158, %p159
      %s162 = sadd.s32 %s161, 1
      %p165 = scmp.eq.s32.totalorder %s22, 1
      %p166 = scmp.ne.s32.totalorder %s161, %s163
      %p167 = scmp.eq.s32.totalorder %s22, 0
      %p168 = por %p166, %p167
      %p169 = scmp.ne.s32.totalorder %s161, %s163
      %p170 = scmp.eq.s32.totalorder %s27, 1
      %p171 = por %p169, %p170
      %p172 = scmp.ne.s32.totalorder %s163, %s164
      %p173 = scmp.eq.s32.totalorder %s27, 0
      %p174 = por %p172, %p173
      %p175 = scmp.ne.s32.totalorder %s163, %s164
      %p176 = scmp.eq.s32.totalorder %s28, 1
      %p177 = por %p175, %p176
      %p179 = scmp.ne.s32.totalorder %s164, %s178
      %p180 = scmp.eq.s32.totalorder %s28, 0
      %p181 = por %p179, %p180
      %s183 = sadd.s32 %s182, 1
      %p186 = scmp.eq.s32.totalorder %s22, 1
      %p187 = scmp.ne.s32.totalorder %s182, %s184
      %p188 = scmp.eq.s32.totalorder %s22, 0
      %p189 = por %p187, %p188
      %p190 = scmp.ne.s32.totalorder %s182, %s184
      %p191 = scmp.eq.s32.totalorder %s27, 1
      %p192 = por %p190, %p191
      %p193 = scmp.ne.s32.totalorder %s184, %s185
      %p194 = scmp.eq.s32.totalorder %s27, 0
      %p195 = por %p193, %p194
      %p196 = scmp.ne.s32.totalorder %s184, %s185
      %p197 = scmp.eq.s32.totalorder %s28, 1
      %p198 = por %p196, %p197
      %p200 = scmp.ne.s32.totalorder %s185, %s199
      %p201 = scmp.eq.s32.totalorder %s28, 0
      %p202 = por %p200, %p201
      %s204 = sadd.s32 %s203, 1
      %p207 = scmp.eq.s32.totalorder %s22, 1
      %p208 = scmp.ne.s32.totalorder %s203, %s205
      %p209 = scmp.eq.s32.totalorder %s22, 0
      %p210 = por %p208, %p209
      %p211 = scmp.ne.s32.totalorder %s203, %s205
      %p212 = scmp.eq.s32.totalorder %s27, 1
      %p213 = por %p211, %p212
      %p214 = scmp.ne.s32.totalorder %s205, %s206
      %p215 = scmp.eq.s32.totalorder %s27, 0
      %p216 = por %p214, %p215
      %p217 = scmp.ne.s32.totalorder %s205, %s206
      %p218 = scmp.eq.s32.totalorder %s28, 1
      %p219 = por %p217, %p218
      %p221 = scmp.ne.s32.totalorder %s206, %s220
      %p222 = scmp.eq.s32.totalorder %s28, 0
      %p223 = por %p221, %p222
      %s225 = sadd.s32 %s224, 1
      %p228 = scmp.eq.s32.totalorder %s22, 1
      %p229 = scmp.ne.s32.totalorder %s224, %s226
      %p230 = scmp.eq.s32.totalorder %s22, 0
      %p231 = por %p229, %p230
      %p232 = scmp.ne.s32.totalorder %s224, %s226
      %p233 = scmp.eq.s32.totalorder %s27, 1
      %p234 = por %p232, %p233
      %p235 = scmp.ne.s32.totalorder %s226, %s227
      %p236 = scmp.eq.s32.totalorder %s27, 0
      %p237 = por %p235, %p236
      %p238 = scmp.ne.s32.totalorder %s226, %s227
      %p239 = scmp.eq.s32.totalorder %s28, 1
      %p240 = por %p238, %p239
      %p242 = scmp.ne.s32.totalorder %s227, %s241
      %p243 = scmp.eq.s32.totalorder %s28, 0
      %p244 = por %p242, %p243
      %s246 = sadd.s32 %s245, 1
      %p249 = scmp.eq.s32.totalorder %s22, 1
      %p250 = scmp.ne.s32.totalorder %s245, %s247
      %p251 = scmp.eq.s32.totalorder %s22, 0
      %p252 = por %p250, %p251
      %p253 = scmp.ne.s32.totalorder %s245, %s247
      %p254 = scmp.eq.s32.totalorder %s27, 1
      %p255 = por %p253, %p254
      %p256 = scmp.ne.s32.totalorder %s247, %s248
      %p257 = scmp.eq.s32.totalorder %s27, 0
      %p258 = por %p256, %p257
      %p259 = scmp.ne.s32.totalorder %s247, %s248
      %p260 = scmp.eq.s32.totalorder %s28, 1
      %p261 = por %p259, %p260
      %p263 = scmp.ne.s32.totalorder %s248, %s262
      %p264 = scmp.eq.s32.totalorder %s28, 0
      %p265 = por %p263, %p264
      %s267 = sadd.s32 %s266, 1
      %p270 = scmp.eq.s32.totalorder %s22, 1
      %p271 = scmp.ne.s32.totalorder %s266, %s268
      %p272 = scmp.eq.s32.totalorder %s22, 0
      %p273 = por %p271, %p272
      %p274 = scmp.ne.s32.totalorder %s266, %s268
      %p275 = scmp.eq.s32.totalorder %s27, 1
      %p276 = por %p274, %p275
      %p277 = scmp.ne.s32.totalorder %s268, %s269
      %p278 = scmp.eq.s32.totalorder %s27, 0
      %p279 = por %p277, %p278
      %p280 = scmp.ne.s32.totalorder %s268, %s269
      %p281 = scmp.eq.s32.totalorder %s28, 1
      %p282 = por %p280, %p281
      %p284 = scmp.ne.s32.totalorder %s269, %s283
      %p285 = scmp.eq.s32.totalorder %s28, 0
      %p286 = por %p284, %p285
      %s288 = sadd.s32 %s287, 1
      %p291 = scmp.eq.s32.totalorder %s22, 1
      %p292 = scmp.ne.s32.totalorder %s287, %s289
      %p293 = scmp.eq.s32.totalorder %s22, 0
      %p294 = por %p292, %p293
      %p295 = scmp.ne.s32.totalorder %s287, %s289
      %p296 = scmp.eq.s32.totalorder %s27, 1
      %p297 = por %p295, %p296
      %p298 = scmp.ne.s32.totalorder %s289, %s290
      %p299 = scmp.eq.s32.totalorder %s27, 0
      %p300 = por %p298, %p299
      %p301 = scmp.ne.s32.totalorder %s289, %s290
      %p302 = scmp.eq.s32.totalorder %s28, 1
      %p303 = por %p301, %p302
      %p305 = scmp.ne.s32.totalorder %s290, %s304
      %p306 = scmp.eq.s32.totalorder %s28, 0
      %p307 = por %p305, %p306
      %s308 = ssub.s32 %s22, %s29
      %p309 = scmp.eq.s32.totalorder %s308, 0
      %s311 = sadd.s32 %s310, 1
      %s312 = scalar_select %p309, %s310, %s311
      %p315 = pneg %p309
      %p316 = scmp.eq.s32.totalorder %s22, 1
      %p317 = por %p315, %p316
      %p318 = scmp.ne.s32.totalorder %s310, %s313
      %p319 = scmp.eq.s32.totalorder %s22, 0
      %p320 = por %p318, %p319
      %p321 = scmp.ne.s32.totalorder %s310, %s313
      %p322 = scmp.eq.s32.totalorder %s27, 1
      %p323 = por %p321, %p322
      %p324 = scmp.ne.s32.totalorder %s313, %s314
      %p325 = scmp.eq.s32.totalorder %s27, 0
      %p326 = por %p324, %p325
      %p327 = scmp.ne.s32.totalorder %s313, %s314
      %p328 = scmp.eq.s32.totalorder %s28, 1
      %p329 = por %p327, %p328
      %p331 = scmp.ne.s32.totalorder %s314, %s330
      %p332 = scmp.eq.s32.totalorder %s28, 0
      %p333 = por %p331, %p332
      %p334 = scmp.le.s32.totalorder 1, %s22
      %p335 = scmp.lt.s32.totalorder %s22, 3
      %p336 = pnand %p334, %p335
      %p337 = pneg %p336
      // Predicated region
      $region9: #{net_forward.1} parent=5 // pred_check
        _
      $region10: #{net_forward.1} parent=5 // pred_check_branch
        %339 = sbr.rel (%p336) target = $region12
      $region11: #{net_forward.1} parent=5 // pred_region
        %s340 = ssub.s32 %s22, 1
        // Predicated region
        $region13: #{net_forward.1} parent=11 // pred_check
          %p341 = pneg %p69
        $region14: #{net_forward.1} parent=11 // pred_check_branch
          %343 = sbr.rel (%p341) target = $region16
        $region15: #{net_forward.1} parent=11 // pred_region
          _
        $region16: #{net_forward.1} parent=11 // pred_fallthru
          _
        // Predicated region
        $region17: #{net_forward.1} parent=11 // pred_check
          %p344 = pneg %p90
        $region18: #{net_forward.1} parent=11 // pred_check_branch
          %346 = sbr.rel (%p344) target = $region20
        $region19: #{net_forward.1} parent=11 // pred_region
          _
        $region20: #{net_forward.1} parent=11 // pred_fallthru
          _
        // Predicated region
        $region21: #{net_forward.1} parent=11 // pred_check
          %p347 = pneg %p111
        $region22: #{net_forward.1} parent=11 // pred_check_branch
          %349 = sbr.rel (%p347) target = $region24
        $region23: #{net_forward.1} parent=11 // pred_region
          _
        $region24: #{net_forward.1} parent=11 // pred_fallthru
          _
        // Predicated region
        $region25: #{net_forward.1} parent=11 // pred_check
          %p350 = pneg %p132
        $region26: #{net_forward.1} parent=11 // pred_check_branch
          %352 = sbr.rel (%p350) target = $region28
        $region27: #{net_forward.1} parent=11 // pred_region
          _
        $region28: #{net_forward.1} parent=11 // pred_fallthru
          _
        // Predicated region
        $region29: #{net_forward.1} parent=11 // pred_check
          %p353 = pneg %p153
        $region30: #{net_forward.1} parent=11 // pred_check_branch
          %355 = sbr.rel (%p353) target = $region32
        $region31: #{net_forward.1} parent=11 // pred_region
          _
        $region32: #{net_forward.1} parent=11 // pred_fallthru
          _
        // Predicated region
        $region33: #{net_forward.1} parent=11 // pred_check
          %p356 = pneg %p174
        $region34: #{net_forward.1} parent=11 // pred_check_branch
          %358 = sbr.rel (%p356) target = $region36
        $region35: #{net_forward.1} parent=11 // pred_region
          _
        $region36: #{net_forward.1} parent=11 // pred_fallthru
          _
        // Predicated region
        $region37: #{net_forward.1} parent=11 // pred_check
          %p359 = pneg %p195
        $region38: #{net_forward.1} parent=11 // pred_check_branch
          %361 = sbr.rel (%p359) target = $region40
        $region39: #{net_forward.1} parent=11 // pred_region
          _
        $region40: #{net_forward.1} parent=11 // pred_fallthru
          _
        // Predicated region
        $region41: #{net_forward.1} parent=11 // pred_check
          %p362 = pneg %p216
        $region42: #{net_forward.1} parent=11 // pred_check_branch
          %364 = sbr.rel (%p362) target = $region44
        $region43: #{net_forward.1} parent=11 // pred_region
          _
        $region44: #{net_forward.1} parent=11 // pred_fallthru
          _
        // Predicated region
        $region45: #{net_forward.1} parent=11 // pred_check
          %p365 = pneg %p237
        $region46: #{net_forward.1} parent=11 // pred_check_branch
          %367 = sbr.rel (%p365) target = $region48
        $region47: #{net_forward.1} parent=11 // pred_region
          _
        $region48: #{net_forward.1} parent=11 // pred_fallthru
          _
        // Predicated region
        $region49: #{net_forward.1} parent=11 // pred_check
          %p368 = pneg %p258
        $region50: #{net_forward.1} parent=11 // pred_check_branch
          %370 = sbr.rel (%p368) target = $region52
        $region51: #{net_forward.1} parent=11 // pred_region
          _
        $region52: #{net_forward.1} parent=11 // pred_fallthru
          _
        // Predicated region
        $region53: #{net_forward.1} parent=11 // pred_check
          %p371 = pneg %p279
        $region54: #{net_forward.1} parent=11 // pred_check_branch
          %373 = sbr.rel (%p371) target = $region56
        $region55: #{net_forward.1} parent=11 // pred_region
          _
        $region56: #{net_forward.1} parent=11 // pred_fallthru
          _
        // Predicated region
        $region57: #{net_forward.1} parent=11 // pred_check
          %p374 = pneg %p300
        $region58: #{net_forward.1} parent=11 // pred_check_branch
          %376 = sbr.rel (%p374) target = $region60
        $region59: #{net_forward.1} parent=11 // pred_region
          _
        $region60: #{net_forward.1} parent=11 // pred_fallthru
          _
      $region12: #{net_forward.1} parent=5 // pred_fallthru
        _
      %p377 = scmp.lt.s32.totalorder %s22, 2
      // Predicated region
      $region61: #{net_forward.1} parent=5 // pred_check
        %p378 = pneg %p377
      $region62: #{net_forward.1} parent=5 // pred_check_branch
        %380 = sbr.rel (%p378) target = $region64
      $region63: #{net_forward.1} parent=5 // pred_region
        // Predicated region
        $region65: #{net_forward.1} parent=63 // pred_check
          %p381 = pneg %p42
        $region66: #{net_forward.1} parent=63 // pred_check_branch
          %383 = sbr.rel (%p381) target = $region68
        $region67: #{net_forward.1} parent=63 // pred_region
          %s384 = sand.u32 %s32, 1
          %s385 = sand.u32 %s32, 1
          %s386 = smul.addr %s385, 128
          %s387 = scalar_lea.vmem [#allocation2], %s386
          %s388 = smul.addr %s22, 4
          %s389 = scalar_lea.vmem %s0, %s388
          // Predicated region
          $region69: #{net_forward.1} parent=67 // pred_check
            _
          $region70: #{net_forward.1} parent=67 // pred_check_branch
            %391 = sbr.rel (0) target = $region72
          $region71: #{net_forward.1} parent=67 // pred_region
            // Predicated region
            $region73: #{net_forward.1} parent=71 // pred_check
              _
            $region74: #{net_forward.1} parent=71 // pred_check_branch
              %393 = sbr.rel target = $region76
            $region75: #{net_forward.1} parent=71 // pred_region
              // Predicated region
              $region88: #{net_forward.1} parent=75 // pred_check
                _
              $region89: #{net_forward.1} parent=75 // pred_check_branch
                %470 = sbr.rel (0) target = $region91
              $region90: #{net_forward.1} parent=75 // pred_region
                loop: start=0, step=1, limit=1
                $region92: #{net_forward.1} parent=90 // loop_pre_header
                  _
                $region93: #{net_forward.1} parent=90 // loop_header
                  %s472 = sphi 0, %s476
                  %p473 = scmp.ge.s32.totalorder %s472, 1
                  %s477 = sphi %s389, %s389
                  %s478 = sphi %s387, %s387
                $region94: #{net_forward.1} parent=90 // loop_header_branch
                  %475 = sbr.rel (%p473) target = $region98
                $region95: #{net_forward.1} parent=90 // loop_body
                  _
                $region96: #{net_forward.1} parent=90 // loop_footer
                  %s476 = sadd.s32 1, %s472
                $region97: #{net_forward.1} parent=90 // loop_footer_branch
                  %471 = sbr.rel target = $region93
                $region98: #{net_forward.1} parent=90 // loop_exit
                  _
                loop: start=0, step=1, limit=1
                $region99: #{net_forward.1} parent=90 // loop_pre_header
                  _
                $region100: #{net_forward.1} parent=90 // loop_header
                  %s481 = sphi 0, %s485
                  %p482 = scmp.ge.s32.totalorder %s481, 1
                  %s486 = sphi %s389, %s389
                  %s487 = sphi %s387, %s387
                $region101: #{net_forward.1} parent=90 // loop_header_branch
                  %484 = sbr.rel (%p482) target = $region105
                $region102: #{net_forward.1} parent=90 // loop_body
                  %v488 = vld [vmem:[%s486] sm:$0xf]
                  %489 = vst [vmem:[%s487] sm:$0xf] %v488
                  %v490 = vld [vmem:[%s486 + $0x8] sm:$0xf]
                  %491 = vst [vmem:[%s487 + $0x4] sm:$0xf] %v490
                  %v492 = vld [vmem:[%s486 + $0x10] sm:$0xf]
                  %493 = vst [vmem:[%s487 + $0x8] sm:$0xf] %v492
                  %v494 = vld [vmem:[%s486 + $0x18] sm:$0xf]
                  %495 = vst [vmem:[%s487 + $0xc] sm:$0xf] %v494
                  %v496 = vld [vmem:[%s486 + $0x20] sm:$0xf]
                  %497 = vst [vmem:[%s487 + $0x10] sm:$0xf] %v496
                  %v498 = vld [vmem:[%s486 + $0x28] sm:$0xf]
                  %499 = vst [vmem:[%s487 + $0x14] sm:$0xf] %v498
                  %v500 = vld [vmem:[%s486 + $0x30] sm:$0xf]
                  %501 = vst [vmem:[%s487 + $0x18] sm:$0xf] %v500
                  %v502 = vld [vmem:[%s486 + $0x38] sm:$0xf]
                  %503 = vst [vmem:[%s487 + $0x1c] sm:$0xf] %v502
                  %v504 = vld [vmem:[%s486 + $0x40] sm:$0xf]
                  %505 = vst [vmem:[%s487 + $0x20] sm:$0xf] %v504
                  %v506 = vld [vmem:[%s486 + $0x48] sm:$0xf]
                  %507 = vst [vmem:[%s487 + $0x24] sm:$0xf] %v506
                  %v508 = vld [vmem:[%s486 + $0x50] sm:$0xf]
                  %509 = vst [vmem:[%s487 + $0x28] sm:$0xf] %v508
                  %v510 = vld [vmem:[%s486 + $0x58] sm:$0xf]
                  %511 = vst [vmem:[%s487 + $0x2c] sm:$0xf] %v510
                  %v512 = vld [vmem:[%s486 + $0x60] sm:$0xf]
                  %513 = vst [vmem:[%s487 + $0x30] sm:$0xf] %v512
                  %v514 = vld [vmem:[%s486 + $0x68] sm:$0xf]
                  %515 = vst [vmem:[%s487 + $0x34] sm:$0xf] %v514
                  %v516 = vld [vmem:[%s486 + $0x70] sm:$0xf]
                  %517 = vst [vmem:[%s487 + $0x38] sm:$0xf] %v516
                  %v518 = vld [vmem:[%s486 + $0x78] sm:$0xf]
                  %519 = vst [vmem:[%s487 + $0x3c] sm:$0xf] %v518
                  %v520 = vld [vmem:[%s486 + $0x80] sm:$0xf]
                  %521 = vst [vmem:[%s487 + $0x40] sm:$0xf] %v520
                  %v522 = vld [vmem:[%s486 + $0x88] sm:$0xf]
                  %523 = vst [vmem:[%s487 + $0x44] sm:$0xf] %v522
                  %v524 = vld [vmem:[%s486 + $0x90] sm:$0xf]
                  %525 = vst [vmem:[%s487 + $0x48] sm:$0xf] %v524
                  %v526 = vld [vmem:[%s486 + $0x98] sm:$0xf]
                  %527 = vst [vmem:[%s487 + $0x4c] sm:$0xf] %v526
                  %v528 = vld [vmem:[%s486 + $0xa0] sm:$0xf]
                  %529 = vst [vmem:[%s487 + $0x50] sm:$0xf] %v528
                  %v530 = vld [vmem:[%s486 + $0xa8] sm:$0xf]
                  %531 = vst [vmem:[%s487 + $0x54] sm:$0xf] %v530
                  %v532 = vld [vmem:[%s486 + $0xb0] sm:$0xf]
                  %533 = vst [vmem:[%s487 + $0x58] sm:$0xf] %v532
                  %v534 = vld [vmem:[%s486 + $0xb8] sm:$0xf]
                  %535 = vst [vmem:[%s487 + $0x5c] sm:$0xf] %v534
                  %v536 = vld [vmem:[%s486 + $0xc0] sm:$0xf]
                  %537 = vst [vmem:[%s487 + $0x60] sm:$0xf] %v536
                  %v538 = vld [vmem:[%s486 + $0xc8] sm:$0xf]
                  %539 = vst [vmem:[%s487 + $0x64] sm:$0xf] %v538
                  %v540 = vld [vmem:[%s486 + $0xd0] sm:$0xf]
                  %541 = vst [vmem:[%s487 + $0x68] sm:$0xf] %v540
                  %v542 = vld [vmem:[%s486 + $0xd8] sm:$0xf]
                  %543 = vst [vmem:[%s487 + $0x6c] sm:$0xf] %v542
                  %v544 = vld [vmem:[%s486 + $0xe0] sm:$0xf]
                  %545 = vst [vmem:[%s487 + $0x70] sm:$0xf] %v544
                  %v546 = vld [vmem:[%s486 + $0xe8] sm:$0xf]
                  %547 = vst [vmem:[%s487 + $0x74] sm:$0xf] %v546
                  %v548 = vld [vmem:[%s486 + $0xf0] sm:$0xf]
                  %549 = vst [vmem:[%s487 + $0x78] sm:$0xf] %v548
                  %v550 = vld [vmem:[%s486 + $0xf8] sm:$0xf]
                  %551 = vst [vmem:[%s487 + $0x7c] sm:$0xf] %v550
                $region103: #{net_forward.1} parent=90 // loop_footer
                  %s485 = sadd.s32 1, %s481
                $region104: #{net_forward.1} parent=90 // loop_footer_branch
                  %480 = sbr.rel target = $region100
                $region105: #{net_forward.1} parent=90 // loop_exit
                  _
              $region91: #{net_forward.1} parent=75 // pred_fallthru
                _
            $region76: #{net_forward.1} parent=71 // pred_fallthru
              _
            // Predicated region
            $region77: #{net_forward.1} parent=71 // pred_check
              _
            $region78: #{net_forward.1} parent=71 // pred_check_branch
              %395 = sbr.rel (0) target = $region80
            $region79: #{net_forward.1} parent=71 // pred_region
              loop: start=0, step=1, limit=1
              $region81: #{net_forward.1} parent=79 // loop_pre_header
                _
              $region82: #{net_forward.1} parent=79 // loop_header
                %s398 = sphi 0, %s402
                %p399 = scmp.ge.s32.totalorder %s398, 1
                %s403 = sphi %s389, %s389
                %s404 = sphi %s387, %s387
              $region83: #{net_forward.1} parent=79 // loop_header_branch
                %401 = sbr.rel (%p399) target = $region87
              $region84: #{net_forward.1} parent=79 // loop_body
                %v405 = vld [vmem:[%s403] sm:$0xf]
                %406 = vst [vmem:[%s404] sm:$0xf] %v405
                %v407 = vld [vmem:[%s403 + $0x8] sm:$0xf]
                %408 = vst [vmem:[%s404 + $0x4] sm:$0xf] %v407
                %v409 = vld [vmem:[%s403 + $0x10] sm:$0xf]
                %410 = vst [vmem:[%s404 + $0x8] sm:$0xf] %v409
                %v411 = vld [vmem:[%s403 + $0x18] sm:$0xf]
                %412 = vst [vmem:[%s404 + $0xc] sm:$0xf] %v411
                %v413 = vld [vmem:[%s403 + $0x20] sm:$0xf]
                %414 = vst [vmem:[%s404 + $0x10] sm:$0xf] %v413
                %v415 = vld [vmem:[%s403 + $0x28] sm:$0xf]
                %416 = vst [vmem:[%s404 + $0x14] sm:$0xf] %v415
                %v417 = vld [vmem:[%s403 + $0x30] sm:$0xf]
                %418 = vst [vmem:[%s404 + $0x18] sm:$0xf] %v417
                %v419 = vld [vmem:[%s403 + $0x38] sm:$0xf]
                %420 = vst [vmem:[%s404 + $0x1c] sm:$0xf] %v419
                %v421 = vld [vmem:[%s403 + $0x40] sm:$0xf]
                %422 = vst [vmem:[%s404 + $0x20] sm:$0xf] %v421
                %v423 = vld [vmem:[%s403 + $0x48] sm:$0xf]
                %424 = vst [vmem:[%s404 + $0x24] sm:$0xf] %v423
                %v425 = vld [vmem:[%s403 + $0x50] sm:$0xf]
                %426 = vst [vmem:[%s404 + $0x28] sm:$0xf] %v425
                %v427 = vld [vmem:[%s403 + $0x58] sm:$0xf]
                %428 = vst [vmem:[%s404 + $0x2c] sm:$0xf] %v427
                %v429 = vld [vmem:[%s403 + $0x60] sm:$0xf]
                %430 = vst [vmem:[%s404 + $0x30] sm:$0xf] %v429
                %v431 = vld [vmem:[%s403 + $0x68] sm:$0xf]
                %432 = vst [vmem:[%s404 + $0x34] sm:$0xf] %v431
                %v433 = vld [vmem:[%s403 + $0x70] sm:$0xf]
                %434 = vst [vmem:[%s404 + $0x38] sm:$0xf] %v433
                %v435 = vld [vmem:[%s403 + $0x78] sm:$0xf]
                %436 = vst [vmem:[%s404 + $0x3c] sm:$0xf] %v435
                %v437 = vld [vmem:[%s403 + $0x80] sm:$0xf]
                %438 = vst [vmem:[%s404 + $0x40] sm:$0xf] %v437
                %v439 = vld [vmem:[%s403 + $0x88] sm:$0xf]
                %440 = vst [vmem:[%s404 + $0x44] sm:$0xf] %v439
                %v441 = vld [vmem:[%s403 + $0x90] sm:$0xf]
                %442 = vst [vmem:[%s404 + $0x48] sm:$0xf] %v441
                %v443 = vld [vmem:[%s403 + $0x98] sm:$0xf]
                %444 = vst [vmem:[%s404 + $0x4c] sm:$0xf] %v443
                %v445 = vld [vmem:[%s403 + $0xa0] sm:$0xf]
                %446 = vst [vmem:[%s404 + $0x50] sm:$0xf] %v445
                %v447 = vld [vmem:[%s403 + $0xa8] sm:$0xf]
                %448 = vst [vmem:[%s404 + $0x54] sm:$0xf] %v447
                %v449 = vld [vmem:[%s403 + $0xb0] sm:$0xf]
                %450 = vst [vmem:[%s404 + $0x58] sm:$0xf] %v449
                %v451 = vld [vmem:[%s403 + $0xb8] sm:$0xf]
                %452 = vst [vmem:[%s404 + $0x5c] sm:$0xf] %v451
                %v453 = vld [vmem:[%s403 + $0xc0] sm:$0xf]
                %454 = vst [vmem:[%s404 + $0x60] sm:$0xf] %v453
                %v455 = vld [vmem:[%s403 + $0xc8] sm:$0xf]
                %456 = vst [vmem:[%s404 + $0x64] sm:$0xf] %v455
                %v457 = vld [vmem:[%s403 + $0xd0] sm:$0xf]
                %458 = vst [vmem:[%s404 + $0x68] sm:$0xf] %v457
                %v459 = vld [vmem:[%s403 + $0xd8] sm:$0xf]
                %460 = vst [vmem:[%s404 + $0x6c] sm:$0xf] %v459
                %v461 = vld [vmem:[%s403 + $0xe0] sm:$0xf]
                %462 = vst [vmem:[%s404 + $0x70] sm:$0xf] %v461
                %v463 = vld [vmem:[%s403 + $0xe8] sm:$0xf]
                %464 = vst [vmem:[%s404 + $0x74] sm:$0xf] %v463
                %v465 = vld [vmem:[%s403 + $0xf0] sm:$0xf]
                %466 = vst [vmem:[%s404 + $0x78] sm:$0xf] %v465
                %v467 = vld [vmem:[%s403 + $0xf8] sm:$0xf]
                %468 = vst [vmem:[%s404 + $0x7c] sm:$0xf] %v467
              $region85: #{net_forward.1} parent=79 // loop_footer
                %s402 = sadd.s32 1, %s398
              $region86: #{net_forward.1} parent=79 // loop_footer_branch
                %397 = sbr.rel target = $region82
              $region87: #{net_forward.1} parent=79 // loop_exit
                _
            $region80: #{net_forward.1} parent=71 // pred_fallthru
              _
          $region72: #{net_forward.1} parent=67 // pred_fallthru
            _
          %552 = vnop
        $region68: #{net_forward.1} parent=63 // pred_fallthru
          _
      $region64: #{net_forward.1} parent=5 // pred_fallthru
        _
      %p553 = scmp.le.s32.totalorder 1, %s22
      %p554 = scmp.lt.s32.totalorder %s22, 3
      %p555 = pnand %p553, %p554
      %p556 = pneg %p555
      // Predicated region
      $region106: #{net_forward.1} parent=5 // pred_check
        _
      $region107: #{net_forward.1} parent=5 // pred_check_branch
        %558 = sbr.rel (%p555) target = $region109
      $region108: #{net_forward.1} parent=5 // pred_region
        %s559 = ssub.s32 %s22, 1
        %s560 = sand.u32 %s35, 1
        %s561 = sand.u32 %s35, 1
        %s562 = smul.addr %s561, 128
        %s563 = scalar_lea.vmem [#allocation2], %s562
        // Predicated region
        $region110: #{net_forward.1} parent=108 // pred_check
          %p564 = pneg %p48
        $region111: #{net_forward.1} parent=108 // pred_check_branch
          %566 = sbr.rel (%p564) target = $region113
        $region112: #{net_forward.1} parent=108 // pred_region
          _
        $region113: #{net_forward.1} parent=108 // pred_fallthru
          _
        %s567 = sand.u32 %s35, 1
        %s568 = sand.u32 %s35, 1
        %s569 = smul.addr %s568, 128
        %s570 = scalar_lea.vmem [#allocation2], %s569
        %p571 = pneg %p48
        %p572 = pneg %p45
        %p573 = pneg %p69
        %p574 = pneg %p66
        %p575 = pneg %p90
        %p576 = pneg %p87
        %p577 = pneg %p111
        %p578 = pneg %p108
        %p579 = pneg %p132
        %p580 = pneg %p129
        %p581 = pneg %p153
        %p582 = pneg %p150
        %p583 = pneg %p174
        %p584 = pneg %p171
        %p585 = pneg %p195
        %p586 = pneg %p192
        %p587 = pneg %p216
        %p588 = pneg %p213
        %p589 = pneg %p237
        %p590 = pneg %p234
        %p591 = pneg %p258
        %p592 = pneg %p255
        %p593 = pneg %p279
        %p594 = pneg %p276
        %p595 = pneg %p300
        %p596 = pneg %p297
        %p597 = pneg %p326
        %p598 = pneg %p323
        %s599 = sand.u32 %s313, 1
        %s600 = scalar_lea.sflag [#allocation4], %s599
        %s601 = sand.u32 %s313, 1
        %s602 = smul.addr %s601, 8
        %s603 = scalar_lea.vmem [#allocation3], %s602
        %v605 = vld [vmem:[%s563] sm:$0xf]
        %v606 = vld [vmem:[%s563 + $0x4] sm:$0xf]
        %v607 = vld [vmem:[%s563 + $0x8] sm:$0xf]
        %v608 = vld [vmem:[%s563 + $0xc] sm:$0xf]
        %v609 = vld [vmem:[%s563 + $0x10] sm:$0xf]
        %v610 = vld [vmem:[%s563 + $0x14] sm:$0xf]
        %v611 = vld [vmem:[%s563 + $0x18] sm:$0xf]
        %v612 = vld [vmem:[%s563 + $0x1c] sm:$0xf]
        %v613 = vld [vmem:[%s563 + $0x20] sm:$0xf]
        %v614 = vld [vmem:[%s563 + $0x24] sm:$0xf]
        %v615 = vld [vmem:[%s563 + $0x28] sm:$0xf]
        %v616 = vld [vmem:[%s563 + $0x2c] sm:$0xf]
        %v617 = vld [vmem:[%s563 + $0x30] sm:$0xf]
        %v618 = vld [vmem:[%s563 + $0x34] sm:$0xf]
        %v619 = vld [vmem:[%s563 + $0x38] sm:$0xf]
        %v620 = vld [vmem:[%s563 + $0x3c] sm:$0xf]
        %v621 = vld [vmem:[%s563 + $0x40] sm:$0xf]
        %v622 = vld [vmem:[%s563 + $0x44] sm:$0xf]
        %v623 = vld [vmem:[%s563 + $0x48] sm:$0xf]
        %v624 = vld [vmem:[%s563 + $0x4c] sm:$0xf]
        %v625 = vld [vmem:[%s563 + $0x50] sm:$0xf]
        %v626 = vld [vmem:[%s563 + $0x54] sm:$0xf]
        %v627 = vld [vmem:[%s563 + $0x58] sm:$0xf]
        %v628 = vld [vmem:[%s563 + $0x5c] sm:$0xf]
        %v629 = vld [vmem:[%s563 + $0x60] sm:$0xf]
        %v630 = vld [vmem:[%s563 + $0x64] sm:$0xf]
        %v631 = vld [vmem:[%s563 + $0x68] sm:$0xf]
        %v632 = vld [vmem:[%s563 + $0x6c] sm:$0xf]
        %v633 = vld [vmem:[%s563 + $0x70] sm:$0xf]
        %v634 = vld [vmem:[%s563 + $0x74] sm:$0xf]
        %v635 = vld [vmem:[%s563 + $0x78] sm:$0xf]
        %v636 = vld [vmem:[%s563 + $0x7c] sm:$0xf]
        %v637 = vld [vmem:[%s1] sm:$0xff]
        %v638 = vld [vmem:[%s1 + $0x8] sm:$0xff]
        %v639 = vld [vmem:[%s1 + $0x10] sm:$0xff]
        %v640 = vld [vmem:[%s1 + $0x18] sm:$0xff]
        %v641 = vld [vmem:[%s1 + $0x20] sm:$0xff]
        %v642 = vld [vmem:[%s1 + $0x28] sm:$0xff]
        %v643 = vld [vmem:[%s1 + $0x30] sm:$0xff]
        %v644 = vld [vmem:[%s1 + $0x38] sm:$0xff]
        %v645 = vld [vmem:[%s1 + $0x40] sm:$0xff]
        %v646 = vld [vmem:[%s1 + $0x48] sm:$0xff]
        %v647 = vld [vmem:[%s1 + $0x50] sm:$0xff]
        %v648 = vld [vmem:[%s1 + $0x58] sm:$0xff]
        %v649 = vld [vmem:[%s1 + $0x60] sm:$0xff]
        %v650 = vld [vmem:[%s1 + $0x68] sm:$0xff]
        %v651 = vld [vmem:[%s1 + $0x70] sm:$0xff]
        %v652 = vld [vmem:[%s1 + $0x78] sm:$0xff]
        %s653 = scalar_lea.vmem %s1, 128
        %v654 = vld [vmem:[%s653] sm:$0xff]
        %v655 = vld [vmem:[%s653 + $0x8] sm:$0xff]
        %v656 = vld [vmem:[%s653 + $0x10] sm:$0xff]
        %v657 = vld [vmem:[%s653 + $0x18] sm:$0xff]
        %v658 = vld [vmem:[%s653 + $0x20] sm:$0xff]
        %v659 = vld [vmem:[%s653 + $0x28] sm:$0xff]
        %v660 = vld [vmem:[%s653 + $0x30] sm:$0xff]
        %v661 = vld [vmem:[%s653 + $0x38] sm:$0xff]
        %v662 = vld [vmem:[%s653 + $0x40] sm:$0xff]
        %v663 = vld [vmem:[%s653 + $0x48] sm:$0xff]
        %v664 = vld [vmem:[%s653 + $0x50] sm:$0xff]
        %v665 = vld [vmem:[%s653 + $0x58] sm:$0xff]
        %v666 = vld [vmem:[%s653 + $0x60] sm:$0xff]
        %v667 = vld [vmem:[%s653 + $0x68] sm:$0xff]
        %v668 = vld [vmem:[%s653 + $0x70] sm:$0xff]
        %v669 = vld [vmem:[%s653 + $0x78] sm:$0xff]
        %v698 = vunpack.c.l.b16 %v606
        %v699 = vunpack.c.l.b16 %v607
        %v700 = vunpack.c.l.b16 %v608
        %v701 = vunpack.c.l.b16 %v609
        %v702 = vunpack.c.l.b16 %v610
        %v703 = vunpack.c.l.b16 %v611
        %v704 = vunpack.c.l.b16 %v612
        %v705 = vunpack.c.l.b16 %v613
        %v706 = vunpack.c.l.b16 %v614
        %v707 = vunpack.c.l.b16 %v615
        %v708 = vunpack.c.l.b16 %v616
        %v709 = vunpack.c.l.b16 %v617
        %v710 = vunpack.c.l.b16 %v618
        %v711 = vunpack.c.l.b16 %v619
        %v712 = vunpack.c.l.b16 %v620
        %v713 = vunpack.c.l.b16 %v621
        %v714 = vunpack.c.l.b16 %v622
        %v715 = vunpack.c.l.b16 %v623
        %v716 = vunpack.c.l.b16 %v624
        %v717 = vunpack.c.l.b16 %v625
        %v718 = vunpack.c.l.b16 %v626
        %v719 = vunpack.c.l.b16 %v627
        %v720 = vunpack.c.l.b16 %v628
        %v721 = vunpack.c.l.b16 %v629
        %v722 = vunpack.c.l.b16 %v630
        %v723 = vunpack.c.l.b16 %v631
        %v724 = vunpack.c.l.b16 %v632
        %v725 = vunpack.c.l.b16 %v633
        %v726 = vpack.c.b16 %v699, %v698
        %v727 = vpack.c.b16 %v701, %v700
        %v728 = vpack.c.b16 %v703, %v702
        %v729 = vpack.c.b16 %v705, %v704
        %v730 = vpack.c.b16 %v707, %v706
        %v731 = vpack.c.b16 %v709, %v708
        %v732 = vpack.c.b16 %v711, %v710
        %v733 = vpack.c.b16 %v713, %v712
        %v734 = vpack.c.b16 %v715, %v714
        %v735 = vpack.c.b16 %v717, %v716
        %v736 = vpack.c.b16 %v719, %v718
        %v737 = vpack.c.b16 %v721, %v720
        %v738 = vpack.c.b16 %v723, %v722
        %v739 = vpack.c.b16 %v725, %v724
        %v770 = vunpack.c.l.b16 %v654
        %v771 = vunpack.c.h.b16 %v654
        %v772 = vunpack.c.l.b16 %v655
        %v773 = vunpack.c.h.b16 %v655
        %v774 = vunpack.c.l.b16 %v656
        %v775 = vunpack.c.h.b16 %v656
        %v776 = vunpack.c.l.b16 %v657
        %v777 = vunpack.c.h.b16 %v657
        %v778 = vunpack.c.l.b16 %v658
        %v779 = vunpack.c.h.b16 %v658
        %v780 = vunpack.c.l.b16 %v659
        %v781 = vunpack.c.h.b16 %v659
        %v782 = vunpack.c.l.b16 %v660
        %v783 = vunpack.c.h.b16 %v660
        %v784 = vunpack.c.l.b16 %v661
        %v785 = vunpack.c.h.b16 %v661
        %v786 = vunpack.c.l.b16 %v662
        %v787 = vunpack.c.h.b16 %v662
        %v788 = vunpack.c.l.b16 %v663
        %v789 = vunpack.c.h.b16 %v663
        %v790 = vunpack.c.l.b16 %v664
        %v791 = vunpack.c.h.b16 %v664
        %v792 = vunpack.c.l.b16 %v665
        %v793 = vunpack.c.h.b16 %v665
        %v794 = vunpack.c.l.b16 %v666
        %v795 = vunpack.c.h.b16 %v666
        %v796 = vunpack.c.l.b16 %v667
        %v797 = vunpack.c.h.b16 %v667
        %v798 = vunpack.c.l.b16 %v668
        %v799 = vunpack.c.h.b16 %v668
        %v800 = vunpack.c.l.b16 %v669
        %v801 = vunpack.c.h.b16 %v669
        %v802 = vpack.c.b16 %v772, %v770
        %v803 = vpack.c.b16 %v773, %v771
        %v804 = vpack.c.b16 %v776, %v774
        %v805 = vpack.c.b16 %v777, %v775
        %v806 = vpack.c.b16 %v780, %v778
        %v807 = vpack.c.b16 %v781, %v779
        %v808 = vpack.c.b16 %v784, %v782
        %v809 = vpack.c.b16 %v785, %v783
        %v810 = vpack.c.b16 %v788, %v786
        %v811 = vpack.c.b16 %v789, %v787
        %v812 = vpack.c.b16 %v792, %v790
        %v813 = vpack.c.b16 %v793, %v791
        %v814 = vpack.c.b16 %v796, %v794
        %v815 = vpack.c.b16 %v797, %v795
        %v816 = vpack.c.b16 %v800, %v798
        %v817 = vpack.c.b16 %v801, %v799
        %834 = vmatprep.subr.bf16.mxu0 %v803
        %835 = vmatpush1.bf16.msra.mxu0 %v802
        %836 = vmatprep.subr.bf16.mxu0 %v805
        %837 = vmatpush1.bf16.msra.mxu0 %v804
        %838 = vmatprep.subr.bf16.mxu0 %v807
        %839 = vmatpush1.bf16.msra.mxu0 %v806
        %840 = vmatprep.subr.bf16.mxu0 %v809
        %841 = vmatpush1.bf16.msra.mxu0 %v808
        %842 = vmatprep.subr.bf16.mxu0 %v811
        %843 = vmatpush1.bf16.msra.mxu0 %v810
        %844 = vmatprep.subr.bf16.mxu0 %v813
        %845 = vmatpush1.bf16.msra.mxu0 %v812
        %846 = vmatprep.subr.bf16.mxu0 %v815
        %847 = vmatpush1.bf16.msra.mxu0 %v814
        %848 = vmatprep.subr.bf16.mxu0 %v817
        %849 = vmatpush1.bf16.msra.mxu0 %v816
        %850 = vmatprep.subr.bf16.mxu0 0
        %851 = vmatpush1.bf16.msra.mxu0 0
        %852 = vmatprep.subr.bf16.mxu0 0
        %853 = vmatpush1.bf16.msra.mxu0 0
        %854 = vmatprep.subr.bf16.mxu0 0
        %855 = vmatpush1.bf16.msra.mxu0 0
        %856 = vmatprep.subr.bf16.mxu0 0
        %857 = vmatpush1.bf16.msra.mxu0 0
        %858 = vmatprep.subr.bf16.mxu0 0
        %859 = vmatpush1.bf16.msra.mxu0 0
        %860 = vmatprep.subr.bf16.mxu0 0
        %861 = vmatpush1.bf16.msra.mxu0 0
        %862 = vmatprep.subr.bf16.mxu0 0
        %863 = vmatpush1.bf16.msra.mxu0 0
        %864 = vmatprep.subr.bf16.mxu0 0
        %865 = vmatpush1.bf16.msra.mxu0 0
        %866 = vmatprep.mubr.bf16.mxu0 0
        %867 = vmatmul.mubr.bf16.gmra.mrb[0].mxu0 %v726
        %v868 = vpop.f32.mrb[0].mxu0
        %v869 = vadd.f32 0.0, %v868
        %v870 = vpop.f32.mrb[0].mxu0
        %v871 = vadd.f32 0.0, %v870
        %v872 = vpop.f32.mrb[0].mxu0
        %v873 = vadd.f32 0.0, %v872
        %v874 = vpop.f32.mrb[0].mxu0
        %v875 = vadd.f32 0.0, %v874
        %876 = vmatprep.mubr.bf16.mxu0 0
        %877 = vmatmul.mubr.bf16.gmra.mrb[0].mxu0 %v727
        %v878 = vpop.f32.mrb[0].mxu0
        %v879 = vadd.f32 0.0, %v878
        %v880 = vpop.f32.mrb[0].mxu0
        %v881 = vadd.f32 0.0, %v880
        %v882 = vpop.f32.mrb[0].mxu0
        %v883 = vadd.f32 0.0, %v882
        %v884 = vpop.f32.mrb[0].mxu0
        %v885 = vadd.f32 0.0, %v884
        %886 = vmatprep.mubr.bf16.mxu0 0
        %887 = vmatmul.mubr.bf16.gmra.mrb[0].mxu0 %v728
        %v888 = vpop.f32.mrb[0].mxu0
        %v889 = vadd.f32 0.0, %v888
        %v890 = vpop.f32.mrb[0].mxu0
        %v891 = vadd.f32 0.0, %v890
        %v892 = vpop.f32.mrb[0].mxu0
        %v893 = vadd.f32 0.0, %v892
        %v894 = vpop.f32.mrb[0].mxu0
        %v895 = vadd.f32 0.0, %v894
        %896 = vmatprep.mubr.bf16.mxu0 0
        %897 = vmatmul.mubr.bf16.gmra.mrb[0].mxu0 %v729
        %v898 = vpop.f32.mrb[0].mxu0
        %v899 = vadd.f32 0.0, %v898
        %v900 = vpop.f32.mrb[0].mxu0
        %v901 = vadd.f32 0.0, %v900
        %v902 = vpop.f32.mrb[0].mxu0
        %v903 = vadd.f32 0.0, %v902
        %v904 = vpop.f32.mrb[0].mxu0
        %v905 = vadd.f32 0.0, %v904
        %906 = vmatprep.mubr.bf16.mxu0 0
        %907 = vmatmul.mubr.bf16.gmra.mrb[0].mxu0 %v730
        %v908 = vpop.f32.mrb[0].mxu0
        %v909 = vadd.f32 0.0, %v908
        %v910 = vpop.f32.mrb[0].mxu0
        %v911 = vadd.f32 0.0, %v910
        %v912 = vpop.f32.mrb[0].mxu0
        %v913 = vadd.f32 0.0, %v912
        %v914 = vpop.f32.mrb[0].mxu0
        %v915 = vadd.f32 0.0, %v914
        %916 = vmatprep.mubr.bf16.mxu0 0
        %917 = vmatmul.mubr.bf16.gmra.mrb[0].mxu0 %v731
        %v918 = vpop.f32.mrb[0].mxu0
        %v919 = vadd.f32 0.0, %v918
        %v920 = vpop.f32.mrb[0].mxu0
        %v921 = vadd.f32 0.0, %v920
        %v922 = vpop.f32.mrb[0].mxu0
        %v923 = vadd.f32 0.0, %v922
        %v924 = vpop.f32.mrb[0].mxu0
        %v925 = vadd.f32 0.0, %v924
        %926 = vmatprep.mubr.bf16.mxu0 0
        %927 = vmatmul.mubr.bf16.gmra.mrb[0].mxu0 %v732
        %v928 = vpop.f32.mrb[0].mxu0
        %v929 = vadd.f32 0.0, %v928
        %v930 = vpop.f32.mrb[0].mxu0
        %v931 = vadd.f32 0.0, %v930
        %v932 = vpop.f32.mrb[0].mxu0
        %v933 = vadd.f32 0.0, %v932
        %v934 = vpop.f32.mrb[0].mxu0
        %v935 = vadd.f32 0.0, %v934
        %936 = vmatprep.mubr.bf16.mxu0 0
        %937 = vmatmul.mubr.bf16.gmra.mrb[0].mxu0 %v733
        %v938 = vpop.f32.mrb[0].mxu0
        %v939 = vadd.f32 0.0, %v938
        %v940 = vpop.f32.mrb[0].mxu0
        %v941 = vadd.f32 0.0, %v940
        %v942 = vpop.f32.mrb[0].mxu0
        %v943 = vadd.f32 0.0, %v942
        %v944 = vpop.f32.mrb[0].mxu0
        %v945 = vadd.f32 0.0, %v944
        %946 = vmatprep.mubr.bf16.mxu0 0
        %947 = vmatmul.mubr.bf16.gmra.mrb[0].mxu0 %v734
        %v948 = vpop.f32.mrb[0].mxu0
        %v949 = vadd.f32 0.0, %v948
        %v950 = vpop.f32.mrb[0].mxu0
        %v951 = vadd.f32 0.0, %v950
        %v952 = vpop.f32.mrb[0].mxu0
        %v953 = vadd.f32 0.0, %v952
        %v954 = vpop.f32.mrb[0].mxu0
        %v955 = vadd.f32 0.0, %v954
        %956 = vmatprep.mubr.bf16.mxu0 0
        %957 = vmatmul.mubr.bf16.gmra.mrb[0].mxu0 %v735
        %v958 = vpop.f32.mrb[0].mxu0
        %v959 = vadd.f32 0.0, %v958
        %v960 = vpop.f32.mrb[0].mxu0
        %v961 = vadd.f32 0.0, %v960
        %v962 = vpop.f32.mrb[0].mxu0
        %v963 = vadd.f32 0.0, %v962
        %v964 = vpop.f32.mrb[0].mxu0
        %v965 = vadd.f32 0.0, %v964
        %966 = vmatprep.mubr.bf16.mxu0 0
        %967 = vmatmul.mubr.bf16.gmra.mrb[0].mxu0 %v736
        %v968 = vpop.f32.mrb[0].mxu0
        %v969 = vadd.f32 0.0, %v968
        %v970 = vpop.f32.mrb[0].mxu0
        %v971 = vadd.f32 0.0, %v970
        %v972 = vpop.f32.mrb[0].mxu0
        %v973 = vadd.f32 0.0, %v972
        %v974 = vpop.f32.mrb[0].mxu0
        %v975 = vadd.f32 0.0, %v974
        %976 = vmatprep.mubr.bf16.mxu0 0
        %977 = vmatmul.mubr.bf16.gmra.mrb[0].mxu0 %v737
        %v978 = vpop.f32.mrb[0].mxu0
        %v979 = vadd.f32 0.0, %v978
        %v980 = vpop.f32.mrb[0].mxu0
        %v981 = vadd.f32 0.0, %v980
        %v982 = vpop.f32.mrb[0].mxu0
        %v983 = vadd.f32 0.0, %v982
        %v984 = vpop.f32.mrb[0].mxu0
        %v985 = vadd.f32 0.0, %v984
        %986 = vmatprep.mubr.bf16.mxu0 0
        %987 = vmatmul.mubr.bf16.gmra.mrb[0].mxu0 %v738
        %v988 = vpop.f32.mrb[0].mxu0
        %v989 = vadd.f32 0.0, %v988
        %v990 = vpop.f32.mrb[0].mxu0
        %v991 = vadd.f32 0.0, %v990
        %v992 = vpop.f32.mrb[0].mxu0
        %v993 = vadd.f32 0.0, %v992
        %v994 = vpop.f32.mrb[0].mxu0
        %v995 = vadd.f32 0.0, %v994
        %996 = vmatprep.mubr.bf16.mxu0 0
        %997 = vmatmul.mubr.bf16.gmra.mrb[0].mxu0 %v739
        %v998 = vpop.f32.mrb[0].mxu0
        %v999 = vadd.f32 0.0, %v998
        %v1000 = vpop.f32.mrb[0].mxu0
        %v1001 = vadd.f32 0.0, %v1000
        %v1002 = vpop.f32.mrb[0].mxu0
        %v1003 = vadd.f32 0.0, %v1002
        %v1004 = vpop.f32.mrb[0].mxu0
        %v1005 = vadd.f32 0.0, %v1004
        %1006 = vdwg.mxu0
        %v1008 = vunpack.c.l.b16 %v605
        %v1009 = vpack.c.b16 %v698, %v1008
        %v1010 = vpack.c.b16 %v700, %v699
        %v1011 = vpack.c.b16 %v702, %v701
        %v1012 = vpack.c.b16 %v704, %v703
        %v1013 = vpack.c.b16 %v706, %v705
        %v1014 = vpack.c.b16 %v708, %v707
        %v1015 = vpack.c.b16 %v710, %v709
        %v1016 = vpack.c.b16 %v712, %v711
        %v1017 = vpack.c.b16 %v714, %v713
        %v1018 = vpack.c.b16 %v716, %v715
        %v1019 = vpack.c.b16 %v718, %v717
        %v1020 = vpack.c.b16 %v720, %v719
        %v1021 = vpack.c.b16 %v722, %v721
        %v1022 = vpack.c.b16 %v724, %v723
        %v1053 = vunpack.c.l.b16 %v637
        %v1054 = vunpack.c.h.b16 %v637
        %v1055 = vunpack.c.l.b16 %v638
        %v1056 = vunpack.c.h.b16 %v638
        %v1057 = vunpack.c.l.b16 %v639
        %v1058 = vunpack.c.h.b16 %v639
        %v1059 = vunpack.c.l.b16 %v640
        %v1060 = vunpack.c.h.b16 %v640
        %v1061 = vunpack.c.l.b16 %v641
        %v1062 = vunpack.c.h.b16 %v641
        %v1063 = vunpack.c.l.b16 %v642
        %v1064 = vunpack.c.h.b16 %v642
        %v1065 = vunpack.c.l.b16 %v643
        %v1066 = vunpack.c.h.b16 %v643
        %v1067 = vunpack.c.l.b16 %v644
        %v1068 = vunpack.c.h.b16 %v644
        %v1069 = vunpack.c.l.b16 %v645
        %v1070 = vunpack.c.h.b16 %v645
        %v1071 = vunpack.c.l.b16 %v646
        %v1072 = vunpack.c.h.b16 %v646
        %v1073 = vunpack.c.l.b16 %v647
        %v1074 = vunpack.c.h.b16 %v647
        %v1075 = vunpack.c.l.b16 %v648
        %v1076 = vunpack.c.h.b16 %v648
        %v1077 = vunpack.c.l.b16 %v649
        %v1078 = vunpack.c.h.b16 %v649
        %v1079 = vunpack.c.l.b16 %v650
        %v1080 = vunpack.c.h.b16 %v650
        %v1081 = vunpack.c.l.b16 %v651
        %v1082 = vunpack.c.h.b16 %v651
        %v1083 = vunpack.c.l.b16 %v652
        %v1084 = vunpack.c.h.b16 %v652
        %v1085 = vpack.c.b16 %v1055, %v1053
        %v1086 = vpack.c.b16 %v1056, %v1054
        %v1087 = vpack.c.b16 %v1059, %v1057
        %v1088 = vpack.c.b16 %v1060, %v1058
        %v1089 = vpack.c.b16 %v1063, %v1061
        %v1090 = vpack.c.b16 %v1064, %v1062
        %v1091 = vpack.c.b16 %v1067, %v1065
        %v1092 = vpack.c.b16 %v1068, %v1066
        %v1093 = vpack.c.b16 %v1071, %v1069
        %v1094 = vpack.c.b16 %v1072, %v1070
        %v1095 = vpack.c.b16 %v1075, %v1073
        %v1096 = vpack.c.b16 %v1076, %v1074
        %v1097 = vpack.c.b16 %v1079, %v1077
        %v1098 = vpack.c.b16 %v1080, %v1078
        %v1099 = vpack.c.b16 %v1083, %v1081
        %v1100 = vpack.c.b16 %v1084, %v1082
        %1117 = vmatprep.subr.bf16.mxu0 %v1086
        %1118 = vmatpush1.bf16.msra.mxu0 %v1085
        %1119 = vmatprep.subr.bf16.mxu0 %v1088
        %1120 = vmatpush1.bf16.msra.mxu0 %v1087
        %1121 = vmatprep.subr.bf16.mxu0 %v1090
        %1122 = vmatpush1.bf16.msra.mxu0 %v1089
        %1123 = vmatprep.subr.bf16.mxu0 %v1092
        %1124 = vmatpush1.bf16.msra.mxu0 %v1091
        %1125 = vmatprep.subr.bf16.mxu0 %v1094
        %1126 = vmatpush1.bf16.msra.mxu0 %v1093
        %1127 = vmatprep.subr.bf16.mxu0 %v1096
        %1128 = vmatpush1.bf16.msra.mxu0 %v1095
        %1129 = vmatprep.subr.bf16.mxu0 %v1098
        %1130 = vmatpush1.bf16.msra.mxu0 %v1097
        %1131 = vmatprep.subr.bf16.mxu0 %v1100
        %1132 = vmatpush1.bf16.msra.mxu0 %v1099
        %1133 = vmatprep.subr.bf16.mxu0 0
        %1134 = vmatpush1.bf16.msra.mxu0 0
        %1135 = vmatprep.subr.bf16.mxu0 0
        %1136 = vmatpush1.bf16.msra.mxu0 0
        %1137 = vmatprep.subr.bf16.mxu0 0
        %1138 = vmatpush1.bf16.msra.mxu0 0
        %1139 = vmatprep.subr.bf16.mxu0 0
        %1140 = vmatpush1.bf16.msra.mxu0 0
        %1141 = vmatprep.subr.bf16.mxu0 0
        %1142 = vmatpush1.bf16.msra.mxu0 0
        %1143 = vmatprep.subr.bf16.mxu0 0
        %1144 = vmatpush1.bf16.msra.mxu0 0
        %1145 = vmatprep.subr.bf16.mxu0 0
        %1146 = vmatpush1.bf16.msra.mxu0 0
        %1147 = vmatprep.subr.bf16.mxu0 0
        %1148 = vmatpush1.bf16.msra.mxu0 0
        %1149 = vmatprep.mubr.bf16.mxu0 0
        %1150 = vmatmul.mubr.bf16.gmra.mrb[0].mxu0 %v1009
        %v1151 = vpop.f32.mrb[0].mxu0
        %v1152 = vadd.f32 %v869, %v1151
        %v1153 = vpop.f32.mrb[0].mxu0
        %v1154 = vadd.f32 %v871, %v1153
        %v1155 = vpop.f32.mrb[0].mxu0
        %v1156 = vadd.f32 %v873, %v1155
        %v1157 = vpop.f32.mrb[0].mxu0
        %v1158 = vadd.f32 %v875, %v1157
        %1159 = vmatprep.mubr.bf16.mxu0 0
        %1160 = vmatmul.mubr.bf16.gmra.mrb[0].mxu0 %v1010
        %v1161 = vpop.f32.mrb[0].mxu0
        %v1162 = vadd.f32 %v879, %v1161
        %v1163 = vpop.f32.mrb[0].mxu0
        %v1164 = vadd.f32 %v881, %v1163
        %v1165 = vpop.f32.mrb[0].mxu0
        %v1166 = vadd.f32 %v883, %v1165
        %v1167 = vpop.f32.mrb[0].mxu0
        %v1168 = vadd.f32 %v885, %v1167
        %1169 = vmatprep.mubr.bf16.mxu0 0
        %1170 = vmatmul.mubr.bf16.gmra.mrb[0].mxu0 %v1011
        %v1171 = vpop.f32.mrb[0].mxu0
        %v1172 = vadd.f32 %v889, %v1171
        %v1173 = vpop.f32.mrb[0].mxu0
        %v1174 = vadd.f32 %v891, %v1173
        %v1175 = vpop.f32.mrb[0].mxu0
        %v1176 = vadd.f32 %v893, %v1175
        %v1177 = vpop.f32.mrb[0].mxu0
        %v1178 = vadd.f32 %v895, %v1177
        %1179 = vmatprep.mubr.bf16.mxu0 0
        %1180 = vmatmul.mubr.bf16.gmra.mrb[0].mxu0 %v1012
        %v1181 = vpop.f32.mrb[0].mxu0
        %v1182 = vadd.f32 %v899, %v1181
        %v1183 = vpop.f32.mrb[0].mxu0
        %v1184 = vadd.f32 %v901, %v1183
        %v1185 = vpop.f32.mrb[0].mxu0
        %v1186 = vadd.f32 %v903, %v1185
        %v1187 = vpop.f32.mrb[0].mxu0
        %v1188 = vadd.f32 %v905, %v1187
        %1189 = vmatprep.mubr.bf16.mxu0 0
        %1190 = vmatmul.mubr.bf16.gmra.mrb[0].mxu0 %v1013
        %v1191 = vpop.f32.mrb[0].mxu0
        %v1192 = vadd.f32 %v909, %v1191
        %v1193 = vpop.f32.mrb[0].mxu0
        %v1194 = vadd.f32 %v911, %v1193
        %v1195 = vpop.f32.mrb[0].mxu0
        %v1196 = vadd.f32 %v913, %v1195
        %v1197 = vpop.f32.mrb[0].mxu0
        %v1198 = vadd.f32 %v915, %v1197
        %1199 = vmatprep.mubr.bf16.mxu0 0
        %1200 = vmatmul.mubr.bf16.gmra.mrb[0].mxu0 %v1014
        %v1201 = vpop.f32.mrb[0].mxu0
        %v1202 = vadd.f32 %v919, %v1201
        %v1203 = vpop.f32.mrb[0].mxu0
        %v1204 = vadd.f32 %v921, %v1203
        %v1205 = vpop.f32.mrb[0].mxu0
        %v1206 = vadd.f32 %v923, %v1205
        %v1207 = vpop.f32.mrb[0].mxu0
        %v1208 = vadd.f32 %v925, %v1207
        %1209 = vmatprep.mubr.bf16.mxu0 0
        %1210 = vmatmul.mubr.bf16.gmra.mrb[0].mxu0 %v1015
        %v1211 = vpop.f32.mrb[0].mxu0
        %v1212 = vadd.f32 %v929, %v1211
        %v1213 = vpop.f32.mrb[0].mxu0
        %v1214 = vadd.f32 %v931, %v1213
        %v1215 = vpop.f32.mrb[0].mxu0
        %v1216 = vadd.f32 %v933, %v1215
        %v1217 = vpop.f32.mrb[0].mxu0
        %v1218 = vadd.f32 %v935, %v1217
        %1219 = vmatprep.mubr.bf16.mxu0 0
        %1220 = vmatmul.mubr.bf16.gmra.mrb[0].mxu0 %v1016
        %v1221 = vpop.f32.mrb[0].mxu0
        %v1222 = vadd.f32 %v939, %v1221
        %v1223 = vpop.f32.mrb[0].mxu0
        %v1224 = vadd.f32 %v941, %v1223
        %v1225 = vpop.f32.mrb[0].mxu0
        %v1226 = vadd.f32 %v943, %v1225
        %v1227 = vpop.f32.mrb[0].mxu0
        %v1228 = vadd.f32 %v945, %v1227
        %1229 = vmatprep.mubr.bf16.mxu0 0
        %1230 = vmatmul.mubr.bf16.gmra.mrb[0].mxu0 %v1017
        %v1231 = vpop.f32.mrb[0].mxu0
        %v1232 = vadd.f32 %v949, %v1231
        %v1233 = vpop.f32.mrb[0].mxu0
        %v1234 = vadd.f32 %v951, %v1233
        %v1235 = vpop.f32.mrb[0].mxu0
        %v1236 = vadd.f32 %v953, %v1235
        %v1237 = vpop.f32.mrb[0].mxu0
        %v1238 = vadd.f32 %v955, %v1237
        %1239 = vmatprep.mubr.bf16.mxu0 0
        %1240 = vmatmul.mubr.bf16.gmra.mrb[0].mxu0 %v1018
        %v1241 = vpop.f32.mrb[0].mxu0
        %v1242 = vadd.f32 %v959, %v1241
        %v1243 = vpop.f32.mrb[0].mxu0
        %v1244 = vadd.f32 %v961, %v1243
        %v1245 = vpop.f32.mrb[0].mxu0
        %v1246 = vadd.f32 %v963, %v1245
        %v1247 = vpop.f32.mrb[0].mxu0
        %v1248 = vadd.f32 %v965, %v1247
        %1249 = vmatprep.mubr.bf16.mxu0 0
        %1250 = vmatmul.mubr.bf16.gmra.mrb[0].mxu0 %v1019
        %v1251 = vpop.f32.mrb[0].mxu0
        %v1252 = vadd.f32 %v969, %v1251
        %v1253 = vpop.f32.mrb[0].mxu0
        %v1254 = vadd.f32 %v971, %v1253
        %v1255 = vpop.f32.mrb[0].mxu0
        %v1256 = vadd.f32 %v973, %v1255
        %v1257 = vpop.f32.mrb[0].mxu0
        %v1258 = vadd.f32 %v975, %v1257
        %1259 = vmatprep.mubr.bf16.mxu0 0
        %1260 = vmatmul.mubr.bf16.gmra.mrb[0].mxu0 %v1020
        %v1261 = vpop.f32.mrb[0].mxu0
        %v1262 = vadd.f32 %v979, %v1261
        %v1263 = vpop.f32.mrb[0].mxu0
        %v1264 = vadd.f32 %v981, %v1263
        %v1265 = vpop.f32.mrb[0].mxu0
        %v1266 = vadd.f32 %v983, %v1265
        %v1267 = vpop.f32.mrb[0].mxu0
        %v1268 = vadd.f32 %v985, %v1267
        %1269 = vmatprep.mubr.bf16.mxu0 0
        %1270 = vmatmul.mubr.bf16.gmra.mrb[0].mxu0 %v1021
        %v1271 = vpop.f32.mrb[0].mxu0
        %v1272 = vadd.f32 %v989, %v1271
        %v1273 = vpop.f32.mrb[0].mxu0
        %v1274 = vadd.f32 %v991, %v1273
        %v1275 = vpop.f32.mrb[0].mxu0
        %v1276 = vadd.f32 %v993, %v1275
        %v1277 = vpop.f32.mrb[0].mxu0
        %v1278 = vadd.f32 %v995, %v1277
        %1279 = vmatprep.mubr.bf16.mxu0 0
        %1280 = vmatmul.mubr.bf16.gmra.mrb[0].mxu0 %v1022
        %v1281 = vpop.f32.mrb[0].mxu0
        %v1282 = vadd.f32 %v999, %v1281
        %v1283 = vpop.f32.mrb[0].mxu0
        %v1284 = vadd.f32 %v1001, %v1283
        %v1285 = vpop.f32.mrb[0].mxu0
        %v1286 = vadd.f32 %v1003, %v1285
        %v1287 = vpop.f32.mrb[0].mxu0
        %v1288 = vadd.f32 %v1005, %v1287
        %1289 = vdwg.mxu0
        %s1290 = scalar_lea.vmem %s1, 256
        %v1291 = vld [vmem:[%s1290] sm:$0xff]
        %v1292 = vld [vmem:[%s1290 + $0x8] sm:$0xff]
        %v1293 = vld [vmem:[%s1290 + $0x10] sm:$0xff]
        %v1294 = vld [vmem:[%s1290 + $0x18] sm:$0xff]
        %v1295 = vld [vmem:[%s1290 + $0x20] sm:$0xff]
        %v1296 = vld [vmem:[%s1290 + $0x28] sm:$0xff]
        %v1297 = vld [vmem:[%s1290 + $0x30] sm:$0xff]
        %v1298 = vld [vmem:[%s1290 + $0x38] sm:$0xff]
        %v1299 = vld [vmem:[%s1290 + $0x40] sm:$0xff]
        %v1300 = vld [vmem:[%s1290 + $0x48] sm:$0xff]
        %v1301 = vld [vmem:[%s1290 + $0x50] sm:$0xff]
        %v1302 = vld [vmem:[%s1290 + $0x58] sm:$0xff]
        %v1303 = vld [vmem:[%s1290 + $0x60] sm:$0xff]
        %v1304 = vld [vmem:[%s1290 + $0x68] sm:$0xff]
        %v1305 = vld [vmem:[%s1290 + $0x70] sm:$0xff]
        %v1306 = vld [vmem:[%s1290 + $0x78] sm:$0xff]
        %v1308 = vunpack.c.l.b16 %v634
        %v1309 = vpack.c.b16 %v1308, %v725
        %v1327 = vunpack.c.l.b16 %v1291
        %v1328 = vunpack.c.h.b16 %v1291
        %v1329 = vunpack.c.l.b16 %v1292
        %v1330 = vunpack.c.h.b16 %v1292
        %v1331 = vunpack.c.l.b16 %v1293
        %v1332 = vunpack.c.h.b16 %v1293
        %v1333 = vunpack.c.l.b16 %v1294
        %v1334 = vunpack.c.h.b16 %v1294
        %v1335 = vunpack.c.l.b16 %v1295
        %v1336 = vunpack.c.h.b16 %v1295
        %v1337 = vunpack.c.l.b16 %v1296
        %v1338 = vunpack.c.h.b16 %v1296
        %v1339 = vunpack.c.l.b16 %v1297
        %v1340 = vunpack.c.h.b16 %v1297
        %v1341 = vunpack.c.l.b16 %v1298
        %v1342 = vunpack.c.h.b16 %v1298
        %v1343 = vunpack.c.l.b16 %v1299
        %v1344 = vunpack.c.h.b16 %v1299
        %v1345 = vunpack.c.l.b16 %v1300
        %v1346 = vunpack.c.h.b16 %v1300
        %v1347 = vunpack.c.l.b16 %v1301
        %v1348 = vunpack.c.h.b16 %v1301
        %v1349 = vunpack.c.l.b16 %v1302
        %v1350 = vunpack.c.h.b16 %v1302
        %v1351 = vunpack.c.l.b16 %v1303
        %v1352 = vunpack.c.h.b16 %v1303
        %v1353 = vunpack.c.l.b16 %v1304
        %v1354 = vunpack.c.h.b16 %v1304
        %v1355 = vunpack.c.l.b16 %v1305
        %v1356 = vunpack.c.h.b16 %v1305
        %v1357 = vunpack.c.l.b16 %v1306
        %v1358 = vunpack.c.h.b16 %v1306
        %v1359 = vpack.c.b16 %v1329, %v1327
        %v1360 = vpack.c.b16 %v1330, %v1328
        %v1361 = vpack.c.b16 %v1333, %v1331
        %v1362 = vpack.c.b16 %v1334, %v1332
        %v1363 = vpack.c.b16 %v1337, %v1335
        %v1364 = vpack.c.b16 %v1338, %v1336
        %v1365 = vpack.c.b16 %v1341, %v1339
        %v1366 = vpack.c.b16 %v1342, %v1340
        %v1367 = vpack.c.b16 %v1345, %v1343
        %v1368 = vpack.c.b16 %v1346, %v1344
        %v1369 = vpack.c.b16 %v1349, %v1347
        %v1370 = vpack.c.b16 %v1350, %v1348
        %v1371 = vpack.c.b16 %v1353, %v1351
        %v1372 = vpack.c.b16 %v1354, %v1352
        %v1373 = vpack.c.b16 %v1357, %v1355
        %v1374 = vpack.c.b16 %v1358, %v1356
        %1391 = vmatprep.subr.bf16.mxu0 %v1360
        %1392 = vmatpush1.bf16.msra.mxu0 %v1359
        %1393 = vmatprep.subr.bf16.mxu0 %v1362
        %1394 = vmatpush1.bf16.msra.mxu0 %v1361
        %1395 = vmatprep.subr.bf16.mxu0 %v1364
        %1396 = vmatpush1.bf16.msra.mxu0 %v1363
        %1397 = vmatprep.subr.bf16.mxu0 %v1366
        %1398 = vmatpush1.bf16.msra.mxu0 %v1365
        %1399 = vmatprep.subr.bf16.mxu0 %v1368
        %1400 = vmatpush1.bf16.msra.mxu0 %v1367
        %1401 = vmatprep.subr.bf16.mxu0 %v1370
        %1402 = vmatpush1.bf16.msra.mxu0 %v1369
        %1403 = vmatprep.subr.bf16.mxu0 %v1372
        %1404 = vmatpush1.bf16.msra.mxu0 %v1371
        %1405 = vmatprep.subr.bf16.mxu0 %v1374
        %1406 = vmatpush1.bf16.msra.mxu0 %v1373
        %1407 = vmatprep.subr.bf16.mxu0 0
        %1408 = vmatpush1.bf16.msra.mxu0 0
        %1409 = vmatprep.subr.bf16.mxu0 0
        %1410 = vmatpush1.bf16.msra.mxu0 0
        %1411 = vmatprep.subr.bf16.mxu0 0
        %1412 = vmatpush1.bf16.msra.mxu0 0
        %1413 = vmatprep.subr.bf16.mxu0 0
        %1414 = vmatpush1.bf16.msra.mxu0 0
        %1415 = vmatprep.subr.bf16.mxu0 0
        %1416 = vmatpush1.bf16.msra.mxu0 0
        %1417 = vmatprep.subr.bf16.mxu0 0
        %1418 = vmatpush1.bf16.msra.mxu0 0
        %1419 = vmatprep.subr.bf16.mxu0 0
        %1420 = vmatpush1.bf16.msra.mxu0 0
        %1421 = vmatprep.subr.bf16.mxu0 0
        %1422 = vmatpush1.bf16.msra.mxu0 0
        %1423 = vmatprep.mubr.bf16.mxu0 0
        %1424 = vmatmul.mubr.bf16.gmra.mrb[0].mxu0 %v1010
        %v1425 = vpop.f32.mrb[0].mxu0
        %v1426 = vadd.f32 0.0, %v1425
        %v1427 = vpop.f32.mrb[0].mxu0
        %v1428 = vadd.f32 0.0, %v1427
        %v1429 = vpop.f32.mrb[0].mxu0
        %v1430 = vadd.f32 0.0, %v1429
        %v1431 = vpop.f32.mrb[0].mxu0
        %v1432 = vadd.f32 0.0, %v1431
        %1433 = vmatprep.mubr.bf16.mxu0 0
        %1434 = vmatmul.mubr.bf16.gmra.mrb[0].mxu0 %v1011
        %v1435 = vpop.f32.mrb[0].mxu0
        %v1436 = vadd.f32 0.0, %v1435
        %v1437 = vpop.f32.mrb[0].mxu0
        %v1438 = vadd.f32 0.0, %v1437
        %v1439 = vpop.f32.mrb[0].mxu0
        %v1440 = vadd.f32 0.0, %v1439
        %v1441 = vpop.f32.mrb[0].mxu0
        %v1442 = vadd.f32 0.0, %v1441
        %1443 = vmatprep.mubr.bf16.mxu0 0
        %1444 = vmatmul.mubr.bf16.gmra.mrb[0].mxu0 %v1012
        %v1445 = vpop.f32.mrb[0].mxu0
        %v1446 = vadd.f32 0.0, %v1445
        %v1447 = vpop.f32.mrb[0].mxu0
        %v1448 = vadd.f32 0.0, %v1447
        %v1449 = vpop.f32.mrb[0].mxu0
        %v1450 = vadd.f32 0.0, %v1449
        %v1451 = vpop.f32.mrb[0].mxu0
        %v1452 = vadd.f32 0.0, %v1451
        %1453 = vmatprep.mubr.bf16.mxu0 0
        %1454 = vmatmul.mubr.bf16.gmra.mrb[0].mxu0 %v1013
        %v1455 = vpop.f32.mrb[0].mxu0
        %v1456 = vadd.f32 0.0, %v1455
        %v1457 = vpop.f32.mrb[0].mxu0
        %v1458 = vadd.f32 0.0, %v1457
        %v1459 = vpop.f32.mrb[0].mxu0
        %v1460 = vadd.f32 0.0, %v1459
        %v1461 = vpop.f32.mrb[0].mxu0
        %v1462 = vadd.f32 0.0, %v1461
        %1463 = vmatprep.mubr.bf16.mxu0 0
        %1464 = vmatmul.mubr.bf16.gmra.mrb[0].mxu0 %v1014
        %v1465 = vpop.f32.mrb[0].mxu0
        %v1466 = vadd.f32 0.0, %v1465
        %v1467 = vpop.f32.mrb[0].mxu0
        %v1468 = vadd.f32 0.0, %v1467
        %v1469 = vpop.f32.mrb[0].mxu0
        %v1470 = vadd.f32 0.0, %v1469
        %v1471 = vpop.f32.mrb[0].mxu0
        %v1472 = vadd.f32 0.0, %v1471
        %1473 = vmatprep.mubr.bf16.mxu0 0
        %1474 = vmatmul.mubr.bf16.gmra.mrb[0].mxu0 %v1015
        %v1475 = vpop.f32.mrb[0].mxu0
        %v1476 = vadd.f32 0.0, %v1475
        %v1477 = vpop.f32.mrb[0].mxu0
        %v1478 = vadd.f32 0.0, %v1477
        %v1479 = vpop.f32.mrb[0].mxu0
        %v1480 = vadd.f32 0.0, %v1479
        %v1481 = vpop.f32.mrb[0].mxu0
        %v1482 = vadd.f32 0.0, %v1481
        %1483 = vmatprep.mubr.bf16.mxu0 0
        %1484 = vmatmul.mubr.bf16.gmra.mrb[0].mxu0 %v1016
        %v1485 = vpop.f32.mrb[0].mxu0
        %v1486 = vadd.f32 0.0, %v1485
        %v1487 = vpop.f32.mrb[0].mxu0
        %v1488 = vadd.f32 0.0, %v1487
        %v1489 = vpop.f32.mrb[0].mxu0
        %v1490 = vadd.f32 0.0, %v1489
        %v1491 = vpop.f32.mrb[0].mxu0
        %v1492 = vadd.f32 0.0, %v1491
        %1493 = vmatprep.mubr.bf16.mxu0 0
        %1494 = vmatmul.mubr.bf16.gmra.mrb[0].mxu0 %v1017
        %v1495 = vpop.f32.mrb[0].mxu0
        %v1496 = vadd.f32 0.0, %v1495
        %v1497 = vpop.f32.mrb[0].mxu0
        %v1498 = vadd.f32 0.0, %v1497
        %v1499 = vpop.f32.mrb[0].mxu0
        %v1500 = vadd.f32 0.0, %v1499
        %v1501 = vpop.f32.mrb[0].mxu0
        %v1502 = vadd.f32 0.0, %v1501
        %1503 = vmatprep.mubr.bf16.mxu0 0
        %1504 = vmatmul.mubr.bf16.gmra.mrb[0].mxu0 %v1018
        %v1505 = vpop.f32.mrb[0].mxu0
        %v1506 = vadd.f32 0.0, %v1505
        %v1507 = vpop.f32.mrb[0].mxu0
        %v1508 = vadd.f32 0.0, %v1507
        %v1509 = vpop.f32.mrb[0].mxu0
        %v1510 = vadd.f32 0.0, %v1509
        %v1511 = vpop.f32.mrb[0].mxu0
        %v1512 = vadd.f32 0.0, %v1511
        %1513 = vmatprep.mubr.bf16.mxu0 0
        %1514 = vmatmul.mubr.bf16.gmra.mrb[0].mxu0 %v1019
        %v1515 = vpop.f32.mrb[0].mxu0
        %v1516 = vadd.f32 0.0, %v1515
        %v1517 = vpop.f32.mrb[0].mxu0
        %v1518 = vadd.f32 0.0, %v1517
        %v1519 = vpop.f32.mrb[0].mxu0
        %v1520 = vadd.f32 0.0, %v1519
        %v1521 = vpop.f32.mrb[0].mxu0
        %v1522 = vadd.f32 0.0, %v1521
        %1523 = vmatprep.mubr.bf16.mxu0 0
        %1524 = vmatmul.mubr.bf16.gmra.mrb[0].mxu0 %v1020
        %v1525 = vpop.f32.mrb[0].mxu0
        %v1526 = vadd.f32 0.0, %v1525
        %v1527 = vpop.f32.mrb[0].mxu0
        %v1528 = vadd.f32 0.0, %v1527
        %v1529 = vpop.f32.mrb[0].mxu0
        %v1530 = vadd.f32 0.0, %v1529
        %v1531 = vpop.f32.mrb[0].mxu0
        %v1532 = vadd.f32 0.0, %v1531
        %1533 = vmatprep.mubr.bf16.mxu0 0
        %1534 = vmatmul.mubr.bf16.gmra.mrb[0].mxu0 %v1021
        %v1535 = vpop.f32.mrb[0].mxu0
        %v1536 = vadd.f32 0.0, %v1535
        %v1537 = vpop.f32.mrb[0].mxu0
        %v1538 = vadd.f32 0.0, %v1537
        %v1539 = vpop.f32.mrb[0].mxu0
        %v1540 = vadd.f32 0.0, %v1539
        %v1541 = vpop.f32.mrb[0].mxu0
        %v1542 = vadd.f32 0.0, %v1541
        %1543 = vmatprep.mubr.bf16.mxu0 0
        %1544 = vmatmul.mubr.bf16.gmra.mrb[0].mxu0 %v1022
        %v1545 = vpop.f32.mrb[0].mxu0
        %v1546 = vadd.f32 0.0, %v1545
        %v1547 = vpop.f32.mrb[0].mxu0
        %v1548 = vadd.f32 0.0, %v1547
        %v1549 = vpop.f32.mrb[0].mxu0
        %v1550 = vadd.f32 0.0, %v1549
        %v1551 = vpop.f32.mrb[0].mxu0
        %v1552 = vadd.f32 0.0, %v1551
        %1553 = vmatprep.mubr.bf16.mxu0 0
        %1554 = vmatmul.mubr.bf16.gmra.mrb[0].mxu0 %v1309
        %v1555 = vpop.f32.mrb[0].mxu0
        %v1556 = vadd.f32 0.0, %v1555
        %v1557 = vpop.f32.mrb[0].mxu0
        %v1558 = vadd.f32 0.0, %v1557
        %v1559 = vpop.f32.mrb[0].mxu0
        %v1560 = vadd.f32 0.0, %v1559
        %v1561 = vpop.f32.mrb[0].mxu0
        %v1562 = vadd.f32 0.0, %v1561
        %1563 = vdwg.mxu0
        %v1564 = vadd.f32 %v1152, %v1426
        %v1565 = vadd.f32 %v1154, %v1428
        %v1566 = vadd.f32 %v1156, %v1430
        %v1567 = vadd.f32 %v1158, %v1432
        %v1568 = vadd.f32 %v1162, %v1436
        %v1569 = vadd.f32 %v1164, %v1438
        %v1570 = vadd.f32 %v1166, %v1440
        %v1571 = vadd.f32 %v1168, %v1442
        %v1572 = vadd.f32 %v1172, %v1446
        %v1573 = vadd.f32 %v1174, %v1448
        %v1574 = vadd.f32 %v1176, %v1450
        %v1575 = vadd.f32 %v1178, %v1452
        %v1576 = vadd.f32 %v1182, %v1456
        %v1577 = vadd.f32 %v1184, %v1458
        %v1578 = vadd.f32 %v1186, %v1460
        %v1579 = vadd.f32 %v1188, %v1462
        %v1580 = vadd.f32 %v1192, %v1466
        %v1581 = vadd.f32 %v1194, %v1468
        %v1582 = vadd.f32 %v1196, %v1470
        %v1583 = vadd.f32 %v1198, %v1472
        %v1584 = vadd.f32 %v1202, %v1476
        %v1585 = vadd.f32 %v1204, %v1478
        %v1586 = vadd.f32 %v1206, %v1480
        %v1587 = vadd.f32 %v1208, %v1482
        %v1588 = vadd.f32 %v1212, %v1486
        %v1589 = vadd.f32 %v1214, %v1488
        %v1590 = vadd.f32 %v1216, %v1490
        %v1591 = vadd.f32 %v1218, %v1492
        %v1592 = vadd.f32 %v1222, %v1496
        %v1593 = vadd.f32 %v1224, %v1498
        %v1594 = vadd.f32 %v1226, %v1500
        %v1595 = vadd.f32 %v1228, %v1502
        %v1596 = vadd.f32 %v1232, %v1506
        %v1597 = vadd.f32 %v1234, %v1508
        %v1598 = vadd.f32 %v1236, %v1510
        %v1599 = vadd.f32 %v1238, %v1512
        %v1600 = vadd.f32 %v1242, %v1516
        %v1601 = vadd.f32 %v1244, %v1518
        %v1602 = vadd.f32 %v1246, %v1520
        %v1603 = vadd.f32 %v1248, %v1522
        %v1604 = vadd.f32 %v1252, %v1526
        %v1605 = vadd.f32 %v1254, %v1528
        %v1606 = vadd.f32 %v1256, %v1530
        %v1607 = vadd.f32 %v1258, %v1532
        %v1608 = vadd.f32 %v1262, %v1536
        %v1609 = vadd.f32 %v1264, %v1538
        %v1610 = vadd.f32 %v1266, %v1540
        %v1611 = vadd.f32 %v1268, %v1542
        %v1612 = vadd.f32 %v1272, %v1546
        %v1613 = vadd.f32 %v1274, %v1548
        %v1614 = vadd.f32 %v1276, %v1550
        %v1615 = vadd.f32 %v1278, %v1552
        %v1616 = vadd.f32 %v1282, %v1556
        %v1617 = vadd.f32 %v1284, %v1558
        %v1618 = vadd.f32 %v1286, %v1560
        %v1619 = vadd.f32 %v1288, %v1562
        %s1620 = scalar_lea.vmem %s1, 384
        %v1621 = vld [vmem:[%s1620] sm:$0xff]
        %v1622 = vld [vmem:[%s1620 + $0x8] sm:$0xff]
        %v1623 = vld [vmem:[%s1620 + $0x10] sm:$0xff]
        %v1624 = vld [vmem:[%s1620 + $0x18] sm:$0xff]
        %v1625 = vld [vmem:[%s1620 + $0x20] sm:$0xff]
        %v1626 = vld [vmem:[%s1620 + $0x28] sm:$0xff]
        %v1627 = vld [vmem:[%s1620 + $0x30] sm:$0xff]
        %v1628 = vld [vmem:[%s1620 + $0x38] sm:$0xff]
        %v1629 = vld [vmem:[%s1620 + $0x40] sm:$0xff]
        %v1630 = vld [vmem:[%s1620 + $0x48] sm:$0xff]
        %v1631 = vld [vmem:[%s1620 + $0x50] sm:$0xff]
        %v1632 = vld [vmem:[%s1620 + $0x58] sm:$0xff]
        %v1633 = vld [vmem:[%s1620 + $0x60] sm:$0xff]
        %v1634 = vld [vmem:[%s1620 + $0x68] sm:$0xff]
        %v1635 = vld [vmem:[%s1620 + $0x70] sm:$0xff]
        %v1636 = vld [vmem:[%s1620 + $0x78] sm:$0xff]
        %v1638 = vunpack.c.l.b16 %v635
        %v1639 = vpack.c.b16 %v1638, %v1308
        %v1657 = vunpack.c.l.b16 %v1621
        %v1658 = vunpack.c.h.b16 %v1621
        %v1659 = vunpack.c.l.b16 %v1622
        %v1660 = vunpack.c.h.b16 %v1622
        %v1661 = vunpack.c.l.b16 %v1623
        %v1662 = vunpack.c.h.b16 %v1623
        %v1663 = vunpack.c.l.b16 %v1624
        %v1664 = vunpack.c.h.b16 %v1624
        %v1665 = vunpack.c.l.b16 %v1625
        %v1666 = vunpack.c.h.b16 %v1625
        %v1667 = vunpack.c.l.b16 %v1626
        %v1668 = vunpack.c.h.b16 %v1626
        %v1669 = vunpack.c.l.b16 %v1627
        %v1670 = vunpack.c.h.b16 %v1627
        %v1671 = vunpack.c.l.b16 %v1628
        %v1672 = vunpack.c.h.b16 %v1628
        %v1673 = vunpack.c.l.b16 %v1629
        %v1674 = vunpack.c.h.b16 %v1629
        %v1675 = vunpack.c.l.b16 %v1630
        %v1676 = vunpack.c.h.b16 %v1630
        %v1677 = vunpack.c.l.b16 %v1631
        %v1678 = vunpack.c.h.b16 %v1631
        %v1679 = vunpack.c.l.b16 %v1632
        %v1680 = vunpack.c.h.b16 %v1632
        %v1681 = vunpack.c.l.b16 %v1633
        %v1682 = vunpack.c.h.b16 %v1633
        %v1683 = vunpack.c.l.b16 %v1634
        %v1684 = vunpack.c.h.b16 %v1634
        %v1685 = vunpack.c.l.b16 %v1635
        %v1686 = vunpack.c.h.b16 %v1635
        %v1687 = vunpack.c.l.b16 %v1636
        %v1688 = vunpack.c.h.b16 %v1636
        %v1689 = vpack.c.b16 %v1659, %v1657
        %v1690 = vpack.c.b16 %v1660, %v1658
        %v1691 = vpack.c.b16 %v1663, %v1661
        %v1692 = vpack.c.b16 %v1664, %v1662
        %v1693 = vpack.c.b16 %v1667, %v1665
        %v1694 = vpack.c.b16 %v1668, %v1666
        %v1695 = vpack.c.b16 %v1671, %v1669
        %v1696 = vpack.c.b16 %v1672, %v1670
        %v1697 = vpack.c.b16 %v1675, %v1673
        %v1698 = vpack.c.b16 %v1676, %v1674
        %v1699 = vpack.c.b16 %v1679, %v1677
        %v1700 = vpack.c.b16 %v1680, %v1678
        %v1701 = vpack.c.b16 %v1683, %v1681
        %v1702 = vpack.c.b16 %v1684, %v1682
        %v1703 = vpack.c.b16 %v1687, %v1685
        %v1704 = vpack.c.b16 %v1688, %v1686
        %1721 = vmatprep.subr.bf16.mxu0 %v1690
        %1722 = vmatpush1.bf16.msra.mxu0 %v1689
        %1723 = vmatprep.subr.bf16.mxu0 %v1692
        %1724 = vmatpush1.bf16.msra.mxu0 %v1691
        %1725 = vmatprep.subr.bf16.mxu0 %v1694
        %1726 = vmatpush1.bf16.msra.mxu0 %v1693
        %1727 = vmatprep.subr.bf16.mxu0 %v1696
        %1728 = vmatpush1.bf16.msra.mxu0 %v1695
        %1729 = vmatprep.subr.bf16.mxu0 %v1698
        %1730 = vmatpush1.bf16.msra.mxu0 %v1697
        %1731 = vmatprep.subr.bf16.mxu0 %v1700
        %1732 = vmatpush1.bf16.msra.mxu0 %v1699
        %1733 = vmatprep.subr.bf16.mxu0 %v1702
        %1734 = vmatpush1.bf16.msra.mxu0 %v1701
        %1735 = vmatprep.subr.bf16.mxu0 %v1704
        %1736 = vmatpush1.bf16.msra.mxu0 %v1703
        %1737 = vmatprep.subr.bf16.mxu0 0
        %1738 = vmatpush1.bf16.msra.mxu0 0
        %1739 = vmatprep.subr.bf16.mxu0 0
        %1740 = vmatpush1.bf16.msra.mxu0 0
        %1741 = vmatprep.subr.bf16.mxu0 0
        %1742 = vmatpush1.bf16.msra.mxu0 0
        %1743 = vmatprep.subr.bf16.mxu0 0
        %1744 = vmatpush1.bf16.msra.mxu0 0
        %1745 = vmatprep.subr.bf16.mxu0 0
        %1746 = vmatpush1.bf16.msra.mxu0 0
        %1747 = vmatprep.subr.bf16.mxu0 0
        %1748 = vmatpush1.bf16.msra.mxu0 0
        %1749 = vmatprep.subr.bf16.mxu0 0
        %1750 = vmatpush1.bf16.msra.mxu0 0
        %1751 = vmatprep.subr.bf16.mxu0 0
        %1752 = vmatpush1.bf16.msra.mxu0 0
        %1753 = vmatprep.mubr.bf16.mxu0 0
        %1754 = vmatmul.mubr.bf16.gmra.mrb[0].mxu0 %v727
        %v1755 = vpop.f32.mrb[0].mxu0
        %v1756 = vadd.f32 0.0, %v1755
        %v1757 = vpop.f32.mrb[0].mxu0
        %v1758 = vadd.f32 0.0, %v1757
        %v1759 = vpop.f32.mrb[0].mxu0
        %v1760 = vadd.f32 0.0, %v1759
        %v1761 = vpop.f32.mrb[0].mxu0
        %v1762 = vadd.f32 0.0, %v1761
        %1763 = vmatprep.mubr.bf16.mxu0 0
        %1764 = vmatmul.mubr.bf16.gmra.mrb[0].mxu0 %v728
        %v1765 = vpop.f32.mrb[0].mxu0
        %v1766 = vadd.f32 0.0, %v1765
        %v1767 = vpop.f32.mrb[0].mxu0
        %v1768 = vadd.f32 0.0, %v1767
        %v1769 = vpop.f32.mrb[0].mxu0
        %v1770 = vadd.f32 0.0, %v1769
        %v1771 = vpop.f32.mrb[0].mxu0
        %v1772 = vadd.f32 0.0, %v1771
        %1773 = vmatprep.mubr.bf16.mxu0 0
        %1774 = vmatmul.mubr.bf16.gmra.mrb[0].mxu0 %v729
        %v1775 = vpop.f32.mrb[0].mxu0
        %v1776 = vadd.f32 0.0, %v1775
        %v1777 = vpop.f32.mrb[0].mxu0
        %v1778 = vadd.f32 0.0, %v1777
        %v1779 = vpop.f32.mrb[0].mxu0
        %v1780 = vadd.f32 0.0, %v1779
        %v1781 = vpop.f32.mrb[0].mxu0
        %v1782 = vadd.f32 0.0, %v1781
        %1783 = vmatprep.mubr.bf16.mxu0 0
        %1784 = vmatmul.mubr.bf16.gmra.mrb[0].mxu0 %v730
        %v1785 = vpop.f32.mrb[0].mxu0
        %v1786 = vadd.f32 0.0, %v1785
        %v1787 = vpop.f32.mrb[0].mxu0
        %v1788 = vadd.f32 0.0, %v1787
        %v1789 = vpop.f32.mrb[0].mxu0
        %v1790 = vadd.f32 0.0, %v1789
        %v1791 = vpop.f32.mrb[0].mxu0
        %v1792 = vadd.f32 0.0, %v1791
        %1793 = vmatprep.mubr.bf16.mxu0 0
        %1794 = vmatmul.mubr.bf16.gmra.mrb[0].mxu0 %v731
        %v1795 = vpop.f32.mrb[0].mxu0
        %v1796 = vadd.f32 0.0, %v1795
        %v1797 = vpop.f32.mrb[0].mxu0
        %v1798 = vadd.f32 0.0, %v1797
        %v1799 = vpop.f32.mrb[0].mxu0
        %v1800 = vadd.f32 0.0, %v1799
        %v1801 = vpop.f32.mrb[0].mxu0
        %v1802 = vadd.f32 0.0, %v1801
        %1803 = vmatprep.mubr.bf16.mxu0 0
        %1804 = vmatmul.mubr.bf16.gmra.mrb[0].mxu0 %v732
        %v1805 = vpop.f32.mrb[0].mxu0
        %v1806 = vadd.f32 0.0, %v1805
        %v1807 = vpop.f32.mrb[0].mxu0
        %v1808 = vadd.f32 0.0, %v1807
        %v1809 = vpop.f32.mrb[0].mxu0
        %v1810 = vadd.f32 0.0, %v1809
        %v1811 = vpop.f32.mrb[0].mxu0
        %v1812 = vadd.f32 0.0, %v1811
        %1813 = vmatprep.mubr.bf16.mxu0 0
        %1814 = vmatmul.mubr.bf16.gmra.mrb[0].mxu0 %v733
        %v1815 = vpop.f32.mrb[0].mxu0
        %v1816 = vadd.f32 0.0, %v1815
        %v1817 = vpop.f32.mrb[0].mxu0
        %v1818 = vadd.f32 0.0, %v1817
        %v1819 = vpop.f32.mrb[0].mxu0
        %v1820 = vadd.f32 0.0, %v1819
        %v1821 = vpop.f32.mrb[0].mxu0
        %v1822 = vadd.f32 0.0, %v1821
        %1823 = vmatprep.mubr.bf16.mxu0 0
        %1824 = vmatmul.mubr.bf16.gmra.mrb[0].mxu0 %v734
        %v1825 = vpop.f32.mrb[0].mxu0
        %v1826 = vadd.f32 0.0, %v1825
        %v1827 = vpop.f32.mrb[0].mxu0
        %v1828 = vadd.f32 0.0, %v1827
        %v1829 = vpop.f32.mrb[0].mxu0
        %v1830 = vadd.f32 0.0, %v1829
        %v1831 = vpop.f32.mrb[0].mxu0
        %v1832 = vadd.f32 0.0, %v1831
        %1833 = vmatprep.mubr.bf16.mxu0 0
        %1834 = vmatmul.mubr.bf16.gmra.mrb[0].mxu0 %v735
        %v1835 = vpop.f32.mrb[0].mxu0
        %v1836 = vadd.f32 0.0, %v1835
        %v1837 = vpop.f32.mrb[0].mxu0
        %v1838 = vadd.f32 0.0, %v1837
        %v1839 = vpop.f32.mrb[0].mxu0
        %v1840 = vadd.f32 0.0, %v1839
        %v1841 = vpop.f32.mrb[0].mxu0
        %v1842 = vadd.f32 0.0, %v1841
        %1843 = vmatprep.mubr.bf16.mxu0 0
        %1844 = vmatmul.mubr.bf16.gmra.mrb[0].mxu0 %v736
        %v1845 = vpop.f32.mrb[0].mxu0
        %v1846 = vadd.f32 0.0, %v1845
        %v1847 = vpop.f32.mrb[0].mxu0
        %v1848 = vadd.f32 0.0, %v1847
        %v1849 = vpop.f32.mrb[0].mxu0
        %v1850 = vadd.f32 0.0, %v1849
        %v1851 = vpop.f32.mrb[0].mxu0
        %v1852 = vadd.f32 0.0, %v1851
        %1853 = vmatprep.mubr.bf16.mxu0 0
        %1854 = vmatmul.mubr.bf16.gmra.mrb[0].mxu0 %v737
        %v1855 = vpop.f32.mrb[0].mxu0
        %v1856 = vadd.f32 0.0, %v1855
        %v1857 = vpop.f32.mrb[0].mxu0
        %v1858 = vadd.f32 0.0, %v1857
        %v1859 = vpop.f32.mrb[0].mxu0
        %v1860 = vadd.f32 0.0, %v1859
        %v1861 = vpop.f32.mrb[0].mxu0
        %v1862 = vadd.f32 0.0, %v1861
        %1863 = vmatprep.mubr.bf16.mxu0 0
        %1864 = vmatmul.mubr.bf16.gmra.mrb[0].mxu0 %v738
        %v1865 = vpop.f32.mrb[0].mxu0
        %v1866 = vadd.f32 0.0, %v1865
        %v1867 = vpop.f32.mrb[0].mxu0
        %v1868 = vadd.f32 0.0, %v1867
        %v1869 = vpop.f32.mrb[0].mxu0
        %v1870 = vadd.f32 0.0, %v1869
        %v1871 = vpop.f32.mrb[0].mxu0
        %v1872 = vadd.f32 0.0, %v1871
        %1873 = vmatprep.mubr.bf16.mxu0 0
        %1874 = vmatmul.mubr.bf16.gmra.mrb[0].mxu0 %v739
        %v1875 = vpop.f32.mrb[0].mxu0
        %v1876 = vadd.f32 0.0, %v1875
        %v1877 = vpop.f32.mrb[0].mxu0
        %v1878 = vadd.f32 0.0, %v1877
        %v1879 = vpop.f32.mrb[0].mxu0
        %v1880 = vadd.f32 0.0, %v1879
        %v1881 = vpop.f32.mrb[0].mxu0
        %v1882 = vadd.f32 0.0, %v1881
        %1883 = vmatprep.mubr.bf16.mxu0 0
        %1884 = vmatmul.mubr.bf16.gmra.mrb[0].mxu0 %v1639
        %v1885 = vpop.f32.mrb[0].mxu0
        %v1886 = vadd.f32 0.0, %v1885
        %v1887 = vpop.f32.mrb[0].mxu0
        %v1888 = vadd.f32 0.0, %v1887
        %v1889 = vpop.f32.mrb[0].mxu0
        %v1890 = vadd.f32 0.0, %v1889
        %v1891 = vpop.f32.mrb[0].mxu0
        %v1892 = vadd.f32 0.0, %v1891
        %1893 = vdwg.mxu0
        %v1894 = vadd.f32 %v1564, %v1756
        %v1895 = vadd.f32 %v1565, %v1758
        %v1896 = vadd.f32 %v1566, %v1760
        %v1897 = vadd.f32 %v1567, %v1762
        %v1898 = vadd.f32 %v1568, %v1766
        %v1899 = vadd.f32 %v1569, %v1768
        %v1900 = vadd.f32 %v1570, %v1770
        %v1901 = vadd.f32 %v1571, %v1772
        %v1902 = vadd.f32 %v1572, %v1776
        %v1903 = vadd.f32 %v1573, %v1778
        %v1904 = vadd.f32 %v1574, %v1780
        %v1905 = vadd.f32 %v1575, %v1782
        %v1906 = vadd.f32 %v1576, %v1786
        %v1907 = vadd.f32 %v1577, %v1788
        %v1908 = vadd.f32 %v1578, %v1790
        %v1909 = vadd.f32 %v1579, %v1792
        %v1910 = vadd.f32 %v1580, %v1796
        %v1911 = vadd.f32 %v1581, %v1798
        %v1912 = vadd.f32 %v1582, %v1800
        %v1913 = vadd.f32 %v1583, %v1802
        %v1914 = vadd.f32 %v1584, %v1806
        %v1915 = vadd.f32 %v1585, %v1808
        %v1916 = vadd.f32 %v1586, %v1810
        %v1917 = vadd.f32 %v1587, %v1812
        %v1918 = vadd.f32 %v1588, %v1816
        %v1919 = vadd.f32 %v1589, %v1818
        %v1920 = vadd.f32 %v1590, %v1820
        %v1921 = vadd.f32 %v1591, %v1822
        %v1922 = vadd.f32 %v1592, %v1826
        %v1923 = vadd.f32 %v1593, %v1828
        %v1924 = vadd.f32 %v1594, %v1830
        %v1925 = vadd.f32 %v1595, %v1832
        %v1926 = vadd.f32 %v1596, %v1836
        %v1927 = vadd.f32 %v1597, %v1838
        %v1928 = vadd.f32 %v1598, %v1840
        %v1929 = vadd.f32 %v1599, %v1842
        %v1930 = vadd.f32 %v1600, %v1846
        %v1931 = vadd.f32 %v1601, %v1848
        %v1932 = vadd.f32 %v1602, %v1850
        %v1933 = vadd.f32 %v1603, %v1852
        %v1934 = vadd.f32 %v1604, %v1856
        %v1935 = vadd.f32 %v1605, %v1858
        %v1936 = vadd.f32 %v1606, %v1860
        %v1937 = vadd.f32 %v1607, %v1862
        %v1938 = vadd.f32 %v1608, %v1866
        %v1939 = vadd.f32 %v1609, %v1868
        %v1940 = vadd.f32 %v1610, %v1870
        %v1941 = vadd.f32 %v1611, %v1872
        %v1942 = vadd.f32 %v1612, %v1876
        %v1943 = vadd.f32 %v1613, %v1878
        %v1944 = vadd.f32 %v1614, %v1880
        %v1945 = vadd.f32 %v1615, %v1882
        %v1946 = vadd.f32 %v1616, %v1886
        %v1947 = vadd.f32 %v1617, %v1888
        %v1948 = vadd.f32 %v1618, %v1890
        %v1949 = vadd.f32 %v1619, %v1892
        %s1950 = scalar_lea.vmem %s1, 512
        %v1951 = vld [vmem:[%s1950] sm:$0xff]
        %v1952 = vld [vmem:[%s1950 + $0x8] sm:$0xff]
        %v1953 = vld [vmem:[%s1950 + $0x10] sm:$0xff]
        %v1954 = vld [vmem:[%s1950 + $0x18] sm:$0xff]
        %v1955 = vld [vmem:[%s1950 + $0x20] sm:$0xff]
        %v1956 = vld [vmem:[%s1950 + $0x28] sm:$0xff]
        %v1957 = vld [vmem:[%s1950 + $0x30] sm:$0xff]
        %v1958 = vld [vmem:[%s1950 + $0x38] sm:$0xff]
        %v1959 = vld [vmem:[%s1950 + $0x40] sm:$0xff]
        %v1960 = vld [vmem:[%s1950 + $0x48] sm:$0xff]
        %v1961 = vld [vmem:[%s1950 + $0x50] sm:$0xff]
        %v1962 = vld [vmem:[%s1950 + $0x58] sm:$0xff]
        %v1963 = vld [vmem:[%s1950 + $0x60] sm:$0xff]
        %v1964 = vld [vmem:[%s1950 + $0x68] sm:$0xff]
        %v1965 = vld [vmem:[%s1950 + $0x70] sm:$0xff]
        %v1966 = vld [vmem:[%s1950 + $0x78] sm:$0xff]
        %v1968 = vunpack.c.l.b16 %v636
        %v1969 = vpack.c.b16 %v1968, %v1638
        %v1987 = vunpack.c.l.b16 %v1951
        %v1988 = vunpack.c.h.b16 %v1951
        %v1989 = vunpack.c.l.b16 %v1952
        %v1990 = vunpack.c.h.b16 %v1952
        %v1991 = vunpack.c.l.b16 %v1953
        %v1992 = vunpack.c.h.b16 %v1953
        %v1993 = vunpack.c.l.b16 %v1954
        %v1994 = vunpack.c.h.b16 %v1954
        %v1995 = vunpack.c.l.b16 %v1955
        %v1996 = vunpack.c.h.b16 %v1955
        %v1997 = vunpack.c.l.b16 %v1956
        %v1998 = vunpack.c.h.b16 %v1956
        %v1999 = vunpack.c.l.b16 %v1957
        %v2000 = vunpack.c.h.b16 %v1957
        %v2001 = vunpack.c.l.b16 %v1958
        %v2002 = vunpack.c.h.b16 %v1958
        %v2003 = vunpack.c.l.b16 %v1959
        %v2004 = vunpack.c.h.b16 %v1959
        %v2005 = vunpack.c.l.b16 %v1960
        %v2006 = vunpack.c.h.b16 %v1960
        %v2007 = vunpack.c.l.b16 %v1961
        %v2008 = vunpack.c.h.b16 %v1961
        %v2009 = vunpack.c.l.b16 %v1962
        %v2010 = vunpack.c.h.b16 %v1962
        %v2011 = vunpack.c.l.b16 %v1963
        %v2012 = vunpack.c.h.b16 %v1963
        %v2013 = vunpack.c.l.b16 %v1964
        %v2014 = vunpack.c.h.b16 %v1964
        %v2015 = vunpack.c.l.b16 %v1965
        %v2016 = vunpack.c.h.b16 %v1965
        %v2017 = vunpack.c.l.b16 %v1966
        %v2018 = vunpack.c.h.b16 %v1966
        %v2019 = vpack.c.b16 %v1989, %v1987
        %v2020 = vpack.c.b16 %v1990, %v1988
        %v2021 = vpack.c.b16 %v1993, %v1991
        %v2022 = vpack.c.b16 %v1994, %v1992
        %v2023 = vpack.c.b16 %v1997, %v1995
        %v2024 = vpack.c.b16 %v1998, %v1996
        %v2025 = vpack.c.b16 %v2001, %v1999
        %v2026 = vpack.c.b16 %v2002, %v2000
        %v2027 = vpack.c.b16 %v2005, %v2003
        %v2028 = vpack.c.b16 %v2006, %v2004
        %v2029 = vpack.c.b16 %v2009, %v2007
        %v2030 = vpack.c.b16 %v2010, %v2008
        %v2031 = vpack.c.b16 %v2013, %v2011
        %v2032 = vpack.c.b16 %v2014, %v2012
        %v2033 = vpack.c.b16 %v2017, %v2015
        %v2034 = vpack.c.b16 %v2018, %v2016
        %2051 = vmatprep.subr.bf16.mxu0 %v2020
        %2052 = vmatpush1.bf16.msra.mxu0 %v2019
        %2053 = vmatprep.subr.bf16.mxu0 %v2022
        %2054 = vmatpush1.bf16.msra.mxu0 %v2021
        %2055 = vmatprep.subr.bf16.mxu0 %v2024
        %2056 = vmatpush1.bf16.msra.mxu0 %v2023
        %2057 = vmatprep.subr.bf16.mxu0 %v2026
        %2058 = vmatpush1.bf16.msra.mxu0 %v2025
        %2059 = vmatprep.subr.bf16.mxu0 %v2028
        %2060 = vmatpush1.bf16.msra.mxu0 %v2027
        %2061 = vmatprep.subr.bf16.mxu0 %v2030
        %2062 = vmatpush1.bf16.msra.mxu0 %v2029
        %2063 = vmatprep.subr.bf16.mxu0 %v2032
        %2064 = vmatpush1.bf16.msra.mxu0 %v2031
        %2065 = vmatprep.subr.bf16.mxu0 %v2034
        %2066 = vmatpush1.bf16.msra.mxu0 %v2033
        %2067 = vmatprep.subr.bf16.mxu0 0
        %2068 = vmatpush1.bf16.msra.mxu0 0
        %2069 = vmatprep.subr.bf16.mxu0 0
        %2070 = vmatpush1.bf16.msra.mxu0 0
        %2071 = vmatprep.subr.bf16.mxu0 0
        %2072 = vmatpush1.bf16.msra.mxu0 0
        %2073 = vmatprep.subr.bf16.mxu0 0
        %2074 = vmatpush1.bf16.msra.mxu0 0
        %2075 = vmatprep.subr.bf16.mxu0 0
        %2076 = vmatpush1.bf16.msra.mxu0 0
        %2077 = vmatprep.subr.bf16.mxu0 0
        %2078 = vmatpush1.bf16.msra.mxu0 0
        %2079 = vmatprep.subr.bf16.mxu0 0
        %2080 = vmatpush1.bf16.msra.mxu0 0
        %2081 = vmatprep.subr.bf16.mxu0 0
        %2082 = vmatpush1.bf16.msra.mxu0 0
        %2083 = vmatprep.mubr.bf16.mxu0 0
        %2084 = vmatmul.mubr.bf16.gmra.mrb[0].mxu0 %v1011
        %v2085 = vpop.f32.mrb[0].mxu0
        %v2086 = vadd.f32 0.0, %v2085
        %v2087 = vpop.f32.mrb[0].mxu0
        %v2088 = vadd.f32 0.0, %v2087
        %v2089 = vpop.f32.mrb[0].mxu0
        %v2090 = vadd.f32 0.0, %v2089
        %v2091 = vpop.f32.mrb[0].mxu0
        %v2092 = vadd.f32 0.0, %v2091
        %2093 = vmatprep.mubr.bf16.mxu0 0
        %2094 = vmatmul.mubr.bf16.gmra.mrb[0].mxu0 %v1012
        %v2095 = vpop.f32.mrb[0].mxu0
        %v2096 = vadd.f32 0.0, %v2095
        %v2097 = vpop.f32.mrb[0].mxu0
        %v2098 = vadd.f32 0.0, %v2097
        %v2099 = vpop.f32.mrb[0].mxu0
        %v2100 = vadd.f32 0.0, %v2099
        %v2101 = vpop.f32.mrb[0].mxu0
        %v2102 = vadd.f32 0.0, %v2101
        %2103 = vmatprep.mubr.bf16.mxu0 0
        %2104 = vmatmul.mubr.bf16.gmra.mrb[0].mxu0 %v1013
        %v2105 = vpop.f32.mrb[0].mxu0
        %v2106 = vadd.f32 0.0, %v2105
        %v2107 = vpop.f32.mrb[0].mxu0
        %v2108 = vadd.f32 0.0, %v2107
        %v2109 = vpop.f32.mrb[0].mxu0
        %v2110 = vadd.f32 0.0, %v2109
        %v2111 = vpop.f32.mrb[0].mxu0
        %v2112 = vadd.f32 0.0, %v2111
        %2113 = vmatprep.mubr.bf16.mxu0 0
        %2114 = vmatmul.mubr.bf16.gmra.mrb[0].mxu0 %v1014
        %v2115 = vpop.f32.mrb[0].mxu0
        %v2116 = vadd.f32 0.0, %v2115
        %v2117 = vpop.f32.mrb[0].mxu0
        %v2118 = vadd.f32 0.0, %v2117
        %v2119 = vpop.f32.mrb[0].mxu0
        %v2120 = vadd.f32 0.0, %v2119
        %v2121 = vpop.f32.mrb[0].mxu0
        %v2122 = vadd.f32 0.0, %v2121
        %2123 = vmatprep.mubr.bf16.mxu0 0
        %2124 = vmatmul.mubr.bf16.gmra.mrb[0].mxu0 %v1015
        %v2125 = vpop.f32.mrb[0].mxu0
        %v2126 = vadd.f32 0.0, %v2125
        %v2127 = vpop.f32.mrb[0].mxu0
        %v2128 = vadd.f32 0.0, %v2127
        %v2129 = vpop.f32.mrb[0].mxu0
        %v2130 = vadd.f32 0.0, %v2129
        %v2131 = vpop.f32.mrb[0].mxu0
        %v2132 = vadd.f32 0.0, %v2131
        %2133 = vmatprep.mubr.bf16.mxu0 0
        %2134 = vmatmul.mubr.bf16.gmra.mrb[0].mxu0 %v1016
        %v2135 = vpop.f32.mrb[0].mxu0
        %v2136 = vadd.f32 0.0, %v2135
        %v2137 = vpop.f32.mrb[0].mxu0
        %v2138 = vadd.f32 0.0, %v2137
        %v2139 = vpop.f32.mrb[0].mxu0
        %v2140 = vadd.f32 0.0, %v2139
        %v2141 = vpop.f32.mrb[0].mxu0
        %v2142 = vadd.f32 0.0, %v2141
        %2143 = vmatprep.mubr.bf16.mxu0 0
        %2144 = vmatmul.mubr.bf16.gmra.mrb[0].mxu0 %v1017
        %v2145 = vpop.f32.mrb[0].mxu0
        %v2146 = vadd.f32 0.0, %v2145
        %v2147 = vpop.f32.mrb[0].mxu0
        %v2148 = vadd.f32 0.0, %v2147
        %v2149 = vpop.f32.mrb[0].mxu0
        %v2150 = vadd.f32 0.0, %v2149
        %v2151 = vpop.f32.mrb[0].mxu0
        %v2152 = vadd.f32 0.0, %v2151
        %2153 = vmatprep.mubr.bf16.mxu0 0
        %2154 = vmatmul.mubr.bf16.gmra.mrb[0].mxu0 %v1018
        %v2155 = vpop.f32.mrb[0].mxu0
        %v2156 = vadd.f32 0.0, %v2155
        %v2157 = vpop.f32.mrb[0].mxu0
        %v2158 = vadd.f32 0.0, %v2157
        %v2159 = vpop.f32.mrb[0].mxu0
        %v2160 = vadd.f32 0.0, %v2159
        %v2161 = vpop.f32.mrb[0].mxu0
        %v2162 = vadd.f32 0.0, %v2161
        %2163 = vmatprep.mubr.bf16.mxu0 0
        %2164 = vmatmul.mubr.bf16.gmra.mrb[0].mxu0 %v1019
        %v2165 = vpop.f32.mrb[0].mxu0
        %v2166 = vadd.f32 0.0, %v2165
        %v2167 = vpop.f32.mrb[0].mxu0
        %v2168 = vadd.f32 0.0, %v2167
        %v2169 = vpop.f32.mrb[0].mxu0
        %v2170 = vadd.f32 0.0, %v2169
        %v2171 = vpop.f32.mrb[0].mxu0
        %v2172 = vadd.f32 0.0, %v2171
        %2173 = vmatprep.mubr.bf16.mxu0 0
        %2174 = vmatmul.mubr.bf16.gmra.mrb[0].mxu0 %v1020
        %v2175 = vpop.f32.mrb[0].mxu0
        %v2176 = vadd.f32 0.0, %v2175
        %v2177 = vpop.f32.mrb[0].mxu0
        %v2178 = vadd.f32 0.0, %v2177
        %v2179 = vpop.f32.mrb[0].mxu0
        %v2180 = vadd.f32 0.0, %v2179
        %v2181 = vpop.f32.mrb[0].mxu0
        %v2182 = vadd.f32 0.0, %v2181
        %2183 = vmatprep.mubr.bf16.mxu0 0
        %2184 = vmatmul.mubr.bf16.gmra.mrb[0].mxu0 %v1021
        %v2185 = vpop.f32.mrb[0].mxu0
        %v2186 = vadd.f32 0.0, %v2185
        %v2187 = vpop.f32.mrb[0].mxu0
        %v2188 = vadd.f32 0.0, %v2187
        %v2189 = vpop.f32.mrb[0].mxu0
        %v2190 = vadd.f32 0.0, %v2189
        %v2191 = vpop.f32.mrb[0].mxu0
        %v2192 = vadd.f32 0.0, %v2191
        %2193 = vmatprep.mubr.bf16.mxu0 0
        %2194 = vmatmul.mubr.bf16.gmra.mrb[0].mxu0 %v1022
        %v2195 = vpop.f32.mrb[0].mxu0
        %v2196 = vadd.f32 0.0, %v2195
        %v2197 = vpop.f32.mrb[0].mxu0
        %v2198 = vadd.f32 0.0, %v2197
        %v2199 = vpop.f32.mrb[0].mxu0
        %v2200 = vadd.f32 0.0, %v2199
        %v2201 = vpop.f32.mrb[0].mxu0
        %v2202 = vadd.f32 0.0, %v2201
        %2203 = vmatprep.mubr.bf16.mxu0 0
        %2204 = vmatmul.mubr.bf16.gmra.mrb[0].mxu0 %v1309
        %v2205 = vpop.f32.mrb[0].mxu0
        %v2206 = vadd.f32 0.0, %v2205
        %v2207 = vpop.f32.mrb[0].mxu0
        %v2208 = vadd.f32 0.0, %v2207
        %v2209 = vpop.f32.mrb[0].mxu0
        %v2210 = vadd.f32 0.0, %v2209
        %v2211 = vpop.f32.mrb[0].mxu0
        %v2212 = vadd.f32 0.0, %v2211
        %2213 = vmatprep.mubr.bf16.mxu0 0
        %2214 = vmatmul.mubr.bf16.gmra.mrb[0].mxu0 %v1969
        %v2215 = vpop.f32.mrb[0].mxu0
        %v2216 = vadd.f32 0.0, %v2215
        %v2217 = vpop.f32.mrb[0].mxu0
        %v2218 = vadd.f32 0.0, %v2217
        %v2219 = vpop.f32.mrb[0].mxu0
        %v2220 = vadd.f32 0.0, %v2219
        %v2221 = vpop.f32.mrb[0].mxu0
        %v2222 = vadd.f32 0.0, %v2221
        %2223 = vdwg.mxu0
        %v2224 = vadd.f32 %v1894, %v2086
        %v2225 = vadd.f32 %v1895, %v2088
        %v2226 = vadd.f32 %v1896, %v2090
        %v2227 = vadd.f32 %v1897, %v2092
        %v2228 = vadd.f32 %v1898, %v2096
        %v2229 = vadd.f32 %v1899, %v2098
        %v2230 = vadd.f32 %v1900, %v2100
        %v2231 = vadd.f32 %v1901, %v2102
        %v2232 = vadd.f32 %v1902, %v2106
        %v2233 = vadd.f32 %v1903, %v2108
        %v2234 = vadd.f32 %v1904, %v2110
        %v2235 = vadd.f32 %v1905, %v2112
        %v2236 = vadd.f32 %v1906, %v2116
        %v2237 = vadd.f32 %v1907, %v2118
        %v2238 = vadd.f32 %v1908, %v2120
        %v2239 = vadd.f32 %v1909, %v2122
        %v2240 = vadd.f32 %v1910, %v2126
        %v2241 = vadd.f32 %v1911, %v2128
        %v2242 = vadd.f32 %v1912, %v2130
        %v2243 = vadd.f32 %v1913, %v2132
        %v2244 = vadd.f32 %v1914, %v2136
        %v2245 = vadd.f32 %v1915, %v2138
        %v2246 = vadd.f32 %v1916, %v2140
        %v2247 = vadd.f32 %v1917, %v2142
        %v2248 = vadd.f32 %v1918, %v2146
        %v2249 = vadd.f32 %v1919, %v2148
        %v2250 = vadd.f32 %v1920, %v2150
        %v2251 = vadd.f32 %v1921, %v2152
        %v2252 = vadd.f32 %v1922, %v2156
        %v2253 = vadd.f32 %v1923, %v2158
        %v2254 = vadd.f32 %v1924, %v2160
        %v2255 = vadd.f32 %v1925, %v2162
        %v2256 = vadd.f32 %v1926, %v2166
        %v2257 = vadd.f32 %v1927, %v2168
        %v2258 = vadd.f32 %v1928, %v2170
        %v2259 = vadd.f32 %v1929, %v2172
        %v2260 = vadd.f32 %v1930, %v2176
        %v2261 = vadd.f32 %v1931, %v2178
        %v2262 = vadd.f32 %v1932, %v2180
        %v2263 = vadd.f32 %v1933, %v2182
        %v2264 = vadd.f32 %v1934, %v2186
        %v2265 = vadd.f32 %v1935, %v2188
        %v2266 = vadd.f32 %v1936, %v2190
        %v2267 = vadd.f32 %v1937, %v2192
        %v2268 = vadd.f32 %v1938, %v2196
        %v2269 = vadd.f32 %v1939, %v2198
        %v2270 = vadd.f32 %v1940, %v2200
        %v2271 = vadd.f32 %v1941, %v2202
        %v2272 = vadd.f32 %v1942, %v2206
        %v2273 = vadd.f32 %v1943, %v2208
        %v2274 = vadd.f32 %v1944, %v2210
        %v2275 = vadd.f32 %v1945, %v2212
        %v2276 = vadd.f32 %v1946, %v2216
        %v2277 = vadd.f32 %v1947, %v2218
        %v2278 = vadd.f32 %v1948, %v2220
        %v2279 = vadd.f32 %v1949, %v2222
        %v2280 = vmax.f32 %v2224, %v2226
        %v2281 = vmax.f32 %v2225, %v2227
        %v2282 = vmax.f32 %v2228, %v2230
        %v2283 = vmax.f32 %v2229, %v2231
        %v2284 = vmax.f32 %v2232, %v2234
        %v2285 = vmax.f32 %v2233, %v2235
        %v2286 = vmax.f32 %v2236, %v2238
        %v2287 = vmax.f32 %v2237, %v2239
        %v2288 = vmax.f32 %v2240, %v2242
        %v2289 = vmax.f32 %v2241, %v2243
        %v2290 = vmax.f32 %v2244, %v2246
        %v2291 = vmax.f32 %v2245, %v2247
        %v2292 = vmax.f32 %v2248, %v2250
        %v2293 = vmax.f32 %v2249, %v2251
        %v2294 = vmax.f32 %v2252, %v2254
        %v2295 = vmax.f32 %v2253, %v2255
        %v2296 = vmax.f32 %v2256, %v2258
        %v2297 = vmax.f32 %v2257, %v2259
        %v2298 = vmax.f32 %v2260, %v2262
        %v2299 = vmax.f32 %v2261, %v2263
        %v2300 = vmax.f32 %v2264, %v2266
        %v2301 = vmax.f32 %v2265, %v2267
        %v2302 = vmax.f32 %v2268, %v2270
        %v2303 = vmax.f32 %v2269, %v2271
        %v2304 = vmax.f32 %v2272, %v2274
        %v2305 = vmax.f32 %v2273, %v2275
        %v2306 = vmax.f32 %v2276, %v2278
        %v2307 = vmax.f32 %v2277, %v2279
        %v2308 = vld [vmem:[%s2] sm:$0x3]
        %v2310 = vlaneseq
        %v2311 = vshrl.u32 %v2310, 7
        %v2312 = vsub.s32 0, %v2311
        %v2313 = vrot.slane %v2308, %v2312
        %v2314 = vlaneseq
        %v2315 = vshrl.u32 %v2314, 7
        %v2316 = vsub.s32 1, %v2315
        %v2317 = vrot.slane %v2308, %v2316
        %v2320 = vadd.f32 %v2280, %v2313
        %v2321 = vadd.f32 %v2281, %v2317
        %v2322 = vadd.f32 %v2282, %v2313
        %v2323 = vadd.f32 %v2283, %v2317
        %v2324 = vadd.f32 %v2284, %v2313
        %v2325 = vadd.f32 %v2285, %v2317
        %v2326 = vadd.f32 %v2286, %v2313
        %v2327 = vadd.f32 %v2287, %v2317
        %v2328 = vadd.f32 %v2288, %v2313
        %v2329 = vadd.f32 %v2289, %v2317
        %v2330 = vadd.f32 %v2290, %v2313
        %v2331 = vadd.f32 %v2291, %v2317
        %v2332 = vadd.f32 %v2292, %v2313
        %v2333 = vadd.f32 %v2293, %v2317
        %v2334 = vadd.f32 %v2294, %v2313
        %v2335 = vadd.f32 %v2295, %v2317
        %v2336 = vadd.f32 %v2296, %v2313
        %v2337 = vadd.f32 %v2297, %v2317
        %v2338 = vadd.f32 %v2298, %v2313
        %v2339 = vadd.f32 %v2299, %v2317
        %v2340 = vadd.f32 %v2300, %v2313
        %v2341 = vadd.f32 %v2301, %v2317
        %v2342 = vadd.f32 %v2302, %v2313
        %v2343 = vadd.f32 %v2303, %v2317
        %v2344 = vadd.f32 %v2304, %v2313
        %v2345 = vadd.f32 %v2305, %v2317
        %v2346 = vadd.f32 %v2306, %v2313
        %v2347 = vadd.f32 %v2307, %v2317
        %v2348 = vmax.f32 %v2320, 0.0
        %v2349 = vmax.f32 %v2321, 0.0
        %v2350 = vmax.f32 %v2322, 0.0
        %v2351 = vmax.f32 %v2323, 0.0
        %v2352 = vmax.f32 %v2324, 0.0
        %v2353 = vmax.f32 %v2325, 0.0
        %v2354 = vmax.f32 %v2326, 0.0
        %v2355 = vmax.f32 %v2327, 0.0
        %v2356 = vmax.f32 %v2328, 0.0
        %v2357 = vmax.f32 %v2329, 0.0
        %v2358 = vmax.f32 %v2330, 0.0
        %v2359 = vmax.f32 %v2331, 0.0
        %v2360 = vmax.f32 %v2332, 0.0
        %v2361 = vmax.f32 %v2333, 0.0
        %v2362 = vmax.f32 %v2334, 0.0
        %v2363 = vmax.f32 %v2335, 0.0
        %v2364 = vmax.f32 %v2336, 0.0
        %v2365 = vmax.f32 %v2337, 0.0
        %v2366 = vmax.f32 %v2338, 0.0
        %v2367 = vmax.f32 %v2339, 0.0
        %v2368 = vmax.f32 %v2340, 0.0
        %v2369 = vmax.f32 %v2341, 0.0
        %v2370 = vmax.f32 %v2342, 0.0
        %v2371 = vmax.f32 %v2343, 0.0
        %v2372 = vmax.f32 %v2344, 0.0
        %v2373 = vmax.f32 %v2345, 0.0
        %v2374 = vmax.f32 %v2346, 0.0
        %v2375 = vmax.f32 %v2347, 0.0
        %v2376 = vpack.c.bf16 %v2350, %v2348
        %v2377 = vpack.c.bf16 %v2351, %v2349
        %v2378 = vpack.c.bf16 %v2354, %v2352
        %v2379 = vpack.c.bf16 %v2355, %v2353
        %v2380 = vpack.c.bf16 %v2358, %v2356
        %v2381 = vpack.c.bf16 %v2359, %v2357
        %v2382 = vpack.c.bf16 %v2362, %v2360
        %v2383 = vpack.c.bf16 %v2363, %v2361
        %v2384 = vpack.c.bf16 %v2366, %v2364
        %v2385 = vpack.c.bf16 %v2367, %v2365
        %v2386 = vpack.c.bf16 %v2370, %v2368
        %v2387 = vpack.c.bf16 %v2371, %v2369
        %v2388 = vpack.c.bf16 %v2374, %v2372
        %v2389 = vpack.c.bf16 %v2375, %v2373
        %v2390 = vld [vmem:[%s3] sm:$0xf]
        %v2391 = vld [vmem:[%s3 + $0x4] sm:$0xf]
        %v2392 = vld [vmem:[%s3 + $0x8] sm:$0xf]
        %v2393 = vld [vmem:[%s3 + $0xc] sm:$0xf]
        %v2394 = vld [vmem:[%s3 + $0x10] sm:$0xf]
        %v2395 = vld [vmem:[%s3 + $0x14] sm:$0xf]
        %v2396 = vld [vmem:[%s3 + $0x18] sm:$0xf]
        %v2397 = vld [vmem:[%s3 + $0x1c] sm:$0xf]
        %v2398 = vld [vmem:[%s3 + $0x20] sm:$0xf]
        %v2399 = vld [vmem:[%s3 + $0x24] sm:$0xf]
        %v2400 = vld [vmem:[%s3 + $0x28] sm:$0xf]
        %v2401 = vld [vmem:[%s3 + $0x2c] sm:$0xf]
        %v2402 = vld [vmem:[%s3 + $0x30] sm:$0xf]
        %v2403 = vld [vmem:[%s3 + $0x34] sm:$0xf]
        %v2404 = vld [vmem:[%s3 + $0x38] sm:$0xf]
        %v2405 = vld [vmem:[%s3 + $0x3c] sm:$0xf]
        %v2406 = vld [vmem:[%s3 + $0x40] sm:$0xf]
        %v2407 = vld [vmem:[%s3 + $0x44] sm:$0xf]
        %v2408 = vld [vmem:[%s3 + $0x48] sm:$0xf]
        %v2409 = vld [vmem:[%s3 + $0x4c] sm:$0xf]
        %v2410 = vld [vmem:[%s3 + $0x50] sm:$0xf]
        %v2432 = vunpack.c.l.b16 %v2390
        %v2433 = vunpack.c.l.b16 %v2391
        %v2434 = vunpack.c.l.b16 %v2392
        %v2435 = vunpack.c.l.b16 %v2393
        %v2436 = vunpack.c.l.b16 %v2394
        %v2437 = vunpack.c.l.b16 %v2395
        %v2438 = vunpack.c.l.b16 %v2396
        %v2439 = vunpack.c.l.b16 %v2397
        %v2440 = vunpack.c.l.b16 %v2398
        %v2441 = vunpack.c.l.b16 %v2399
        %v2442 = vunpack.c.l.b16 %v2400
        %v2443 = vunpack.c.l.b16 %v2401
        %v2444 = vunpack.c.l.b16 %v2402
        %v2445 = vunpack.c.l.b16 %v2403
        %v2446 = vunpack.c.l.b16 %v2404
        %v2447 = vunpack.c.l.b16 %v2405
        %v2448 = vunpack.c.l.b16 %v2406
        %v2449 = vunpack.c.l.b16 %v2407
        %v2450 = vunpack.c.l.b16 %v2408
        %v2451 = vunpack.c.l.b16 %v2409
        %v2452 = vunpack.c.l.b16 %v2410
        %v2453 = vpack.c.b16 %v2433, %v2432
        %v2454 = vpack.c.b16 %v2435, %v2434
        %v2455 = vpack.c.b16 %v2437, %v2436
        %v2456 = vpack.c.b16 %v2439, %v2438
        %v2457 = vpack.c.b16 %v2441, %v2440
        %v2458 = vpack.c.b16 %v2443, %v2442
        %v2459 = vpack.c.b16 %v2445, %v2444
        %v2460 = vpack.c.b16 %v2447, %v2446
        %v2461 = vpack.c.b16 %v2449, %v2448
        %v2462 = vpack.c.b16 %v2451, %v2450
        %v2463 = vpack.c.b16 %v2452, %v2452
        %vm2474 = vcmask 326656
        %v2476 = vsel %vm2474, %v2377, 0
        %v2479 = vsel %vm2474, %v2379, 0
        %v2482 = vsel %vm2474, %v2381, 0
        %v2485 = vsel %vm2474, %v2383, 0
        %v2488 = vsel %vm2474, %v2385, 0
        %v2491 = vsel %vm2474, %v2387, 0
        %v2494 = vsel %vm2474, %v2389, 0
        %vm2496 = vcmask 1043456
        %v2498 = vsel %vm2496, %v2463, 0
        %2500 = vmatprep.subr.bf16.mxu0 0
        %2501 = vmatpush1.bf16.msra.mxu0 %v2453
        %2502 = vmatprep.subr.bf16.mxu0 0
        %2503 = vmatpush1.bf16.msra.mxu0 %v2454
        %2504 = vmatprep.subr.bf16.mxu0 0
        %2505 = vmatpush1.bf16.msra.mxu0 %v2455
        %2506 = vmatprep.subr.bf16.mxu0 0
        %2507 = vmatpush1.bf16.msra.mxu0 %v2456
        %2508 = vmatprep.subr.bf16.mxu0 0
        %2509 = vmatpush1.bf16.msra.mxu0 %v2457
        %2510 = vmatprep.subr.bf16.mxu0 0
        %2511 = vmatpush1.bf16.msra.mxu0 %v2458
        %2512 = vmatprep.subr.bf16.mxu0 0
        %2513 = vmatpush1.bf16.msra.mxu0 %v2459
        %2514 = vmatprep.subr.bf16.mxu0 0
        %2515 = vmatpush1.bf16.msra.mxu0 %v2460
        %2516 = vmatprep.subr.bf16.mxu0 0
        %2517 = vmatpush1.bf16.msra.mxu0 %v2461
        %2518 = vmatprep.subr.bf16.mxu0 0
        %2519 = vmatpush1.bf16.msra.mxu0 %v2462
        %2520 = vmatprep.subr.bf16.mxu0 0
        %2521 = vmatpush1.bf16.msra.mxu0 %v2498
        %2522 = vmatprep.subr.bf16.mxu0 0
        %2523 = vmatpush1.bf16.msra.mxu0 0
        %2524 = vmatprep.subr.bf16.mxu0 0
        %2525 = vmatpush1.bf16.msra.mxu0 0
        %2526 = vmatprep.subr.bf16.mxu0 0
        %2527 = vmatpush1.bf16.msra.mxu0 0
        %2528 = vmatprep.subr.bf16.mxu0 0
        %2529 = vmatpush1.bf16.msra.mxu0 0
        %2530 = vmatprep.subr.bf16.mxu0 0
        %2531 = vmatpush1.bf16.msra.mxu0 0
        %2532 = vmatprep.mubr.bf16.mxu0 %v2476
        %2533 = vmatmul.mubr.bf16.gmra.mrb[0].mxu0 %v2376
        %v2534 = vpop.f32.mrb[0].mxu0
        %v2535 = vadd.f32 0.0, %v2534
        %v2536 = vpop.f32.mrb[0].mxu0
        %v2537 = vpop.f32.mrb[0].mxu0
        %v2538 = vadd.f32 0.0, %v2537
        %v2539 = vpop.f32.mrb[0].mxu0
        %2540 = vmatprep.mubr.bf16.mxu0 %v2479
        %2541 = vmatmul.mubr.bf16.gmra.mrb[0].mxu0 %v2378
        %v2542 = vpop.f32.mrb[0].mxu0
        %v2543 = vadd.f32 0.0, %v2542
        %v2544 = vpop.f32.mrb[0].mxu0
        %v2545 = vpop.f32.mrb[0].mxu0
        %v2546 = vadd.f32 0.0, %v2545
        %v2547 = vpop.f32.mrb[0].mxu0
        %2548 = vmatprep.mubr.bf16.mxu0 %v2482
        %2549 = vmatmul.mubr.bf16.gmra.mrb[0].mxu0 %v2380
        %v2550 = vpop.f32.mrb[0].mxu0
        %v2551 = vadd.f32 0.0, %v2550
        %v2552 = vpop.f32.mrb[0].mxu0
        %v2553 = vpop.f32.mrb[0].mxu0
        %v2554 = vadd.f32 0.0, %v2553
        %v2555 = vpop.f32.mrb[0].mxu0
        %2556 = vmatprep.mubr.bf16.mxu0 %v2485
        %2557 = vmatmul.mubr.bf16.gmra.mrb[0].mxu0 %v2382
        %v2558 = vpop.f32.mrb[0].mxu0
        %v2559 = vadd.f32 0.0, %v2558
        %v2560 = vpop.f32.mrb[0].mxu0
        %v2561 = vpop.f32.mrb[0].mxu0
        %v2562 = vadd.f32 0.0, %v2561
        %v2563 = vpop.f32.mrb[0].mxu0
        %2564 = vmatprep.mubr.bf16.mxu0 %v2488
        %2565 = vmatmul.mubr.bf16.gmra.mrb[0].mxu0 %v2384
        %v2566 = vpop.f32.mrb[0].mxu0
        %v2567 = vadd.f32 0.0, %v2566
        %v2568 = vpop.f32.mrb[0].mxu0
        %v2569 = vpop.f32.mrb[0].mxu0
        %v2570 = vadd.f32 0.0, %v2569
        %v2571 = vpop.f32.mrb[0].mxu0
        %2572 = vmatprep.mubr.bf16.mxu0 %v2491
        %2573 = vmatmul.mubr.bf16.gmra.mrb[0].mxu0 %v2386
        %v2574 = vpop.f32.mrb[0].mxu0
        %v2575 = vadd.f32 0.0, %v2574
        %v2576 = vpop.f32.mrb[0].mxu0
        %v2577 = vpop.f32.mrb[0].mxu0
        %v2578 = vadd.f32 0.0, %v2577
        %v2579 = vpop.f32.mrb[0].mxu0
        %2580 = vmatprep.mubr.bf16.mxu0 %v2494
        %2581 = vmatmul.mubr.bf16.gmra.mrb[0].mxu0 %v2388
        %v2582 = vpop.f32.mrb[0].mxu0
        %v2583 = vadd.f32 0.0, %v2582
        %v2584 = vpop.f32.mrb[0].mxu0
        %v2585 = vpop.f32.mrb[0].mxu0
        %v2586 = vadd.f32 0.0, %v2585
        %v2587 = vpop.f32.mrb[0].mxu0
        %2588 = vdwg.mxu0
        %s2589 = scalar_lea.vmem %s3, 84
        %v2590 = vld [vmem:[%s2589] sm:$0xf]
        %v2591 = vld [vmem:[%s2589 + $0x4] sm:$0xf]
        %v2592 = vld [vmem:[%s2589 + $0x8] sm:$0xf]
        %v2593 = vld [vmem:[%s2589 + $0xc] sm:$0xf]
        %v2594 = vld [vmem:[%s2589 + $0x10] sm:$0xf]
        %v2595 = vld [vmem:[%s2589 + $0x14] sm:$0xf]
        %v2596 = vld [vmem:[%s2589 + $0x18] sm:$0xf]
        %v2597 = vld [vmem:[%s2589 + $0x1c] sm:$0xf]
        %v2598 = vld [vmem:[%s2589 + $0x20] sm:$0xf]
        %v2599 = vld [vmem:[%s2589 + $0x24] sm:$0xf]
        %v2600 = vld [vmem:[%s2589 + $0x28] sm:$0xf]
        %v2601 = vld [vmem:[%s2589 + $0x2c] sm:$0xf]
        %v2602 = vld [vmem:[%s2589 + $0x30] sm:$0xf]
        %v2603 = vld [vmem:[%s2589 + $0x34] sm:$0xf]
        %v2604 = vld [vmem:[%s2589 + $0x38] sm:$0xf]
        %v2605 = vld [vmem:[%s2589 + $0x3c] sm:$0xf]
        %v2606 = vld [vmem:[%s2589 + $0x40] sm:$0xf]
        %v2607 = vld [vmem:[%s2589 + $0x44] sm:$0xf]
        %v2608 = vld [vmem:[%s2589 + $0x48] sm:$0xf]
        %v2609 = vld [vmem:[%s2589 + $0x4c] sm:$0xf]
        %v2610 = vld [vmem:[%s2589 + $0x50] sm:$0xf]
        %v2632 = vunpack.c.l.b16 %v2590
        %v2633 = vunpack.c.l.b16 %v2591
        %v2634 = vunpack.c.l.b16 %v2592
        %v2635 = vunpack.c.l.b16 %v2593
        %v2636 = vunpack.c.l.b16 %v2594
        %v2637 = vunpack.c.l.b16 %v2595
        %v2638 = vunpack.c.l.b16 %v2596
        %v2639 = vunpack.c.l.b16 %v2597
        %v2640 = vunpack.c.l.b16 %v2598
        %v2641 = vunpack.c.l.b16 %v2599
        %v2642 = vunpack.c.l.b16 %v2600
        %v2643 = vunpack.c.l.b16 %v2601
        %v2644 = vunpack.c.l.b16 %v2602
        %v2645 = vunpack.c.l.b16 %v2603
        %v2646 = vunpack.c.l.b16 %v2604
        %v2647 = vunpack.c.l.b16 %v2605
        %v2648 = vunpack.c.l.b16 %v2606
        %v2649 = vunpack.c.l.b16 %v2607
        %v2650 = vunpack.c.l.b16 %v2608
        %v2651 = vunpack.c.l.b16 %v2609
        %v2652 = vunpack.c.l.b16 %v2610
        %v2653 = vpack.c.b16 %v2633, %v2632
        %v2654 = vpack.c.b16 %v2635, %v2634
        %v2655 = vpack.c.b16 %v2637, %v2636
        %v2656 = vpack.c.b16 %v2639, %v2638
        %v2657 = vpack.c.b16 %v2641, %v2640
        %v2658 = vpack.c.b16 %v2643, %v2642
        %v2659 = vpack.c.b16 %v2645, %v2644
        %v2660 = vpack.c.b16 %v2647, %v2646
        %v2661 = vpack.c.b16 %v2649, %v2648
        %v2662 = vpack.c.b16 %v2651, %v2650
        %v2663 = vpack.c.b16 %v2652, %v2652
        %v2675 = vsel %vm2496, %v2663, 0
        %2677 = vmatprep.subr.bf16.mxu0 0
        %2678 = vmatpush1.bf16.msra.mxu0 %v2653
        %2679 = vmatprep.subr.bf16.mxu0 0
        %2680 = vmatpush1.bf16.msra.mxu0 %v2654
        %2681 = vmatprep.subr.bf16.mxu0 0
        %2682 = vmatpush1.bf16.msra.mxu0 %v2655
        %2683 = vmatprep.subr.bf16.mxu0 0
        %2684 = vmatpush1.bf16.msra.mxu0 %v2656
        %2685 = vmatprep.subr.bf16.mxu0 0
        %2686 = vmatpush1.bf16.msra.mxu0 %v2657
        %2687 = vmatprep.subr.bf16.mxu0 0
        %2688 = vmatpush1.bf16.msra.mxu0 %v2658
        %2689 = vmatprep.subr.bf16.mxu0 0
        %2690 = vmatpush1.bf16.msra.mxu0 %v2659
        %2691 = vmatprep.subr.bf16.mxu0 0
        %2692 = vmatpush1.bf16.msra.mxu0 %v2660
        %2693 = vmatprep.subr.bf16.mxu0 0
        %2694 = vmatpush1.bf16.msra.mxu0 %v2661
        %2695 = vmatprep.subr.bf16.mxu0 0
        %2696 = vmatpush1.bf16.msra.mxu0 %v2662
        %2697 = vmatprep.subr.bf16.mxu0 0
        %2698 = vmatpush1.bf16.msra.mxu0 %v2675
        %2699 = vmatprep.subr.bf16.mxu0 0
        %2700 = vmatpush1.bf16.msra.mxu0 0
        %2701 = vmatprep.subr.bf16.mxu0 0
        %2702 = vmatpush1.bf16.msra.mxu0 0
        %2703 = vmatprep.subr.bf16.mxu0 0
        %2704 = vmatpush1.bf16.msra.mxu0 0
        %2705 = vmatprep.subr.bf16.mxu0 0
        %2706 = vmatpush1.bf16.msra.mxu0 0
        %2707 = vmatprep.subr.bf16.mxu0 0
        %2708 = vmatpush1.bf16.msra.mxu0 0
        %2709 = vmatprep.mubr.bf16.mxu0 %v2476
        %2710 = vmatmul.mubr.bf16.gmra.mrb[0].mxu0 %v2376
        %v2711 = vpop.f32.mrb[0].mxu0
        %v2712 = vadd.f32 0.0, %v2711
        %v2713 = vpop.f32.mrb[0].mxu0
        %v2714 = vpop.f32.mrb[0].mxu0
        %v2715 = vadd.f32 0.0, %v2714
        %v2716 = vpop.f32.mrb[0].mxu0
        %2717 = vmatprep.mubr.bf16.mxu0 %v2479
        %2718 = vmatmul.mubr.bf16.gmra.mrb[0].mxu0 %v2378
        %v2719 = vpop.f32.mrb[0].mxu0
        %v2720 = vadd.f32 0.0, %v2719
        %v2721 = vpop.f32.mrb[0].mxu0
        %v2722 = vpop.f32.mrb[0].mxu0
        %v2723 = vadd.f32 0.0, %v2722
        %v2724 = vpop.f32.mrb[0].mxu0
        %2725 = vmatprep.mubr.bf16.mxu0 %v2482
        %2726 = vmatmul.mubr.bf16.gmra.mrb[0].mxu0 %v2380
        %v2727 = vpop.f32.mrb[0].mxu0
        %v2728 = vadd.f32 0.0, %v2727
        %v2729 = vpop.f32.mrb[0].mxu0
        %v2730 = vpop.f32.mrb[0].mxu0
        %v2731 = vadd.f32 0.0, %v2730
        %v2732 = vpop.f32.mrb[0].mxu0
        %2733 = vmatprep.mubr.bf16.mxu0 %v2485
        %2734 = vmatmul.mubr.bf16.gmra.mrb[0].mxu0 %v2382
        %v2735 = vpop.f32.mrb[0].mxu0
        %v2736 = vadd.f32 0.0, %v2735
        %v2737 = vpop.f32.mrb[0].mxu0
        %v2738 = vpop.f32.mrb[0].mxu0
        %v2739 = vadd.f32 0.0, %v2738
        %v2740 = vpop.f32.mrb[0].mxu0
        %2741 = vmatprep.mubr.bf16.mxu0 %v2488
        %2742 = vmatmul.mubr.bf16.gmra.mrb[0].mxu0 %v2384
        %v2743 = vpop.f32.mrb[0].mxu0
        %v2744 = vadd.f32 0.0, %v2743
        %v2745 = vpop.f32.mrb[0].mxu0
        %v2746 = vpop.f32.mrb[0].mxu0
        %v2747 = vadd.f32 0.0, %v2746
        %v2748 = vpop.f32.mrb[0].mxu0
        %2749 = vmatprep.mubr.bf16.mxu0 %v2491
        %2750 = vmatmul.mubr.bf16.gmra.mrb[0].mxu0 %v2386
        %v2751 = vpop.f32.mrb[0].mxu0
        %v2752 = vadd.f32 0.0, %v2751
        %v2753 = vpop.f32.mrb[0].mxu0
        %v2754 = vpop.f32.mrb[0].mxu0
        %v2755 = vadd.f32 0.0, %v2754
        %v2756 = vpop.f32.mrb[0].mxu0
        %2757 = vmatprep.mubr.bf16.mxu0 %v2494
        %2758 = vmatmul.mubr.bf16.gmra.mrb[0].mxu0 %v2388
        %v2759 = vpop.f32.mrb[0].mxu0
        %v2760 = vadd.f32 0.0, %v2759
        %v2761 = vpop.f32.mrb[0].mxu0
        %v2762 = vpop.f32.mrb[0].mxu0
        %v2763 = vadd.f32 0.0, %v2762
        %v2764 = vpop.f32.mrb[0].mxu0
        %2765 = vdwg.mxu0
        %v2766 = vmax.f32 %v2535, %v2712
        %v2767 = vmax.f32 %v2538, %v2715
        %v2768 = vmax.f32 %v2543, %v2720
        %v2769 = vmax.f32 %v2546, %v2723
        %v2770 = vmax.f32 %v2551, %v2728
        %v2771 = vmax.f32 %v2554, %v2731
        %v2772 = vmax.f32 %v2559, %v2736
        %v2773 = vmax.f32 %v2562, %v2739
        %v2774 = vmax.f32 %v2567, %v2744
        %v2775 = vmax.f32 %v2570, %v2747
        %v2776 = vmax.f32 %v2575, %v2752
        %v2777 = vmax.f32 %v2578, %v2755
        %v2778 = vmax.f32 %v2583, %v2760
        %v2779 = vmax.f32 %v2586, %v2763
        %v2780 = vpack.c.bf16 %v2767, %v2766
        %v2781 = vpack.c.bf16 %v2769, %v2768
        %v2782 = vpack.c.bf16 %v2771, %v2770
        %v2783 = vpack.c.bf16 %v2773, %v2772
        %v2784 = vpack.c.bf16 %v2775, %v2774
        %v2785 = vpack.c.bf16 %v2777, %v2776
        %v2786 = vpack.c.bf16 %v2779, %v2778
        %v2787 = vld [vmem:[%s4] sm:$0xff]
        %v2788 = vld [vmem:[%s4 + $0x8] sm:$0xff]
        %v2789 = vld [vmem:[%s4 + $0x10] sm:$0xff]
        %v2790 = vld [vmem:[%s4 + $0x18] sm:$0xff]
        %v2791 = vld [vmem:[%s4 + $0x20] sm:$0xff]
        %v2792 = vld [vmem:[%s4 + $0x28] sm:$0xff]
        %v2793 = vld [vmem:[%s4 + $0x30] sm:$0xff]
        %v2794 = vld [vmem:[%s4 + $0x38] sm:$0xff]
        %v2795 = vld [vmem:[%s4 + $0x40] sm:$0xff]
        %v2796 = vld [vmem:[%s4 + $0x48] sm:$0xff]
        %v2797 = vld [vmem:[%s4 + $0x50] sm:$0x33]
        %s2798 = scalar_lea.vmem %s4, 88
        %v2799 = vld [vmem:[%s2798] sm:$0xff]
        %v2800 = vld [vmem:[%s2798 + $0x8] sm:$0xff]
        %v2801 = vld [vmem:[%s2798 + $0x10] sm:$0xff]
        %v2802 = vld [vmem:[%s2798 + $0x18] sm:$0xff]
        %v2803 = vld [vmem:[%s2798 + $0x20] sm:$0xff]
        %v2804 = vld [vmem:[%s2798 + $0x28] sm:$0xff]
        %v2805 = vld [vmem:[%s2798 + $0x30] sm:$0xff]
        %v2806 = vld [vmem:[%s2798 + $0x38] sm:$0xff]
        %v2807 = vld [vmem:[%s2798 + $0x40] sm:$0xff]
        %v2808 = vld [vmem:[%s2798 + $0x48] sm:$0xff]
        %v2809 = vld [vmem:[%s2798 + $0x50] sm:$0x33]
        %vm2816 = vcmask 1043456
        %v2817 = vrot.slane %v2780, 4
        %v2818 = vrot.slane %v2781, 4
        %v2819 = vsel %vm2816, %v2817, %v2818
        %v2820 = vrot.slane %v2782, 4
        %v2821 = vsel %vm2816, %v2818, %v2820
        %v2822 = vrot.slane %v2783, 4
        %v2823 = vsel %vm2816, %v2820, %v2822
        %v2824 = vrot.slane %v2784, 4
        %v2825 = vsel %vm2816, %v2822, %v2824
        %v2826 = vrot.slane %v2785, 4
        %v2827 = vsel %vm2816, %v2824, %v2826
        %v2839 = vunpack.c.l.b16 %v2799
        %v2840 = vunpack.c.h.b16 %v2799
        %v2841 = vunpack.c.l.b16 %v2800
        %v2842 = vunpack.c.h.b16 %v2800
        %v2843 = vunpack.c.l.b16 %v2801
        %v2844 = vunpack.c.h.b16 %v2801
        %v2845 = vunpack.c.l.b16 %v2802
        %v2846 = vunpack.c.h.b16 %v2802
        %v2847 = vunpack.c.l.b16 %v2803
        %v2848 = vunpack.c.h.b16 %v2803
        %v2849 = vunpack.c.l.b16 %v2804
        %v2850 = vunpack.c.h.b16 %v2804
        %v2851 = vunpack.c.l.b16 %v2805
        %v2852 = vunpack.c.h.b16 %v2805
        %v2853 = vunpack.c.l.b16 %v2806
        %v2854 = vunpack.c.h.b16 %v2806
        %v2855 = vunpack.c.l.b16 %v2807
        %v2856 = vunpack.c.h.b16 %v2807
        %v2857 = vunpack.c.l.b16 %v2808
        %v2858 = vunpack.c.h.b16 %v2808
        %v2859 = vunpack.c.l.b16 %v2809
        %v2860 = vunpack.c.h.b16 %v2809
        %v2861 = vpack.c.b16 %v2841, %v2839
        %v2862 = vpack.c.b16 %v2842, %v2840
        %v2863 = vpack.c.b16 %v2845, %v2843
        %v2864 = vpack.c.b16 %v2846, %v2844
        %v2865 = vpack.c.b16 %v2849, %v2847
        %v2866 = vpack.c.b16 %v2850, %v2848
        %v2867 = vpack.c.b16 %v2853, %v2851
        %v2868 = vpack.c.b16 %v2854, %v2852
        %v2869 = vpack.c.b16 %v2857, %v2855
        %v2870 = vpack.c.b16 %v2858, %v2856
        %v2871 = vpack.c.b16 %v2859, %v2859
        %v2872 = vpack.c.b16 %v2860, %v2860
        %vm2883 = vcmask 687104
        %v2885 = vsel %vm2883, %v2819, 0
        %v2888 = vsel %vm2883, %v2821, 0
        %v2891 = vsel %vm2883, %v2823, 0
        %v2894 = vsel %vm2883, %v2825, 0
        %v2897 = vsel %vm2883, %v2827, 0
        %vm2899 = vcmask 1041408
        %v2901 = vsel %vm2899, %v2871, 0
        %v2904 = vsel %vm2899, %v2872, 0
        %2906 = vmatprep.subr.bf16.mxu0 %v2862
        %2907 = vmatpush1.bf16.msra.mxu0 %v2861
        %2908 = vmatprep.subr.bf16.mxu0 %v2864
        %2909 = vmatpush1.bf16.msra.mxu0 %v2863
        %2910 = vmatprep.subr.bf16.mxu0 %v2866
        %2911 = vmatpush1.bf16.msra.mxu0 %v2865
        %2912 = vmatprep.subr.bf16.mxu0 %v2868
        %2913 = vmatpush1.bf16.msra.mxu0 %v2867
        %2914 = vmatprep.subr.bf16.mxu0 %v2870
        %2915 = vmatpush1.bf16.msra.mxu0 %v2869
        %2916 = vmatprep.subr.bf16.mxu0 %v2904
        %2917 = vmatpush1.bf16.msra.mxu0 %v2901
        %2918 = vmatprep.subr.bf16.mxu0 0
        %2919 = vmatpush1.bf16.msra.mxu0 0
        %2920 = vmatprep.subr.bf16.mxu0 0
        %2921 = vmatpush1.bf16.msra.mxu0 0
        %2922 = vmatprep.subr.bf16.mxu0 0
        %2923 = vmatpush1.bf16.msra.mxu0 0
        %2924 = vmatprep.subr.bf16.mxu0 0
        %2925 = vmatpush1.bf16.msra.mxu0 0
        %2926 = vmatprep.subr.bf16.mxu0 0
        %2927 = vmatpush1.bf16.msra.mxu0 0
        %2928 = vmatprep.subr.bf16.mxu0 0
        %2929 = vmatpush1.bf16.msra.mxu0 0
        %2930 = vmatprep.subr.bf16.mxu0 0
        %2931 = vmatpush1.bf16.msra.mxu0 0
        %2932 = vmatprep.subr.bf16.mxu0 0
        %2933 = vmatpush1.bf16.msra.mxu0 0
        %2934 = vmatprep.subr.bf16.mxu0 0
        %2935 = vmatpush1.bf16.msra.mxu0 0
        %2936 = vmatprep.subr.bf16.mxu0 0
        %2937 = vmatpush1.bf16.msra.mxu0 0
        %2938 = vmatprep.mubr.bf16.mxu0 0
        %2939 = vmatmul.mubr.bf16.gmra.mrb[0].mxu0 %v2885
        %v2940 = vpop.f32.mrb[0].mxu0
        %v2941 = vadd.f32 0.0, %v2940
        %v2942 = vpop.f32.mrb[0].mxu0
        %v2943 = vadd.f32 0.0, %v2942
        %v2944 = vpop.f32.mrb[0].mxu0
        %v2945 = vadd.f32 0.0, %v2944
        %v2946 = vpop.f32.mrb[0].mxu0
        %v2947 = vadd.f32 0.0, %v2946
        %2948 = vmatprep.mubr.bf16.mxu0 0
        %2949 = vmatmul.mubr.bf16.gmra.mrb[0].mxu0 %v2888
        %v2950 = vpop.f32.mrb[0].mxu0
        %v2951 = vadd.f32 0.0, %v2950
        %v2952 = vpop.f32.mrb[0].mxu0
        %v2953 = vadd.f32 0.0, %v2952
        %v2954 = vpop.f32.mrb[0].mxu0
        %v2955 = vadd.f32 0.0, %v2954
        %v2956 = vpop.f32.mrb[0].mxu0
        %v2957 = vadd.f32 0.0, %v2956
        %2958 = vmatprep.mubr.bf16.mxu0 0
        %2959 = vmatmul.mubr.bf16.gmra.mrb[0].mxu0 %v2891
        %v2960 = vpop.f32.mrb[0].mxu0
        %v2961 = vadd.f32 0.0, %v2960
        %v2962 = vpop.f32.mrb[0].mxu0
        %v2963 = vadd.f32 0.0, %v2962
        %v2964 = vpop.f32.mrb[0].mxu0
        %v2965 = vadd.f32 0.0, %v2964
        %v2966 = vpop.f32.mrb[0].mxu0
        %v2967 = vadd.f32 0.0, %v2966
        %2968 = vmatprep.mubr.bf16.mxu0 0
        %2969 = vmatmul.mubr.bf16.gmra.mrb[0].mxu0 %v2894
        %v2970 = vpop.f32.mrb[0].mxu0
        %v2971 = vadd.f32 0.0, %v2970
        %v2972 = vpop.f32.mrb[0].mxu0
        %v2973 = vadd.f32 0.0, %v2972
        %v2974 = vpop.f32.mrb[0].mxu0
        %v2975 = vadd.f32 0.0, %v2974
        %v2976 = vpop.f32.mrb[0].mxu0
        %v2977 = vadd.f32 0.0, %v2976
        %2978 = vmatprep.mubr.bf16.mxu0 0
        %2979 = vmatmul.mubr.bf16.gmra.mrb[0].mxu0 %v2897
        %v2980 = vpop.f32.mrb[0].mxu0
        %v2981 = vadd.f32 0.0, %v2980
        %v2982 = vpop.f32.mrb[0].mxu0
        %v2983 = vadd.f32 0.0, %v2982
        %v2984 = vpop.f32.mrb[0].mxu0
        %v2985 = vadd.f32 0.0, %v2984
        %v2986 = vpop.f32.mrb[0].mxu0
        %v2987 = vadd.f32 0.0, %v2986
        %2988 = vdwg.mxu0
        %v3000 = vunpack.c.l.b16 %v2787
        %v3001 = vunpack.c.h.b16 %v2787
        %v3002 = vunpack.c.l.b16 %v2788
        %v3003 = vunpack.c.h.b16 %v2788
        %v3004 = vunpack.c.l.b16 %v2789
        %v3005 = vunpack.c.h.b16 %v2789
        %v3006 = vunpack.c.l.b16 %v2790
        %v3007 = vunpack.c.h.b16 %v2790
        %v3008 = vunpack.c.l.b16 %v2791
        %v3009 = vunpack.c.h.b16 %v2791
        %v3010 = vunpack.c.l.b16 %v2792
        %v3011 = vunpack.c.h.b16 %v2792
        %v3012 = vunpack.c.l.b16 %v2793
        %v3013 = vunpack.c.h.b16 %v2793
        %v3014 = vunpack.c.l.b16 %v2794
        %v3015 = vunpack.c.h.b16 %v2794
        %v3016 = vunpack.c.l.b16 %v2795
        %v3017 = vunpack.c.h.b16 %v2795
        %v3018 = vunpack.c.l.b16 %v2796
        %v3019 = vunpack.c.h.b16 %v2796
        %v3020 = vunpack.c.l.b16 %v2797
        %v3021 = vunpack.c.h.b16 %v2797
        %v3022 = vpack.c.b16 %v3002, %v3000
        %v3023 = vpack.c.b16 %v3003, %v3001
        %v3024 = vpack.c.b16 %v3006, %v3004
        %v3025 = vpack.c.b16 %v3007, %v3005
        %v3026 = vpack.c.b16 %v3010, %v3008
        %v3027 = vpack.c.b16 %v3011, %v3009
        %v3028 = vpack.c.b16 %v3014, %v3012
        %v3029 = vpack.c.b16 %v3015, %v3013
        %v3030 = vpack.c.b16 %v3018, %v3016
        %v3031 = vpack.c.b16 %v3019, %v3017
        %v3032 = vpack.c.b16 %v3020, %v3020
        %v3033 = vpack.c.b16 %v3021, %v3021
        %v3045 = vsel %vm2883, %v2780, 0
        %v3048 = vsel %vm2883, %v2781, 0
        %v3051 = vsel %vm2883, %v2782, 0
        %v3054 = vsel %vm2883, %v2783, 0
        %v3057 = vsel %vm2883, %v2784, 0
        %v3060 = vsel %vm2899, %v3032, 0
        %v3063 = vsel %vm2899, %v3033, 0
        %3065 = vmatprep.subr.bf16.mxu0 %v3023
        %3066 = vmatpush1.bf16.msra.mxu0 %v3022
        %3067 = vmatprep.subr.bf16.mxu0 %v3025
        %3068 = vmatpush1.bf16.msra.mxu0 %v3024
        %3069 = vmatprep.subr.bf16.mxu0 %v3027
        %3070 = vmatpush1.bf16.msra.mxu0 %v3026
        %3071 = vmatprep.subr.bf16.mxu0 %v3029
        %3072 = vmatpush1.bf16.msra.mxu0 %v3028
        %3073 = vmatprep.subr.bf16.mxu0 %v3031
        %3074 = vmatpush1.bf16.msra.mxu0 %v3030
        %3075 = vmatprep.subr.bf16.mxu0 %v3063
        %3076 = vmatpush1.bf16.msra.mxu0 %v3060
        %3077 = vmatprep.subr.bf16.mxu0 0
        %3078 = vmatpush1.bf16.msra.mxu0 0
        %3079 = vmatprep.subr.bf16.mxu0 0
        %3080 = vmatpush1.bf16.msra.mxu0 0
        %3081 = vmatprep.subr.bf16.mxu0 0
        %3082 = vmatpush1.bf16.msra.mxu0 0
        %3083 = vmatprep.subr.bf16.mxu0 0
        %3084 = vmatpush1.bf16.msra.mxu0 0
        %3085 = vmatprep.subr.bf16.mxu0 0
        %3086 = vmatpush1.bf16.msra.mxu0 0
        %3087 = vmatprep.subr.bf16.mxu0 0
        %3088 = vmatpush1.bf16.msra.mxu0 0
        %3089 = vmatprep.subr.bf16.mxu0 0
        %3090 = vmatpush1.bf16.msra.mxu0 0
        %3091 = vmatprep.subr.bf16.mxu0 0
        %3092 = vmatpush1.bf16.msra.mxu0 0
        %3093 = vmatprep.subr.bf16.mxu0 0
        %3094 = vmatpush1.bf16.msra.mxu0 0
        %3095 = vmatprep.subr.bf16.mxu0 0
        %3096 = vmatpush1.bf16.msra.mxu0 0
        %3097 = vmatprep.mubr.bf16.mxu0 0
        %3098 = vmatmul.mubr.bf16.gmra.mrb[0].mxu0 %v3045
        %v3099 = vpop.f32.mrb[0].mxu0
        %v3100 = vadd.f32 %v2941, %v3099
        %v3101 = vpop.f32.mrb[0].mxu0
        %v3102 = vadd.f32 %v2943, %v3101
        %v3103 = vpop.f32.mrb[0].mxu0
        %v3104 = vadd.f32 %v2945, %v3103
        %v3105 = vpop.f32.mrb[0].mxu0
        %v3106 = vadd.f32 %v2947, %v3105
        %3107 = vmatprep.mubr.bf16.mxu0 0
        %3108 = vmatmul.mubr.bf16.gmra.mrb[0].mxu0 %v3048
        %v3109 = vpop.f32.mrb[0].mxu0
        %v3110 = vadd.f32 %v2951, %v3109
        %v3111 = vpop.f32.mrb[0].mxu0
        %v3112 = vadd.f32 %v2953, %v3111
        %v3113 = vpop.f32.mrb[0].mxu0
        %v3114 = vadd.f32 %v2955, %v3113
        %v3115 = vpop.f32.mrb[0].mxu0
        %v3116 = vadd.f32 %v2957, %v3115
        %3117 = vmatprep.mubr.bf16.mxu0 0
        %3118 = vmatmul.mubr.bf16.gmra.mrb[0].mxu0 %v3051
        %v3119 = vpop.f32.mrb[0].mxu0
        %v3120 = vadd.f32 %v2961, %v3119
        %v3121 = vpop.f32.mrb[0].mxu0
        %v3122 = vadd.f32 %v2963, %v3121
        %v3123 = vpop.f32.mrb[0].mxu0
        %v3124 = vadd.f32 %v2965, %v3123
        %v3125 = vpop.f32.mrb[0].mxu0
        %v3126 = vadd.f32 %v2967, %v3125
        %3127 = vmatprep.mubr.bf16.mxu0 0
        %3128 = vmatmul.mubr.bf16.gmra.mrb[0].mxu0 %v3054
        %v3129 = vpop.f32.mrb[0].mxu0
        %v3130 = vadd.f32 %v2971, %v3129
        %v3131 = vpop.f32.mrb[0].mxu0
        %v3132 = vadd.f32 %v2973, %v3131
        %v3133 = vpop.f32.mrb[0].mxu0
        %v3134 = vadd.f32 %v2975, %v3133
        %v3135 = vpop.f32.mrb[0].mxu0
        %v3136 = vadd.f32 %v2977, %v3135
        %3137 = vmatprep.mubr.bf16.mxu0 0
        %3138 = vmatmul.mubr.bf16.gmra.mrb[0].mxu0 %v3057
        %v3139 = vpop.f32.mrb[0].mxu0
        %v3140 = vadd.f32 %v2981, %v3139
        %v3141 = vpop.f32.mrb[0].mxu0
        %v3142 = vadd.f32 %v2983, %v3141
        %v3143 = vpop.f32.mrb[0].mxu0
        %v3144 = vadd.f32 %v2985, %v3143
        %v3145 = vpop.f32.mrb[0].mxu0
        %v3146 = vadd.f32 %v2987, %v3145
        %3147 = vdwg.mxu0
        %s3148 = scalar_lea.vmem %s4, 176
        %v3149 = vld [vmem:[%s3148] sm:$0xff]
        %v3150 = vld [vmem:[%s3148 + $0x8] sm:$0xff]
        %v3151 = vld [vmem:[%s3148 + $0x10] sm:$0xff]
        %v3152 = vld [vmem:[%s3148 + $0x18] sm:$0xff]
        %v3153 = vld [vmem:[%s3148 + $0x20] sm:$0xff]
        %v3154 = vld [vmem:[%s3148 + $0x28] sm:$0xff]
        %v3155 = vld [vmem:[%s3148 + $0x30] sm:$0xff]
        %v3156 = vld [vmem:[%s3148 + $0x38] sm:$0xff]
        %v3157 = vld [vmem:[%s3148 + $0x40] sm:$0xff]
        %v3158 = vld [vmem:[%s3148 + $0x48] sm:$0xff]
        %v3159 = vld [vmem:[%s3148 + $0x50] sm:$0x33]
        %v3171 = vunpack.c.l.b16 %v3149
        %v3172 = vunpack.c.h.b16 %v3149
        %v3173 = vunpack.c.l.b16 %v3150
        %v3174 = vunpack.c.h.b16 %v3150
        %v3175 = vunpack.c.l.b16 %v3151
        %v3176 = vunpack.c.h.b16 %v3151
        %v3177 = vunpack.c.l.b16 %v3152
        %v3178 = vunpack.c.h.b16 %v3152
        %v3179 = vunpack.c.l.b16 %v3153
        %v3180 = vunpack.c.h.b16 %v3153
        %v3181 = vunpack.c.l.b16 %v3154
        %v3182 = vunpack.c.h.b16 %v3154
        %v3183 = vunpack.c.l.b16 %v3155
        %v3184 = vunpack.c.h.b16 %v3155
        %v3185 = vunpack.c.l.b16 %v3156
        %v3186 = vunpack.c.h.b16 %v3156
        %v3187 = vunpack.c.l.b16 %v3157
        %v3188 = vunpack.c.h.b16 %v3157
        %v3189 = vunpack.c.l.b16 %v3158
        %v3190 = vunpack.c.h.b16 %v3158
        %v3191 = vunpack.c.l.b16 %v3159
        %v3192 = vunpack.c.h.b16 %v3159
        %v3193 = vpack.c.b16 %v3173, %v3171
        %v3194 = vpack.c.b16 %v3174, %v3172
        %v3195 = vpack.c.b16 %v3177, %v3175
        %v3196 = vpack.c.b16 %v3178, %v3176
        %v3197 = vpack.c.b16 %v3181, %v3179
        %v3198 = vpack.c.b16 %v3182, %v3180
        %v3199 = vpack.c.b16 %v3185, %v3183
        %v3200 = vpack.c.b16 %v3186, %v3184
        %v3201 = vpack.c.b16 %v3189, %v3187
        %v3202 = vpack.c.b16 %v3190, %v3188
        %v3203 = vpack.c.b16 %v3191, %v3191
        %v3204 = vpack.c.b16 %v3192, %v3192
        %v3216 = vsel %vm2883, %v2785, 0
        %v3219 = vsel %vm2899, %v3203, 0
        %v3222 = vsel %vm2899, %v3204, 0
        %3224 = vmatprep.subr.bf16.mxu0 %v3194
        %3225 = vmatpush1.bf16.msra.mxu0 %v3193
        %3226 = vmatprep.subr.bf16.mxu0 %v3196
        %3227 = vmatpush1.bf16.msra.mxu0 %v3195
        %3228 = vmatprep.subr.bf16.mxu0 %v3198
        %3229 = vmatpush1.bf16.msra.mxu0 %v3197
        %3230 = vmatprep.subr.bf16.mxu0 %v3200
        %3231 = vmatpush1.bf16.msra.mxu0 %v3199
        %3232 = vmatprep.subr.bf16.mxu0 %v3202
        %3233 = vmatpush1.bf16.msra.mxu0 %v3201
        %3234 = vmatprep.subr.bf16.mxu0 %v3222
        %3235 = vmatpush1.bf16.msra.mxu0 %v3219
        %3236 = vmatprep.subr.bf16.mxu0 0
        %3237 = vmatpush1.bf16.msra.mxu0 0
        %3238 = vmatprep.subr.bf16.mxu0 0
        %3239 = vmatpush1.bf16.msra.mxu0 0
        %3240 = vmatprep.subr.bf16.mxu0 0
        %3241 = vmatpush1.bf16.msra.mxu0 0
        %3242 = vmatprep.subr.bf16.mxu0 0
        %3243 = vmatpush1.bf16.msra.mxu0 0
        %3244 = vmatprep.subr.bf16.mxu0 0
        %3245 = vmatpush1.bf16.msra.mxu0 0
        %3246 = vmatprep.subr.bf16.mxu0 0
        %3247 = vmatpush1.bf16.msra.mxu0 0
        %3248 = vmatprep.subr.bf16.mxu0 0
        %3249 = vmatpush1.bf16.msra.mxu0 0
        %3250 = vmatprep.subr.bf16.mxu0 0
        %3251 = vmatpush1.bf16.msra.mxu0 0
        %3252 = vmatprep.subr.bf16.mxu0 0
        %3253 = vmatpush1.bf16.msra.mxu0 0
        %3254 = vmatprep.subr.bf16.mxu0 0
        %3255 = vmatpush1.bf16.msra.mxu0 0
        %3256 = vmatprep.mubr.bf16.mxu0 0
        %3257 = vmatmul.mubr.bf16.gmra.mrb[0].mxu0 %v3048
        %v3258 = vpop.f32.mrb[0].mxu0
        %v3259 = vadd.f32 0.0, %v3258
        %v3260 = vpop.f32.mrb[0].mxu0
        %v3261 = vadd.f32 0.0, %v3260
        %v3262 = vpop.f32.mrb[0].mxu0
        %v3263 = vadd.f32 0.0, %v3262
        %v3264 = vpop.f32.mrb[0].mxu0
        %v3265 = vadd.f32 0.0, %v3264
        %3266 = vmatprep.mubr.bf16.mxu0 0
        %3267 = vmatmul.mubr.bf16.gmra.mrb[0].mxu0 %v3051
        %v3268 = vpop.f32.mrb[0].mxu0
        %v3269 = vadd.f32 0.0, %v3268
        %v3270 = vpop.f32.mrb[0].mxu0
        %v3271 = vadd.f32 0.0, %v3270
        %v3272 = vpop.f32.mrb[0].mxu0
        %v3273 = vadd.f32 0.0, %v3272
        %v3274 = vpop.f32.mrb[0].mxu0
        %v3275 = vadd.f32 0.0, %v3274
        %3276 = vmatprep.mubr.bf16.mxu0 0
        %3277 = vmatmul.mubr.bf16.gmra.mrb[0].mxu0 %v3054
        %v3278 = vpop.f32.mrb[0].mxu0
        %v3279 = vadd.f32 0.0, %v3278
        %v3280 = vpop.f32.mrb[0].mxu0
        %v3281 = vadd.f32 0.0, %v3280
        %v3282 = vpop.f32.mrb[0].mxu0
        %v3283 = vadd.f32 0.0, %v3282
        %v3284 = vpop.f32.mrb[0].mxu0
        %v3285 = vadd.f32 0.0, %v3284
        %3286 = vmatprep.mubr.bf16.mxu0 0
        %3287 = vmatmul.mubr.bf16.gmra.mrb[0].mxu0 %v3057
        %v3288 = vpop.f32.mrb[0].mxu0
        %v3289 = vadd.f32 0.0, %v3288
        %v3290 = vpop.f32.mrb[0].mxu0
        %v3291 = vadd.f32 0.0, %v3290
        %v3292 = vpop.f32.mrb[0].mxu0
        %v3293 = vadd.f32 0.0, %v3292
        %v3294 = vpop.f32.mrb[0].mxu0
        %v3295 = vadd.f32 0.0, %v3294
        %3296 = vmatprep.mubr.bf16.mxu0 0
        %3297 = vmatmul.mubr.bf16.gmra.mrb[0].mxu0 %v3216
        %v3298 = vpop.f32.mrb[0].mxu0
        %v3299 = vadd.f32 0.0, %v3298
        %v3300 = vpop.f32.mrb[0].mxu0
        %v3301 = vadd.f32 0.0, %v3300
        %v3302 = vpop.f32.mrb[0].mxu0
        %v3303 = vadd.f32 0.0, %v3302
        %v3304 = vpop.f32.mrb[0].mxu0
        %v3305 = vadd.f32 0.0, %v3304
        %3306 = vdwg.mxu0
        %v3307 = vadd.f32 %v3100, %v3259
        %v3308 = vadd.f32 %v3102, %v3261
        %v3309 = vadd.f32 %v3104, %v3263
        %v3310 = vadd.f32 %v3106, %v3265
        %v3311 = vadd.f32 %v3110, %v3269
        %v3312 = vadd.f32 %v3112, %v3271
        %v3313 = vadd.f32 %v3114, %v3273
        %v3314 = vadd.f32 %v3116, %v3275
        %v3315 = vadd.f32 %v3120, %v3279
        %v3316 = vadd.f32 %v3122, %v3281
        %v3317 = vadd.f32 %v3124, %v3283
        %v3318 = vadd.f32 %v3126, %v3285
        %v3319 = vadd.f32 %v3130, %v3289
        %v3320 = vadd.f32 %v3132, %v3291
        %v3321 = vadd.f32 %v3134, %v3293
        %v3322 = vadd.f32 %v3136, %v3295
        %v3323 = vadd.f32 %v3140, %v3299
        %v3324 = vadd.f32 %v3142, %v3301
        %v3325 = vadd.f32 %v3144, %v3303
        %v3326 = vadd.f32 %v3146, %v3305
        %s3327 = scalar_lea.vmem %s4, 264
        %v3328 = vld [vmem:[%s3327] sm:$0xff]
        %v3329 = vld [vmem:[%s3327 + $0x8] sm:$0xff]
        %v3330 = vld [vmem:[%s3327 + $0x10] sm:$0xff]
        %v3331 = vld [vmem:[%s3327 + $0x18] sm:$0xff]
        %v3332 = vld [vmem:[%s3327 + $0x20] sm:$0xff]
        %v3333 = vld [vmem:[%s3327 + $0x28] sm:$0xff]
        %v3334 = vld [vmem:[%s3327 + $0x30] sm:$0xff]
        %v3335 = vld [vmem:[%s3327 + $0x38] sm:$0xff]
        %v3336 = vld [vmem:[%s3327 + $0x40] sm:$0xff]
        %v3337 = vld [vmem:[%s3327 + $0x48] sm:$0xff]
        %v3338 = vld [vmem:[%s3327 + $0x50] sm:$0x33]
        %v3340 = vrot.slane %v2786, 4
        %v3341 = vsel %vm2816, %v2826, %v3340
        %v3353 = vunpack.c.l.b16 %v3328
        %v3354 = vunpack.c.h.b16 %v3328
        %v3355 = vunpack.c.l.b16 %v3329
        %v3356 = vunpack.c.h.b16 %v3329
        %v3357 = vunpack.c.l.b16 %v3330
        %v3358 = vunpack.c.h.b16 %v3330
        %v3359 = vunpack.c.l.b16 %v3331
        %v3360 = vunpack.c.h.b16 %v3331
        %v3361 = vunpack.c.l.b16 %v3332
        %v3362 = vunpack.c.h.b16 %v3332
        %v3363 = vunpack.c.l.b16 %v3333
        %v3364 = vunpack.c.h.b16 %v3333
        %v3365 = vunpack.c.l.b16 %v3334
        %v3366 = vunpack.c.h.b16 %v3334
        %v3367 = vunpack.c.l.b16 %v3335
        %v3368 = vunpack.c.h.b16 %v3335
        %v3369 = vunpack.c.l.b16 %v3336
        %v3370 = vunpack.c.h.b16 %v3336
        %v3371 = vunpack.c.l.b16 %v3337
        %v3372 = vunpack.c.h.b16 %v3337
        %v3373 = vunpack.c.l.b16 %v3338
        %v3374 = vunpack.c.h.b16 %v3338
        %v3375 = vpack.c.b16 %v3355, %v3353
        %v3376 = vpack.c.b16 %v3356, %v3354
        %v3377 = vpack.c.b16 %v3359, %v3357
        %v3378 = vpack.c.b16 %v3360, %v3358
        %v3379 = vpack.c.b16 %v3363, %v3361
        %v3380 = vpack.c.b16 %v3364, %v3362
        %v3381 = vpack.c.b16 %v3367, %v3365
        %v3382 = vpack.c.b16 %v3368, %v3366
        %v3383 = vpack.c.b16 %v3371, %v3369
        %v3384 = vpack.c.b16 %v3372, %v3370
        %v3385 = vpack.c.b16 %v3373, %v3373
        %v3386 = vpack.c.b16 %v3374, %v3374
        %v3398 = vsel %vm2883, %v3341, 0
        %v3401 = vsel %vm2899, %v3385, 0
        %v3404 = vsel %vm2899, %v3386, 0
        %3406 = vmatprep.subr.bf16.mxu0 %v3376
        %3407 = vmatpush1.bf16.msra.mxu0 %v3375
        %3408 = vmatprep.subr.bf16.mxu0 %v3378
        %3409 = vmatpush1.bf16.msra.mxu0 %v3377
        %3410 = vmatprep.subr.bf16.mxu0 %v3380
        %3411 = vmatpush1.bf16.msra.mxu0 %v3379
        %3412 = vmatprep.subr.bf16.mxu0 %v3382
        %3413 = vmatpush1.bf16.msra.mxu0 %v3381
        %3414 = vmatprep.subr.bf16.mxu0 %v3384
        %3415 = vmatpush1.bf16.msra.mxu0 %v3383
        %3416 = vmatprep.subr.bf16.mxu0 %v3404
        %3417 = vmatpush1.bf16.msra.mxu0 %v3401
        %3418 = vmatprep.subr.bf16.mxu0 0
        %3419 = vmatpush1.bf16.msra.mxu0 0
        %3420 = vmatprep.subr.bf16.mxu0 0
        %3421 = vmatpush1.bf16.msra.mxu0 0
        %3422 = vmatprep.subr.bf16.mxu0 0
        %3423 = vmatpush1.bf16.msra.mxu0 0
        %3424 = vmatprep.subr.bf16.mxu0 0
        %3425 = vmatpush1.bf16.msra.mxu0 0
        %3426 = vmatprep.subr.bf16.mxu0 0
        %3427 = vmatpush1.bf16.msra.mxu0 0
        %3428 = vmatprep.subr.bf16.mxu0 0
        %3429 = vmatpush1.bf16.msra.mxu0 0
        %3430 = vmatprep.subr.bf16.mxu0 0
        %3431 = vmatpush1.bf16.msra.mxu0 0
        %3432 = vmatprep.subr.bf16.mxu0 0
        %3433 = vmatpush1.bf16.msra.mxu0 0
        %3434 = vmatprep.subr.bf16.mxu0 0
        %3435 = vmatpush1.bf16.msra.mxu0 0
        %3436 = vmatprep.subr.bf16.mxu0 0
        %3437 = vmatpush1.bf16.msra.mxu0 0
        %3438 = vmatprep.mubr.bf16.mxu0 0
        %3439 = vmatmul.mubr.bf16.gmra.mrb[0].mxu0 %v2888
        %v3440 = vpop.f32.mrb[0].mxu0
        %v3441 = vadd.f32 0.0, %v3440
        %v3442 = vpop.f32.mrb[0].mxu0
        %v3443 = vadd.f32 0.0, %v3442
        %v3444 = vpop.f32.mrb[0].mxu0
        %v3445 = vadd.f32 0.0, %v3444
        %v3446 = vpop.f32.mrb[0].mxu0
        %v3447 = vadd.f32 0.0, %v3446
        %3448 = vmatprep.mubr.bf16.mxu0 0
        %3449 = vmatmul.mubr.bf16.gmra.mrb[0].mxu0 %v2891
        %v3450 = vpop.f32.mrb[0].mxu0
        %v3451 = vadd.f32 0.0, %v3450
        %v3452 = vpop.f32.mrb[0].mxu0
        %v3453 = vadd.f32 0.0, %v3452
        %v3454 = vpop.f32.mrb[0].mxu0
        %v3455 = vadd.f32 0.0, %v3454
        %v3456 = vpop.f32.mrb[0].mxu0
        %v3457 = vadd.f32 0.0, %v3456
        %3458 = vmatprep.mubr.bf16.mxu0 0
        %3459 = vmatmul.mubr.bf16.gmra.mrb[0].mxu0 %v2894
        %v3460 = vpop.f32.mrb[0].mxu0
        %v3461 = vadd.f32 0.0, %v3460
        %v3462 = vpop.f32.mrb[0].mxu0
        %v3463 = vadd.f32 0.0, %v3462
        %v3464 = vpop.f32.mrb[0].mxu0
        %v3465 = vadd.f32 0.0, %v3464
        %v3466 = vpop.f32.mrb[0].mxu0
        %v3467 = vadd.f32 0.0, %v3466
        %3468 = vmatprep.mubr.bf16.mxu0 0
        %3469 = vmatmul.mubr.bf16.gmra.mrb[0].mxu0 %v2897
        %v3470 = vpop.f32.mrb[0].mxu0
        %v3471 = vadd.f32 0.0, %v3470
        %v3472 = vpop.f32.mrb[0].mxu0
        %v3473 = vadd.f32 0.0, %v3472
        %v3474 = vpop.f32.mrb[0].mxu0
        %v3475 = vadd.f32 0.0, %v3474
        %v3476 = vpop.f32.mrb[0].mxu0
        %v3477 = vadd.f32 0.0, %v3476
        %3478 = vmatprep.mubr.bf16.mxu0 0
        %3479 = vmatmul.mubr.bf16.gmra.mrb[0].mxu0 %v3398
        %v3480 = vpop.f32.mrb[0].mxu0
        %v3481 = vadd.f32 0.0, %v3480
        %v3482 = vpop.f32.mrb[0].mxu0
        %v3483 = vadd.f32 0.0, %v3482
        %v3484 = vpop.f32.mrb[0].mxu0
        %v3485 = vadd.f32 0.0, %v3484
        %v3486 = vpop.f32.mrb[0].mxu0
        %v3487 = vadd.f32 0.0, %v3486
        %3488 = vdwg.mxu0
        %v3489 = vadd.f32 %v3307, %v3441
        %v3490 = vadd.f32 %v3308, %v3443
        %v3491 = vadd.f32 %v3309, %v3445
        %v3492 = vadd.f32 %v3310, %v3447
        %v3493 = vadd.f32 %v3311, %v3451
        %v3494 = vadd.f32 %v3312, %v3453
        %v3495 = vadd.f32 %v3313, %v3455
        %v3496 = vadd.f32 %v3314, %v3457
        %v3497 = vadd.f32 %v3315, %v3461
        %v3498 = vadd.f32 %v3316, %v3463
        %v3499 = vadd.f32 %v3317, %v3465
        %v3500 = vadd.f32 %v3318, %v3467
        %v3501 = vadd.f32 %v3319, %v3471
        %v3502 = vadd.f32 %v3320, %v3473
        %v3503 = vadd.f32 %v3321, %v3475
        %v3504 = vadd.f32 %v3322, %v3477
        %v3505 = vadd.f32 %v3323, %v3481
        %v3506 = vadd.f32 %v3324, %v3483
        %v3507 = vadd.f32 %v3325, %v3485
        %v3508 = vadd.f32 %v3326, %v3487
        %s3509 = scalar_lea.vmem %s4, 352
        %v3510 = vld [vmem:[%s3509] sm:$0xff]
        %v3511 = vld [vmem:[%s3509 + $0x8] sm:$0xff]
        %v3512 = vld [vmem:[%s3509 + $0x10] sm:$0xff]
        %v3513 = vld [vmem:[%s3509 + $0x18] sm:$0xff]
        %v3514 = vld [vmem:[%s3509 + $0x20] sm:$0xff]
        %v3515 = vld [vmem:[%s3509 + $0x28] sm:$0xff]
        %v3516 = vld [vmem:[%s3509 + $0x30] sm:$0xff]
        %v3517 = vld [vmem:[%s3509 + $0x38] sm:$0xff]
        %v3518 = vld [vmem:[%s3509 + $0x40] sm:$0xff]
        %v3519 = vld [vmem:[%s3509 + $0x48] sm:$0xff]
        %v3520 = vld [vmem:[%s3509 + $0x50] sm:$0x33]
        %v3532 = vunpack.c.l.b16 %v3510
        %v3533 = vunpack.c.h.b16 %v3510
        %v3534 = vunpack.c.l.b16 %v3511
        %v3535 = vunpack.c.h.b16 %v3511
        %v3536 = vunpack.c.l.b16 %v3512
        %v3537 = vunpack.c.h.b16 %v3512
        %v3538 = vunpack.c.l.b16 %v3513
        %v3539 = vunpack.c.h.b16 %v3513
        %v3540 = vunpack.c.l.b16 %v3514
        %v3541 = vunpack.c.h.b16 %v3514
        %v3542 = vunpack.c.l.b16 %v3515
        %v3543 = vunpack.c.h.b16 %v3515
        %v3544 = vunpack.c.l.b16 %v3516
        %v3545 = vunpack.c.h.b16 %v3516
        %v3546 = vunpack.c.l.b16 %v3517
        %v3547 = vunpack.c.h.b16 %v3517
        %v3548 = vunpack.c.l.b16 %v3518
        %v3549 = vunpack.c.h.b16 %v3518
        %v3550 = vunpack.c.l.b16 %v3519
        %v3551 = vunpack.c.h.b16 %v3519
        %v3552 = vunpack.c.l.b16 %v3520
        %v3553 = vunpack.c.h.b16 %v3520
        %v3554 = vpack.c.b16 %v3534, %v3532
        %v3555 = vpack.c.b16 %v3535, %v3533
        %v3556 = vpack.c.b16 %v3538, %v3536
        %v3557 = vpack.c.b16 %v3539, %v3537
        %v3558 = vpack.c.b16 %v3542, %v3540
        %v3559 = vpack.c.b16 %v3543, %v3541
        %v3560 = vpack.c.b16 %v3546, %v3544
        %v3561 = vpack.c.b16 %v3547, %v3545
        %v3562 = vpack.c.b16 %v3550, %v3548
        %v3563 = vpack.c.b16 %v3551, %v3549
        %v3564 = vpack.c.b16 %v3552, %v3552
        %v3565 = vpack.c.b16 %v3553, %v3553
        %v3577 = vsel %vm2883, %v2786, 0
        %v3580 = vsel %vm2899, %v3564, 0
        %v3583 = vsel %vm2899, %v3565, 0
        %3585 = vmatprep.subr.bf16.mxu0 %v3555
        %3586 = vmatpush1.bf16.msra.mxu0 %v3554
        %3587 = vmatprep.subr.bf16.mxu0 %v3557
        %3588 = vmatpush1.bf16.msra.mxu0 %v3556
        %3589 = vmatprep.subr.bf16.mxu0 %v3559
        %3590 = vmatpush1.bf16.msra.mxu0 %v3558
        %3591 = vmatprep.subr.bf16.mxu0 %v3561
        %3592 = vmatpush1.bf16.msra.mxu0 %v3560
        %3593 = vmatprep.subr.bf16.mxu0 %v3563
        %3594 = vmatpush1.bf16.msra.mxu0 %v3562
        %3595 = vmatprep.subr.bf16.mxu0 %v3583
        %3596 = vmatpush1.bf16.msra.mxu0 %v3580
        %3597 = vmatprep.subr.bf16.mxu0 0
        %3598 = vmatpush1.bf16.msra.mxu0 0
        %3599 = vmatprep.subr.bf16.mxu0 0
        %3600 = vmatpush1.bf16.msra.mxu0 0
        %3601 = vmatprep.subr.bf16.mxu0 0
        %3602 = vmatpush1.bf16.msra.mxu0 0
        %3603 = vmatprep.subr.bf16.mxu0 0
        %3604 = vmatpush1.bf16.msra.mxu0 0
        %3605 = vmatprep.subr.bf16.mxu0 0
        %3606 = vmatpush1.bf16.msra.mxu0 0
        %3607 = vmatprep.subr.bf16.mxu0 0
        %3608 = vmatpush1.bf16.msra.mxu0 0
        %3609 = vmatprep.subr.bf16.mxu0 0
        %3610 = vmatpush1.bf16.msra.mxu0 0
        %3611 = vmatprep.subr.bf16.mxu0 0
        %3612 = vmatpush1.bf16.msra.mxu0 0
        %3613 = vmatprep.subr.bf16.mxu0 0
        %3614 = vmatpush1.bf16.msra.mxu0 0
        %3615 = vmatprep.subr.bf16.mxu0 0
        %3616 = vmatpush1.bf16.msra.mxu0 0
        %3617 = vmatprep.mubr.bf16.mxu0 0
        %3618 = vmatmul.mubr.bf16.gmra.mrb[0].mxu0 %v3051
        %v3619 = vpop.f32.mrb[0].mxu0
        %v3620 = vadd.f32 0.0, %v3619
        %v3621 = vpop.f32.mrb[0].mxu0
        %v3622 = vadd.f32 0.0, %v3621
        %v3623 = vpop.f32.mrb[0].mxu0
        %v3624 = vadd.f32 0.0, %v3623
        %v3625 = vpop.f32.mrb[0].mxu0
        %v3626 = vadd.f32 0.0, %v3625
        %3627 = vmatprep.mubr.bf16.mxu0 0
        %3628 = vmatmul.mubr.bf16.gmra.mrb[0].mxu0 %v3054
        %v3629 = vpop.f32.mrb[0].mxu0
        %v3630 = vadd.f32 0.0, %v3629
        %v3631 = vpop.f32.mrb[0].mxu0
        %v3632 = vadd.f32 0.0, %v3631
        %v3633 = vpop.f32.mrb[0].mxu0
        %v3634 = vadd.f32 0.0, %v3633
        %v3635 = vpop.f32.mrb[0].mxu0
        %v3636 = vadd.f32 0.0, %v3635
        %3637 = vmatprep.mubr.bf16.mxu0 0
        %3638 = vmatmul.mubr.bf16.gmra.mrb[0].mxu0 %v3057
        %v3639 = vpop.f32.mrb[0].mxu0
        %v3640 = vadd.f32 0.0, %v3639
        %v3641 = vpop.f32.mrb[0].mxu0
        %v3642 = vadd.f32 0.0, %v3641
        %v3643 = vpop.f32.mrb[0].mxu0
        %v3644 = vadd.f32 0.0, %v3643
        %v3645 = vpop.f32.mrb[0].mxu0
        %v3646 = vadd.f32 0.0, %v3645
        %3647 = vmatprep.mubr.bf16.mxu0 0
        %3648 = vmatmul.mubr.bf16.gmra.mrb[0].mxu0 %v3216
        %v3649 = vpop.f32.mrb[0].mxu0
        %v3650 = vadd.f32 0.0, %v3649
        %v3651 = vpop.f32.mrb[0].mxu0
        %v3652 = vadd.f32 0.0, %v3651
        %v3653 = vpop.f32.mrb[0].mxu0
        %v3654 = vadd.f32 0.0, %v3653
        %v3655 = vpop.f32.mrb[0].mxu0
        %v3656 = vadd.f32 0.0, %v3655
        %3657 = vmatprep.mubr.bf16.mxu0 0
        %3658 = vmatmul.mubr.bf16.gmra.mrb[0].mxu0 %v3577
        %v3659 = vpop.f32.mrb[0].mxu0
        %v3660 = vadd.f32 0.0, %v3659
        %v3661 = vpop.f32.mrb[0].mxu0
        %v3662 = vadd.f32 0.0, %v3661
        %v3663 = vpop.f32.mrb[0].mxu0
        %v3664 = vadd.f32 0.0, %v3663
        %v3665 = vpop.f32.mrb[0].mxu0
        %v3666 = vadd.f32 0.0, %v3665
        %3667 = vdwg.mxu0
        %v3668 = vadd.f32 %v3489, %v3620
        %v3669 = vadd.f32 %v3490, %v3622
        %v3670 = vadd.f32 %v3491, %v3624
        %v3671 = vadd.f32 %v3492, %v3626
        %v3672 = vadd.f32 %v3493, %v3630
        %v3673 = vadd.f32 %v3494, %v3632
        %v3674 = vadd.f32 %v3495, %v3634
        %v3675 = vadd.f32 %v3496, %v3636
        %v3676 = vadd.f32 %v3497, %v3640
        %v3677 = vadd.f32 %v3498, %v3642
        %v3678 = vadd.f32 %v3499, %v3644
        %v3679 = vadd.f32 %v3500, %v3646
        %v3680 = vadd.f32 %v3501, %v3650
        %v3681 = vadd.f32 %v3502, %v3652
        %v3682 = vadd.f32 %v3503, %v3654
        %v3683 = vadd.f32 %v3504, %v3656
        %v3684 = vadd.f32 %v3505, %v3660
        %v3685 = vadd.f32 %v3506, %v3662
        %v3686 = vadd.f32 %v3507, %v3664
        %v3687 = vadd.f32 %v3508, %v3666
        %v3688 = vmax.f32 %v3668, %v3670
        %v3689 = vmax.f32 %v3669, %v3671
        %v3690 = vmax.f32 %v3672, %v3674
        %v3691 = vmax.f32 %v3673, %v3675
        %v3692 = vmax.f32 %v3676, %v3678
        %v3693 = vmax.f32 %v3677, %v3679
        %v3694 = vmax.f32 %v3680, %v3682
        %v3695 = vmax.f32 %v3681, %v3683
        %v3696 = vmax.f32 %v3684, %v3686
        %v3697 = vmax.f32 %v3685, %v3687
        %v3698 = vld [vmem:[%s5] sm:$0x3]
        %v3700 = vlaneseq
        %v3701 = vshrl.u32 %v3700, 7
        %v3702 = vsub.s32 0, %v3701
        %v3703 = vrot.slane %v3698, %v3702
        %v3704 = vlaneseq
        %v3705 = vshrl.u32 %v3704, 7
        %v3706 = vsub.s32 1, %v3705
        %v3707 = vrot.slane %v3698, %v3706
        %v3710 = vadd.f32 %v3688, %v3703
        %v3711 = vadd.f32 %v3689, %v3707
        %v3712 = vadd.f32 %v3690, %v3703
        %v3713 = vadd.f32 %v3691, %v3707
        %v3714 = vadd.f32 %v3692, %v3703
        %v3715 = vadd.f32 %v3693, %v3707
        %v3716 = vadd.f32 %v3694, %v3703
        %v3717 = vadd.f32 %v3695, %v3707
        %v3718 = vadd.f32 %v3696, %v3703
        %v3719 = vadd.f32 %v3697, %v3707
        %v3720 = vmax.f32 %v3710, 0.0
        %v3721 = vmax.f32 %v3711, 0.0
        %v3722 = vmax.f32 %v3712, 0.0
        %v3723 = vmax.f32 %v3713, 0.0
        %v3724 = vmax.f32 %v3714, 0.0
        %v3725 = vmax.f32 %v3715, 0.0
        %v3726 = vmax.f32 %v3716, 0.0
        %v3727 = vmax.f32 %v3717, 0.0
        %v3728 = vmax.f32 %v3718, 0.0
        %v3729 = vmax.f32 %v3719, 0.0
        %v3730 = vpack.c.bf16 %v3722, %v3720
        %v3731 = vpack.c.bf16 %v3723, %v3721
        %v3732 = vpack.c.bf16 %v3726, %v3724
        %v3733 = vpack.c.bf16 %v3727, %v3725
        %v3734 = vpack.c.bf16 %v3728, %v3728
        %v3735 = vpack.c.bf16 %v3729, %v3729
        %v3736 = vld [vmem:[%s6] sm:$0xf]
        %v3737 = vld [vmem:[%s6 + $0x4] sm:$0xf]
        %v3738 = vld [vmem:[%s6 + $0x8] sm:$0xf]
        %v3739 = vld [vmem:[%s6 + $0xc] sm:$0xf]
        %v3740 = vld [vmem:[%s6 + $0x10] sm:$0xf]
        %v3741 = vld [vmem:[%s6 + $0x14] sm:$0xf]
        %v3742 = vld [vmem:[%s6 + $0x18] sm:$0xf]
        %v3743 = vld [vmem:[%s6 + $0x1c] sm:$0xf]
        %v3744 = vld [vmem:[%s6 + $0x20] sm:$0xf]
        %v3745 = vld [vmem:[%s6 + $0x24] sm:$0xf]
        %v3746 = vld [vmem:[%s6 + $0x28] sm:$0xf]
        %v3747 = vld [vmem:[%s6 + $0x2c] sm:$0xf]
        %v3748 = vld [vmem:[%s6 + $0x30] sm:$0xf]
        %v3749 = vld [vmem:[%s6 + $0x34] sm:$0xf]
        %v3750 = vld [vmem:[%s6 + $0x38] sm:$0xf]
        %v3751 = vld [vmem:[%s6 + $0x3c] sm:$0xf]
        %v3752 = vld [vmem:[%s6 + $0x40] sm:$0xf]
        %v3753 = vld [vmem:[%s6 + $0x44] sm:$0xf]
        %v3754 = vld [vmem:[%s6 + $0x48] sm:$0xf]
        %v3755 = vld [vmem:[%s6 + $0x4c] sm:$0xf]
        %v3776 = vunpack.c.l.b16 %v3736
        %v3777 = vunpack.c.l.b16 %v3737
        %v3778 = vunpack.c.l.b16 %v3738
        %v3779 = vunpack.c.l.b16 %v3739
        %v3780 = vunpack.c.l.b16 %v3740
        %v3781 = vunpack.c.l.b16 %v3741
        %v3782 = vunpack.c.l.b16 %v3742
        %v3783 = vunpack.c.l.b16 %v3743
        %v3784 = vunpack.c.l.b16 %v3744
        %v3785 = vunpack.c.l.b16 %v3745
        %v3786 = vunpack.c.l.b16 %v3746
        %v3787 = vunpack.c.l.b16 %v3747
        %v3788 = vunpack.c.l.b16 %v3748
        %v3789 = vunpack.c.l.b16 %v3749
        %v3790 = vunpack.c.l.b16 %v3750
        %v3791 = vunpack.c.l.b16 %v3751
        %v3792 = vunpack.c.l.b16 %v3752
        %v3793 = vunpack.c.l.b16 %v3753
        %v3794 = vunpack.c.l.b16 %v3754
        %v3795 = vunpack.c.l.b16 %v3755
        %v3796 = vpack.c.b16 %v3777, %v3776
        %v3797 = vpack.c.b16 %v3779, %v3778
        %v3798 = vpack.c.b16 %v3781, %v3780
        %v3799 = vpack.c.b16 %v3783, %v3782
        %v3800 = vpack.c.b16 %v3785, %v3784
        %v3801 = vpack.c.b16 %v3787, %v3786
        %v3802 = vpack.c.b16 %v3789, %v3788
        %v3803 = vpack.c.b16 %v3791, %v3790
        %v3804 = vpack.c.b16 %v3793, %v3792
        %v3805 = vpack.c.b16 %v3795, %v3794
        %vm3816 = vcmask 261120
        %v3818 = vsel %vm3816, %v3731, 0
        %v3821 = vsel %vm3816, %v3733, 0
        %v3824 = vsel %vm3816, %v3735, 0
        %3826 = vmatprep.subr.bf16.mxu0 0
        %3827 = vmatpush1.bf16.msra.mxu0 %v3796
        %3828 = vmatprep.subr.bf16.mxu0 0
        %3829 = vmatpush1.bf16.msra.mxu0 %v3797
        %3830 = vmatprep.subr.bf16.mxu0 0
        %3831 = vmatpush1.bf16.msra.mxu0 %v3798
        %3832 = vmatprep.subr.bf16.mxu0 0
        %3833 = vmatpush1.bf16.msra.mxu0 %v3799
        %3834 = vmatprep.subr.bf16.mxu0 0
        %3835 = vmatpush1.bf16.msra.mxu0 %v3800
        %3836 = vmatprep.subr.bf16.mxu0 0
        %3837 = vmatpush1.bf16.msra.mxu0 %v3801
        %3838 = vmatprep.subr.bf16.mxu0 0
        %3839 = vmatpush1.bf16.msra.mxu0 %v3802
        %3840 = vmatprep.subr.bf16.mxu0 0
        %3841 = vmatpush1.bf16.msra.mxu0 %v3803
        %3842 = vmatprep.subr.bf16.mxu0 0
        %3843 = vmatpush1.bf16.msra.mxu0 %v3804
        %3844 = vmatprep.subr.bf16.mxu0 0
        %3845 = vmatpush1.bf16.msra.mxu0 %v3805
        %3846 = vmatprep.subr.bf16.mxu0 0
        %3847 = vmatpush1.bf16.msra.mxu0 0
        %3848 = vmatprep.subr.bf16.mxu0 0
        %3849 = vmatpush1.bf16.msra.mxu0 0
        %3850 = vmatprep.subr.bf16.mxu0 0
        %3851 = vmatpush1.bf16.msra.mxu0 0
        %3852 = vmatprep.subr.bf16.mxu0 0
        %3853 = vmatpush1.bf16.msra.mxu0 0
        %3854 = vmatprep.subr.bf16.mxu0 0
        %3855 = vmatpush1.bf16.msra.mxu0 0
        %3856 = vmatprep.subr.bf16.mxu0 0
        %3857 = vmatpush1.bf16.msra.mxu0 0
        %3858 = vmatprep.mubr.bf16.mxu0 %v3818
        %3859 = vmatmul.mubr.bf16.gmra.mrb[0].mxu0 %v3730
        %v3860 = vpop.f32.mrb[0].mxu0
        %v3861 = vadd.f32 0.0, %v3860
        %v3862 = vpop.f32.mrb[0].mxu0
        %v3863 = vpop.f32.mrb[0].mxu0
        %v3864 = vadd.f32 0.0, %v3863
        %v3865 = vpop.f32.mrb[0].mxu0
        %3866 = vmatprep.mubr.bf16.mxu0 %v3821
        %3867 = vmatmul.mubr.bf16.gmra.mrb[0].mxu0 %v3732
        %v3868 = vpop.f32.mrb[0].mxu0
        %v3869 = vadd.f32 0.0, %v3868
        %v3870 = vpop.f32.mrb[0].mxu0
        %v3871 = vpop.f32.mrb[0].mxu0
        %v3872 = vadd.f32 0.0, %v3871
        %v3873 = vpop.f32.mrb[0].mxu0
        %3874 = vmatprep.mubr.bf16.mxu0 %v3824
        %3875 = vmatmul.mubr.bf16.gmra.mrb[0].mxu0 %v3734
        %v3876 = vpop.f32.mrb[0].mxu0
        %v3877 = vadd.f32 0.0, %v3876
        %v3878 = vpop.f32.mrb[0].mxu0
        %v3879 = vpop.f32.mrb[0].mxu0
        %v3880 = vpop.f32.mrb[0].mxu0
        %3881 = vdwg.mxu0
        %s3882 = scalar_lea.vmem %s6, 80
        %v3883 = vld [vmem:[%s3882] sm:$0xf]
        %v3884 = vld [vmem:[%s3882 + $0x4] sm:$0xf]
        %v3885 = vld [vmem:[%s3882 + $0x8] sm:$0xf]
        %v3886 = vld [vmem:[%s3882 + $0xc] sm:$0xf]
        %v3887 = vld [vmem:[%s3882 + $0x10] sm:$0xf]
        %v3888 = vld [vmem:[%s3882 + $0x14] sm:$0xf]
        %v3889 = vld [vmem:[%s3882 + $0x18] sm:$0xf]
        %v3890 = vld [vmem:[%s3882 + $0x1c] sm:$0xf]
        %v3891 = vld [vmem:[%s3882 + $0x20] sm:$0xf]
        %v3892 = vld [vmem:[%s3882 + $0x24] sm:$0xf]
        %v3893 = vld [vmem:[%s3882 + $0x28] sm:$0xf]
        %v3894 = vld [vmem:[%s3882 + $0x2c] sm:$0xf]
        %v3895 = vld [vmem:[%s3882 + $0x30] sm:$0xf]
        %v3896 = vld [vmem:[%s3882 + $0x34] sm:$0xf]
        %v3897 = vld [vmem:[%s3882 + $0x38] sm:$0xf]
        %v3898 = vld [vmem:[%s3882 + $0x3c] sm:$0xf]
        %v3899 = vld [vmem:[%s3882 + $0x40] sm:$0xf]
        %v3900 = vld [vmem:[%s3882 + $0x44] sm:$0xf]
        %v3901 = vld [vmem:[%s3882 + $0x48] sm:$0xf]
        %v3902 = vld [vmem:[%s3882 + $0x4c] sm:$0xf]
        %v3923 = vunpack.c.l.b16 %v3883
        %v3924 = vunpack.c.l.b16 %v3884
        %v3925 = vunpack.c.l.b16 %v3885
        %v3926 = vunpack.c.l.b16 %v3886
        %v3927 = vunpack.c.l.b16 %v3887
        %v3928 = vunpack.c.l.b16 %v3888
        %v3929 = vunpack.c.l.b16 %v3889
        %v3930 = vunpack.c.l.b16 %v3890
        %v3931 = vunpack.c.l.b16 %v3891
        %v3932 = vunpack.c.l.b16 %v3892
        %v3933 = vunpack.c.l.b16 %v3893
        %v3934 = vunpack.c.l.b16 %v3894
        %v3935 = vunpack.c.l.b16 %v3895
        %v3936 = vunpack.c.l.b16 %v3896
        %v3937 = vunpack.c.l.b16 %v3897
        %v3938 = vunpack.c.l.b16 %v3898
        %v3939 = vunpack.c.l.b16 %v3899
        %v3940 = vunpack.c.l.b16 %v3900
        %v3941 = vunpack.c.l.b16 %v3901
        %v3942 = vunpack.c.l.b16 %v3902
        %v3943 = vpack.c.b16 %v3924, %v3923
        %v3944 = vpack.c.b16 %v3926, %v3925
        %v3945 = vpack.c.b16 %v3928, %v3927
        %v3946 = vpack.c.b16 %v3930, %v3929
        %v3947 = vpack.c.b16 %v3932, %v3931
        %v3948 = vpack.c.b16 %v3934, %v3933
        %v3949 = vpack.c.b16 %v3936, %v3935
        %v3950 = vpack.c.b16 %v3938, %v3937
        %v3951 = vpack.c.b16 %v3940, %v3939
        %v3952 = vpack.c.b16 %v3942, %v3941
        %3963 = vmatprep.subr.bf16.mxu0 0
        %3964 = vmatpush1.bf16.msra.mxu0 %v3943
        %3965 = vmatprep.subr.bf16.mxu0 0
        %3966 = vmatpush1.bf16.msra.mxu0 %v3944
        %3967 = vmatprep.subr.bf16.mxu0 0
        %3968 = vmatpush1.bf16.msra.mxu0 %v3945
        %3969 = vmatprep.subr.bf16.mxu0 0
        %3970 = vmatpush1.bf16.msra.mxu0 %v3946
        %3971 = vmatprep.subr.bf16.mxu0 0
        %3972 = vmatpush1.bf16.msra.mxu0 %v3947
        %3973 = vmatprep.subr.bf16.mxu0 0
        %3974 = vmatpush1.bf16.msra.mxu0 %v3948
        %3975 = vmatprep.subr.bf16.mxu0 0
        %3976 = vmatpush1.bf16.msra.mxu0 %v3949
        %3977 = vmatprep.subr.bf16.mxu0 0
        %3978 = vmatpush1.bf16.msra.mxu0 %v3950
        %3979 = vmatprep.subr.bf16.mxu0 0
        %3980 = vmatpush1.bf16.msra.mxu0 %v3951
        %3981 = vmatprep.subr.bf16.mxu0 0
        %3982 = vmatpush1.bf16.msra.mxu0 %v3952
        %3983 = vmatprep.subr.bf16.mxu0 0
        %3984 = vmatpush1.bf16.msra.mxu0 0
        %3985 = vmatprep.subr.bf16.mxu0 0
        %3986 = vmatpush1.bf16.msra.mxu0 0
        %3987 = vmatprep.subr.bf16.mxu0 0
        %3988 = vmatpush1.bf16.msra.mxu0 0
        %3989 = vmatprep.subr.bf16.mxu0 0
        %3990 = vmatpush1.bf16.msra.mxu0 0
        %3991 = vmatprep.subr.bf16.mxu0 0
        %3992 = vmatpush1.bf16.msra.mxu0 0
        %3993 = vmatprep.subr.bf16.mxu0 0
        %3994 = vmatpush1.bf16.msra.mxu0 0
        %3995 = vmatprep.mubr.bf16.mxu0 %v3818
        %3996 = vmatmul.mubr.bf16.gmra.mrb[0].mxu0 %v3730
        %v3997 = vpop.f32.mrb[0].mxu0
        %v3998 = vadd.f32 0.0, %v3997
        %v3999 = vpop.f32.mrb[0].mxu0
        %v4000 = vpop.f32.mrb[0].mxu0
        %v4001 = vadd.f32 0.0, %v4000
        %v4002 = vpop.f32.mrb[0].mxu0
        %4003 = vmatprep.mubr.bf16.mxu0 %v3821
        %4004 = vmatmul.mubr.bf16.gmra.mrb[0].mxu0 %v3732
        %v4005 = vpop.f32.mrb[0].mxu0
        %v4006 = vadd.f32 0.0, %v4005
        %v4007 = vpop.f32.mrb[0].mxu0
        %v4008 = vpop.f32.mrb[0].mxu0
        %v4009 = vadd.f32 0.0, %v4008
        %v4010 = vpop.f32.mrb[0].mxu0
        %4011 = vmatprep.mubr.bf16.mxu0 %v3824
        %4012 = vmatmul.mubr.bf16.gmra.mrb[0].mxu0 %v3734
        %v4013 = vpop.f32.mrb[0].mxu0
        %v4014 = vadd.f32 0.0, %v4013
        %v4015 = vpop.f32.mrb[0].mxu0
        %v4016 = vpop.f32.mrb[0].mxu0
        %v4017 = vpop.f32.mrb[0].mxu0
        %4018 = vdwg.mxu0
        %v4019 = vmax.f32 %v3861, %v3998
        %v4020 = vmax.f32 %v3864, %v4001
        %v4021 = vmax.f32 %v3869, %v4006
        %v4022 = vmax.f32 %v3872, %v4009
        %v4023 = vmax.f32 %v3877, %v4014
        %v4024 = vpack.c.bf16 %v4020, %v4019
        %v4025 = vpack.c.bf16 %v4022, %v4021
        %v4026 = vpack.c.bf16 %v4023, %v4023
        %v4027 = vld [vmem:[%s7] sm:$0xf]
        %v4028 = vld [vmem:[%s7 + $0x4] sm:$0xf]
        %v4029 = vld [vmem:[%s7 + $0x8] sm:$0xf]
        %v4030 = vld [vmem:[%s7 + $0xc] sm:$0xf]
        %v4031 = vld [vmem:[%s7 + $0x10] sm:$0xf]
        %v4032 = vld [vmem:[%s7 + $0x14] sm:$0xf]
        %v4033 = vld [vmem:[%s7 + $0x18] sm:$0xf]
        %v4034 = vld [vmem:[%s7 + $0x1c] sm:$0xf]
        %v4035 = vld [vmem:[%s7 + $0x20] sm:$0xf]
        %v4036 = vld [vmem:[%s7 + $0x24] sm:$0xf]
        %s4037 = scalar_lea.vmem %s7, 40
        %v4038 = vld [vmem:[%s4037] sm:$0xf]
        %v4039 = vld [vmem:[%s4037 + $0x4] sm:$0xf]
        %v4040 = vld [vmem:[%s4037 + $0x8] sm:$0xf]
        %v4041 = vld [vmem:[%s4037 + $0xc] sm:$0xf]
        %v4042 = vld [vmem:[%s4037 + $0x10] sm:$0xf]
        %v4043 = vld [vmem:[%s4037 + $0x14] sm:$0xf]
        %v4044 = vld [vmem:[%s4037 + $0x18] sm:$0xf]
        %v4045 = vld [vmem:[%s4037 + $0x1c] sm:$0xf]
        %v4046 = vld [vmem:[%s4037 + $0x20] sm:$0xf]
        %v4047 = vld [vmem:[%s4037 + $0x24] sm:$0xf]
        %v4049 = vrot.slane %v4024, 4
        %v4060 = vunpack.c.l.b16 %v4038
        %v4061 = vunpack.c.l.b16 %v4039
        %v4062 = vunpack.c.l.b16 %v4040
        %v4063 = vunpack.c.l.b16 %v4041
        %v4064 = vunpack.c.l.b16 %v4042
        %v4065 = vunpack.c.l.b16 %v4043
        %v4066 = vunpack.c.l.b16 %v4044
        %v4067 = vunpack.c.l.b16 %v4045
        %v4068 = vunpack.c.l.b16 %v4046
        %v4069 = vunpack.c.l.b16 %v4047
        %v4070 = vpack.c.b16 %v4061, %v4060
        %v4071 = vpack.c.b16 %v4063, %v4062
        %v4072 = vpack.c.b16 %v4065, %v4064
        %v4073 = vpack.c.b16 %v4067, %v4066
        %v4074 = vpack.c.b16 %v4069, %v4068
        %vm4080 = vcmask 654336
        %v4082 = vsel %vm4080, %v4049, 0
        %4084 = vmatprep.subr.bf16.mxu0 0
        %4085 = vmatpush1.bf16.msra.mxu0 %v4070
        %4086 = vmatprep.subr.bf16.mxu0 0
        %4087 = vmatpush1.bf16.msra.mxu0 %v4071
        %4088 = vmatprep.subr.bf16.mxu0 0
        %4089 = vmatpush1.bf16.msra.mxu0 %v4072
        %4090 = vmatprep.subr.bf16.mxu0 0
        %4091 = vmatpush1.bf16.msra.mxu0 %v4073
        %4092 = vmatprep.subr.bf16.mxu0 0
        %4093 = vmatpush1.bf16.msra.mxu0 %v4074
        %4094 = vmatprep.subr.bf16.mxu0 0
        %4095 = vmatpush1.bf16.msra.mxu0 0
        %4096 = vmatprep.subr.bf16.mxu0 0
        %4097 = vmatpush1.bf16.msra.mxu0 0
        %4098 = vmatprep.subr.bf16.mxu0 0
        %4099 = vmatpush1.bf16.msra.mxu0 0
        %4100 = vmatprep.subr.bf16.mxu0 0
        %4101 = vmatpush1.bf16.msra.mxu0 0
        %4102 = vmatprep.subr.bf16.mxu0 0
        %4103 = vmatpush1.bf16.msra.mxu0 0
        %4104 = vmatprep.subr.bf16.mxu0 0
        %4105 = vmatpush1.bf16.msra.mxu0 0
        %4106 = vmatprep.subr.bf16.mxu0 0
        %4107 = vmatpush1.bf16.msra.mxu0 0
        %4108 = vmatprep.subr.bf16.mxu0 0
        %4109 = vmatpush1.bf16.msra.mxu0 0
        %4110 = vmatprep.subr.bf16.mxu0 0
        %4111 = vmatpush1.bf16.msra.mxu0 0
        %4112 = vmatprep.subr.bf16.mxu0 0
        %4113 = vmatpush1.bf16.msra.mxu0 0
        %4114 = vmatprep.subr.bf16.mxu0 0
        %4115 = vmatpush1.bf16.msra.mxu0 0
        %4116 = vmatprep.mubr.bf16.mxu0 0
        %4117 = vmatmul.mubr.bf16.gmra.mrb[0].mxu0 %v4082
        %v4118 = vpop.f32.mrb[0].mxu0
        %v4119 = vadd.f32 0.0, %v4118
        %v4120 = vpop.f32.mrb[0].mxu0
        %v4121 = vpop.f32.mrb[0].mxu0
        %v4122 = vpop.f32.mrb[0].mxu0
        %4123 = vdwg.mxu0
        %v4134 = vunpack.c.l.b16 %v4027
        %v4135 = vunpack.c.l.b16 %v4028
        %v4136 = vunpack.c.l.b16 %v4029
        %v4137 = vunpack.c.l.b16 %v4030
        %v4138 = vunpack.c.l.b16 %v4031
        %v4139 = vunpack.c.l.b16 %v4032
        %v4140 = vunpack.c.l.b16 %v4033
        %v4141 = vunpack.c.l.b16 %v4034
        %v4142 = vunpack.c.l.b16 %v4035
        %v4143 = vunpack.c.l.b16 %v4036
        %v4144 = vpack.c.b16 %v4135, %v4134
        %v4145 = vpack.c.b16 %v4137, %v4136
        %v4146 = vpack.c.b16 %v4139, %v4138
        %v4147 = vpack.c.b16 %v4141, %v4140
        %v4148 = vpack.c.b16 %v4143, %v4142
        %v4155 = vsel %vm4080, %v4024, 0
        %4157 = vmatprep.subr.bf16.mxu0 0
        %4158 = vmatpush1.bf16.msra.mxu0 %v4144
        %4159 = vmatprep.subr.bf16.mxu0 0
        %4160 = vmatpush1.bf16.msra.mxu0 %v4145
        %4161 = vmatprep.subr.bf16.mxu0 0
        %4162 = vmatpush1.bf16.msra.mxu0 %v4146
        %4163 = vmatprep.subr.bf16.mxu0 0
        %4164 = vmatpush1.bf16.msra.mxu0 %v4147
        %4165 = vmatprep.subr.bf16.mxu0 0
        %4166 = vmatpush1.bf16.msra.mxu0 %v4148
        %4167 = vmatprep.subr.bf16.mxu0 0
        %4168 = vmatpush1.bf16.msra.mxu0 0
        %4169 = vmatprep.subr.bf16.mxu0 0
        %4170 = vmatpush1.bf16.msra.mxu0 0
        %4171 = vmatprep.subr.bf16.mxu0 0
        %4172 = vmatpush1.bf16.msra.mxu0 0
        %4173 = vmatprep.subr.bf16.mxu0 0
        %4174 = vmatpush1.bf16.msra.mxu0 0
        %4175 = vmatprep.subr.bf16.mxu0 0
        %4176 = vmatpush1.bf16.msra.mxu0 0
        %4177 = vmatprep.subr.bf16.mxu0 0
        %4178 = vmatpush1.bf16.msra.mxu0 0
        %4179 = vmatprep.subr.bf16.mxu0 0
        %4180 = vmatpush1.bf16.msra.mxu0 0
        %4181 = vmatprep.subr.bf16.mxu0 0
        %4182 = vmatpush1.bf16.msra.mxu0 0
        %4183 = vmatprep.subr.bf16.mxu0 0
        %4184 = vmatpush1.bf16.msra.mxu0 0
        %4185 = vmatprep.subr.bf16.mxu0 0
        %4186 = vmatpush1.bf16.msra.mxu0 0
        %4187 = vmatprep.subr.bf16.mxu0 0
        %4188 = vmatpush1.bf16.msra.mxu0 0
        %4189 = vmatprep.mubr.bf16.mxu0 0
        %4190 = vmatmul.mubr.bf16.gmra.mrb[0].mxu0 %v4155
        %v4191 = vpop.f32.mrb[0].mxu0
        %v4192 = vadd.f32 %v4119, %v4191
        %v4193 = vpop.f32.mrb[0].mxu0
        %v4194 = vpop.f32.mrb[0].mxu0
        %v4195 = vpop.f32.mrb[0].mxu0
        %4196 = vdwg.mxu0
        %s4197 = scalar_lea.vmem %s7, 80
        %v4198 = vld [vmem:[%s4197] sm:$0xf]
        %v4199 = vld [vmem:[%s4197 + $0x4] sm:$0xf]
        %v4200 = vld [vmem:[%s4197 + $0x8] sm:$0xf]
        %v4201 = vld [vmem:[%s4197 + $0xc] sm:$0xf]
        %v4202 = vld [vmem:[%s4197 + $0x10] sm:$0xf]
        %v4203 = vld [vmem:[%s4197 + $0x14] sm:$0xf]
        %v4204 = vld [vmem:[%s4197 + $0x18] sm:$0xf]
        %v4205 = vld [vmem:[%s4197 + $0x1c] sm:$0xf]
        %v4206 = vld [vmem:[%s4197 + $0x20] sm:$0xf]
        %v4207 = vld [vmem:[%s4197 + $0x24] sm:$0xf]
        %v4218 = vunpack.c.l.b16 %v4198
        %v4219 = vunpack.c.l.b16 %v4199
        %v4220 = vunpack.c.l.b16 %v4200
        %v4221 = vunpack.c.l.b16 %v4201
        %v4222 = vunpack.c.l.b16 %v4202
        %v4223 = vunpack.c.l.b16 %v4203
        %v4224 = vunpack.c.l.b16 %v4204
        %v4225 = vunpack.c.l.b16 %v4205
        %v4226 = vunpack.c.l.b16 %v4206
        %v4227 = vunpack.c.l.b16 %v4207
        %v4228 = vpack.c.b16 %v4219, %v4218
        %v4229 = vpack.c.b16 %v4221, %v4220
        %v4230 = vpack.c.b16 %v4223, %v4222
        %v4231 = vpack.c.b16 %v4225, %v4224
        %v4232 = vpack.c.b16 %v4227, %v4226
        %v4239 = vsel %vm4080, %v4025, 0
        %4241 = vmatprep.subr.bf16.mxu0 0
        %4242 = vmatpush1.bf16.msra.mxu0 %v4228
        %4243 = vmatprep.subr.bf16.mxu0 0
        %4244 = vmatpush1.bf16.msra.mxu0 %v4229
        %4245 = vmatprep.subr.bf16.mxu0 0
        %4246 = vmatpush1.bf16.msra.mxu0 %v4230
        %4247 = vmatprep.subr.bf16.mxu0 0
        %4248 = vmatpush1.bf16.msra.mxu0 %v4231
        %4249 = vmatprep.subr.bf16.mxu0 0
        %4250 = vmatpush1.bf16.msra.mxu0 %v4232
        %4251 = vmatprep.subr.bf16.mxu0 0
        %4252 = vmatpush1.bf16.msra.mxu0 0
        %4253 = vmatprep.subr.bf16.mxu0 0
        %4254 = vmatpush1.bf16.msra.mxu0 0
        %4255 = vmatprep.subr.bf16.mxu0 0
        %4256 = vmatpush1.bf16.msra.mxu0 0
        %4257 = vmatprep.subr.bf16.mxu0 0
        %4258 = vmatpush1.bf16.msra.mxu0 0
        %4259 = vmatprep.subr.bf16.mxu0 0
        %4260 = vmatpush1.bf16.msra.mxu0 0
        %4261 = vmatprep.subr.bf16.mxu0 0
        %4262 = vmatpush1.bf16.msra.mxu0 0
        %4263 = vmatprep.subr.bf16.mxu0 0
        %4264 = vmatpush1.bf16.msra.mxu0 0
        %4265 = vmatprep.subr.bf16.mxu0 0
        %4266 = vmatpush1.bf16.msra.mxu0 0
        %4267 = vmatprep.subr.bf16.mxu0 0
        %4268 = vmatpush1.bf16.msra.mxu0 0
        %4269 = vmatprep.subr.bf16.mxu0 0
        %4270 = vmatpush1.bf16.msra.mxu0 0
        %4271 = vmatprep.subr.bf16.mxu0 0
        %4272 = vmatpush1.bf16.msra.mxu0 0
        %4273 = vmatprep.mubr.bf16.mxu0 0
        %4274 = vmatmul.mubr.bf16.gmra.mrb[0].mxu0 %v4239
        %v4275 = vpop.f32.mrb[0].mxu0
        %v4276 = vadd.f32 0.0, %v4275
        %v4277 = vpop.f32.mrb[0].mxu0
        %v4278 = vpop.f32.mrb[0].mxu0
        %v4279 = vpop.f32.mrb[0].mxu0
        %4280 = vdwg.mxu0
        %v4281 = vadd.f32 %v4192, %v4276
        %s4282 = scalar_lea.vmem %s7, 120
        %v4283 = vld [vmem:[%s4282] sm:$0xf]
        %v4284 = vld [vmem:[%s4282 + $0x4] sm:$0xf]
        %v4285 = vld [vmem:[%s4282 + $0x8] sm:$0xf]
        %v4286 = vld [vmem:[%s4282 + $0xc] sm:$0xf]
        %v4287 = vld [vmem:[%s4282 + $0x10] sm:$0xf]
        %v4288 = vld [vmem:[%s4282 + $0x14] sm:$0xf]
        %v4289 = vld [vmem:[%s4282 + $0x18] sm:$0xf]
        %v4290 = vld [vmem:[%s4282 + $0x1c] sm:$0xf]
        %v4291 = vld [vmem:[%s4282 + $0x20] sm:$0xf]
        %v4292 = vld [vmem:[%s4282 + $0x24] sm:$0xf]
        %v4294 = vrot.slane %v4025, 4
        %v4305 = vunpack.c.l.b16 %v4283
        %v4306 = vunpack.c.l.b16 %v4284
        %v4307 = vunpack.c.l.b16 %v4285
        %v4308 = vunpack.c.l.b16 %v4286
        %v4309 = vunpack.c.l.b16 %v4287
        %v4310 = vunpack.c.l.b16 %v4288
        %v4311 = vunpack.c.l.b16 %v4289
        %v4312 = vunpack.c.l.b16 %v4290
        %v4313 = vunpack.c.l.b16 %v4291
        %v4314 = vunpack.c.l.b16 %v4292
        %v4315 = vpack.c.b16 %v4306, %v4305
        %v4316 = vpack.c.b16 %v4308, %v4307
        %v4317 = vpack.c.b16 %v4310, %v4309
        %v4318 = vpack.c.b16 %v4312, %v4311
        %v4319 = vpack.c.b16 %v4314, %v4313
        %v4326 = vsel %vm4080, %v4294, 0
        %4328 = vmatprep.subr.bf16.mxu0 0
        %4329 = vmatpush1.bf16.msra.mxu0 %v4315
        %4330 = vmatprep.subr.bf16.mxu0 0
        %4331 = vmatpush1.bf16.msra.mxu0 %v4316
        %4332 = vmatprep.subr.bf16.mxu0 0
        %4333 = vmatpush1.bf16.msra.mxu0 %v4317
        %4334 = vmatprep.subr.bf16.mxu0 0
        %4335 = vmatpush1.bf16.msra.mxu0 %v4318
        %4336 = vmatprep.subr.bf16.mxu0 0
        %4337 = vmatpush1.bf16.msra.mxu0 %v4319
        %4338 = vmatprep.subr.bf16.mxu0 0
        %4339 = vmatpush1.bf16.msra.mxu0 0
        %4340 = vmatprep.subr.bf16.mxu0 0
        %4341 = vmatpush1.bf16.msra.mxu0 0
        %4342 = vmatprep.subr.bf16.mxu0 0
        %4343 = vmatpush1.bf16.msra.mxu0 0
        %4344 = vmatprep.subr.bf16.mxu0 0
        %4345 = vmatpush1.bf16.msra.mxu0 0
        %4346 = vmatprep.subr.bf16.mxu0 0
        %4347 = vmatpush1.bf16.msra.mxu0 0
        %4348 = vmatprep.subr.bf16.mxu0 0
        %4349 = vmatpush1.bf16.msra.mxu0 0
        %4350 = vmatprep.subr.bf16.mxu0 0
        %4351 = vmatpush1.bf16.msra.mxu0 0
        %4352 = vmatprep.subr.bf16.mxu0 0
        %4353 = vmatpush1.bf16.msra.mxu0 0
        %4354 = vmatprep.subr.bf16.mxu0 0
        %4355 = vmatpush1.bf16.msra.mxu0 0
        %4356 = vmatprep.subr.bf16.mxu0 0
        %4357 = vmatpush1.bf16.msra.mxu0 0
        %4358 = vmatprep.subr.bf16.mxu0 0
        %4359 = vmatpush1.bf16.msra.mxu0 0
        %4360 = vmatprep.mubr.bf16.mxu0 0
        %4361 = vmatmul.mubr.bf16.gmra.mrb[0].mxu0 %v4326
        %v4362 = vpop.f32.mrb[0].mxu0
        %v4363 = vadd.f32 0.0, %v4362
        %v4364 = vpop.f32.mrb[0].mxu0
        %v4365 = vpop.f32.mrb[0].mxu0
        %v4366 = vpop.f32.mrb[0].mxu0
        %4367 = vdwg.mxu0
        %v4368 = vadd.f32 %v4281, %v4363
        %s4369 = scalar_lea.vmem %s7, 160
        %v4370 = vld [vmem:[%s4369] sm:$0xf]
        %v4371 = vld [vmem:[%s4369 + $0x4] sm:$0xf]
        %v4372 = vld [vmem:[%s4369 + $0x8] sm:$0xf]
        %v4373 = vld [vmem:[%s4369 + $0xc] sm:$0xf]
        %v4374 = vld [vmem:[%s4369 + $0x10] sm:$0xf]
        %v4375 = vld [vmem:[%s4369 + $0x14] sm:$0xf]
        %v4376 = vld [vmem:[%s4369 + $0x18] sm:$0xf]
        %v4377 = vld [vmem:[%s4369 + $0x1c] sm:$0xf]
        %v4378 = vld [vmem:[%s4369 + $0x20] sm:$0xf]
        %v4379 = vld [vmem:[%s4369 + $0x24] sm:$0xf]
        %v4390 = vunpack.c.l.b16 %v4370
        %v4391 = vunpack.c.l.b16 %v4371
        %v4392 = vunpack.c.l.b16 %v4372
        %v4393 = vunpack.c.l.b16 %v4373
        %v4394 = vunpack.c.l.b16 %v4374
        %v4395 = vunpack.c.l.b16 %v4375
        %v4396 = vunpack.c.l.b16 %v4376
        %v4397 = vunpack.c.l.b16 %v4377
        %v4398 = vunpack.c.l.b16 %v4378
        %v4399 = vunpack.c.l.b16 %v4379
        %v4400 = vpack.c.b16 %v4391, %v4390
        %v4401 = vpack.c.b16 %v4393, %v4392
        %v4402 = vpack.c.b16 %v4395, %v4394
        %v4403 = vpack.c.b16 %v4397, %v4396
        %v4404 = vpack.c.b16 %v4399, %v4398
        %v4411 = vsel %vm4080, %v4026, 0
        %4413 = vmatprep.subr.bf16.mxu0 0
        %4414 = vmatpush1.bf16.msra.mxu0 %v4400
        %4415 = vmatprep.subr.bf16.mxu0 0
        %4416 = vmatpush1.bf16.msra.mxu0 %v4401
        %4417 = vmatprep.subr.bf16.mxu0 0
        %4418 = vmatpush1.bf16.msra.mxu0 %v4402
        %4419 = vmatprep.subr.bf16.mxu0 0
        %4420 = vmatpush1.bf16.msra.mxu0 %v4403
        %4421 = vmatprep.subr.bf16.mxu0 0
        %4422 = vmatpush1.bf16.msra.mxu0 %v4404
        %4423 = vmatprep.subr.bf16.mxu0 0
        %4424 = vmatpush1.bf16.msra.mxu0 0
        %4425 = vmatprep.subr.bf16.mxu0 0
        %4426 = vmatpush1.bf16.msra.mxu0 0
        %4427 = vmatprep.subr.bf16.mxu0 0
        %4428 = vmatpush1.bf16.msra.mxu0 0
        %4429 = vmatprep.subr.bf16.mxu0 0
        %4430 = vmatpush1.bf16.msra.mxu0 0
        %4431 = vmatprep.subr.bf16.mxu0 0
        %4432 = vmatpush1.bf16.msra.mxu0 0
        %4433 = vmatprep.subr.bf16.mxu0 0
        %4434 = vmatpush1.bf16.msra.mxu0 0
        %4435 = vmatprep.subr.bf16.mxu0 0
        %4436 = vmatpush1.bf16.msra.mxu0 0
        %4437 = vmatprep.subr.bf16.mxu0 0
        %4438 = vmatpush1.bf16.msra.mxu0 0
        %4439 = vmatprep.subr.bf16.mxu0 0
        %4440 = vmatpush1.bf16.msra.mxu0 0
        %4441 = vmatprep.subr.bf16.mxu0 0
        %4442 = vmatpush1.bf16.msra.mxu0 0
        %4443 = vmatprep.subr.bf16.mxu0 0
        %4444 = vmatpush1.bf16.msra.mxu0 0
        %4445 = vmatprep.mubr.bf16.mxu0 0
        %4446 = vmatmul.mubr.bf16.gmra.mrb[0].mxu0 %v4411
        %v4447 = vpop.f32.mrb[0].mxu0
        %v4448 = vadd.f32 0.0, %v4447
        %v4449 = vpop.f32.mrb[0].mxu0
        %v4450 = vpop.f32.mrb[0].mxu0
        %v4451 = vpop.f32.mrb[0].mxu0
        %4452 = vdwg.mxu0
        %v4453 = vadd.f32 %v4368, %v4448
        %v4454 = vld [vmem:[%s8] sm:$0x1]
        %v4456 = vlaneseq
        %v4457 = vshrl.u32 %v4456, 7
        %v4458 = vsub.s32 0, %v4457
        %v4459 = vrot.slane %v4454, %v4458
        %v4461 = vadd.f32 %v4453, %v4459
        %v4462 = vmax.f32 %v4461, 0.0
        %v4463 = vpack.c.bf16 %v4462, %v4462
        %v4464 = vld [vmem:[%s9] sm:$0xf]
        %v4465 = vld [vmem:[%s9 + $0x4] sm:$0xf]
        %v4466 = vld [vmem:[%s9 + $0x8] sm:$0xf]
        %v4467 = vld [vmem:[%s9 + $0xc] sm:$0xf]
        %v4468 = vld [vmem:[%s9 + $0x10] sm:$0xf]
        %v4469 = vld [vmem:[%s9 + $0x14] sm:$0xf]
        %v4470 = vld [vmem:[%s9 + $0x18] sm:$0xf]
        %v4471 = vld [vmem:[%s9 + $0x1c] sm:$0xf]
        %v4472 = vld [vmem:[%s9 + $0x20] sm:$0xf]
        %v4473 = vld [vmem:[%s9 + $0x24] sm:$0xf]
        %v4474 = vld [vmem:[%s9 + $0x28] sm:$0xf]
        %v4475 = vld [vmem:[%s9 + $0x2c] sm:$0xf]
        %v4476 = vld [vmem:[%s9 + $0x30] sm:$0xf]
        %v4477 = vld [vmem:[%s9 + $0x34] sm:$0xf]
        %v4478 = vld [vmem:[%s9 + $0x38] sm:$0xf]
        %v4479 = vld [vmem:[%s10] sm:$0x1]
        %v4481 = vlaneseq
        %v4482 = vshrl.u32 %v4481, 7
        %v4483 = vsub.s32 0, %v4482
        %v4484 = vrot.slane %v4479, %v4483
        %v4501 = vunpack.c.l.b16 %v4464
        %v4502 = vunpack.c.l.b16 %v4465
        %v4503 = vunpack.c.l.b16 %v4466
        %v4504 = vunpack.c.l.b16 %v4467
        %v4505 = vunpack.c.l.b16 %v4468
        %v4506 = vunpack.c.l.b16 %v4469
        %v4507 = vunpack.c.l.b16 %v4470
        %v4508 = vunpack.c.l.b16 %v4471
        %v4509 = vunpack.c.l.b16 %v4472
        %v4510 = vunpack.c.l.b16 %v4473
        %v4511 = vunpack.c.l.b16 %v4474
        %v4512 = vunpack.c.l.b16 %v4475
        %v4513 = vunpack.c.l.b16 %v4476
        %v4514 = vunpack.c.l.b16 %v4477
        %v4515 = vunpack.c.l.b16 %v4478
        %v4516 = vpack.c.b16 %v4502, %v4501
        %v4517 = vpack.c.b16 %v4504, %v4503
        %v4518 = vpack.c.b16 %v4506, %v4505
        %v4519 = vpack.c.b16 %v4508, %v4507
        %v4520 = vpack.c.b16 %v4510, %v4509
        %v4521 = vpack.c.b16 %v4512, %v4511
        %v4522 = vpack.c.b16 %v4514, %v4513
        %v4523 = vpack.c.b16 %v4515, %v4515
        %vm4531 = vcmask 982016
        %v4533 = vsel %vm4531, %v4463, 0
        %v4536 = vsel %vm2496, %v4523, 0
        %4538 = vmatprep.subr.bf16.mxu0 0
        %4539 = vmatpush1.bf16.msra.mxu0 %v4516
        %4540 = vmatprep.subr.bf16.mxu0 0
        %4541 = vmatpush1.bf16.msra.mxu0 %v4517
        %4542 = vmatprep.subr.bf16.mxu0 0
        %4543 = vmatpush1.bf16.msra.mxu0 %v4518
        %4544 = vmatprep.subr.bf16.mxu0 0
        %4545 = vmatpush1.bf16.msra.mxu0 %v4519
        %4546 = vmatprep.subr.bf16.mxu0 0
        %4547 = vmatpush1.bf16.msra.mxu0 %v4520
        %4548 = vmatprep.subr.bf16.mxu0 0
        %4549 = vmatpush1.bf16.msra.mxu0 %v4521
        %4550 = vmatprep.subr.bf16.mxu0 0
        %4551 = vmatpush1.bf16.msra.mxu0 %v4522
        %4552 = vmatprep.subr.bf16.mxu0 0
        %4553 = vmatpush1.bf16.msra.mxu0 %v4536
        %4554 = vmatprep.subr.bf16.mxu0 0
        %4555 = vmatpush1.bf16.msra.mxu0 0
        %4556 = vmatprep.subr.bf16.mxu0 0
        %4557 = vmatpush1.bf16.msra.mxu0 0
        %4558 = vmatprep.subr.bf16.mxu0 0
        %4559 = vmatpush1.bf16.msra.mxu0 0
        %4560 = vmatprep.subr.bf16.mxu0 0
        %4561 = vmatpush1.bf16.msra.mxu0 0
        %4562 = vmatprep.subr.bf16.mxu0 0
        %4563 = vmatpush1.bf16.msra.mxu0 0
        %4564 = vmatprep.subr.bf16.mxu0 0
        %4565 = vmatpush1.bf16.msra.mxu0 0
        %4566 = vmatprep.subr.bf16.mxu0 0
        %4567 = vmatpush1.bf16.msra.mxu0 0
        %4568 = vmatprep.subr.bf16.mxu0 0
        %4569 = vmatpush1.bf16.msra.mxu0 0
        %4570 = vmatprep.mubr.bf16.mxu0 0
        %4571 = vmatmul.mubr.bf16.gmra.mrb[0].mxu0 %v4533
        %v4572 = vpop.f32.mrb[0].mxu0
        %v4573 = vadd.f32 %v4484, %v4572
        %v4574 = vpop.f32.mrb[0].mxu0
        %v4575 = vpop.f32.mrb[0].mxu0
        %v4576 = vpop.f32.mrb[0].mxu0
        %4577 = vdwg.mxu0
        %v4578 = vmax.f32 %v4573, 0.0
        %v4579 = vpack.c.bf16 %v4578, %v4578
        %v4580 = vld [vmem:[%s11] sm:$0xf]
        %v4581 = vld [vmem:[%s11 + $0x4] sm:$0xf]
        %v4582 = vld [vmem:[%s11 + $0x8] sm:$0xf]
        %v4583 = vld [vmem:[%s11 + $0xc] sm:$0xf]
        %v4584 = vld [vmem:[%s11 + $0x10] sm:$0xf]
        %v4585 = vld [vmem:[%s11 + $0x14] sm:$0xf]
        %v4586 = vld [vmem:[%s11 + $0x18] sm:$0xf]
        %v4587 = vld [vmem:[%s11 + $0x1c] sm:$0xf]
        %v4588 = vld [vmem:[%s11 + $0x20] sm:$0xf]
        %v4589 = vld [vmem:[%s11 + $0x24] sm:$0xf]
        %v4590 = vld [vmem:[%s11 + $0x28] sm:$0x3]
        %v4591 = vld [vmem:[%s12] sm:$0x1]
        %v4593 = vlaneseq
        %v4594 = vshrl.u32 %v4593, 7
        %v4595 = vsub.s32 0, %v4594
        %v4596 = vrot.slane %v4591, %v4595
        %v4609 = vunpack.c.l.b16 %v4580
        %v4610 = vunpack.c.l.b16 %v4581
        %v4611 = vunpack.c.l.b16 %v4582
        %v4612 = vunpack.c.l.b16 %v4583
        %v4613 = vunpack.c.l.b16 %v4584
        %v4614 = vunpack.c.l.b16 %v4585
        %v4615 = vunpack.c.l.b16 %v4586
        %v4616 = vunpack.c.l.b16 %v4587
        %v4617 = vunpack.c.l.b16 %v4588
        %v4618 = vunpack.c.l.b16 %v4589
        %v4619 = vunpack.c.l.b16 %v4590
        %v4620 = vpack.c.b16 %v4610, %v4609
        %v4621 = vpack.c.b16 %v4612, %v4611
        %v4622 = vpack.c.b16 %v4614, %v4613
        %v4623 = vpack.c.b16 %v4616, %v4615
        %v4624 = vpack.c.b16 %v4618, %v4617
        %v4625 = vpack.c.b16 %v4619, %v4619
        %v4632 = vsel %vm2883, %v4579, 0
        %v4635 = vsel %vm2899, %v4625, 0
        %4637 = vmatprep.subr.bf16.mxu0 0
        %4638 = vmatpush1.bf16.msra.mxu0 %v4620
        %4639 = vmatprep.subr.bf16.mxu0 0
        %4640 = vmatpush1.bf16.msra.mxu0 %v4621
        %4641 = vmatprep.subr.bf16.mxu0 0
        %4642 = vmatpush1.bf16.msra.mxu0 %v4622
        %4643 = vmatprep.subr.bf16.mxu0 0
        %4644 = vmatpush1.bf16.msra.mxu0 %v4623
        %4645 = vmatprep.subr.bf16.mxu0 0
        %4646 = vmatpush1.bf16.msra.mxu0 %v4624
        %4647 = vmatprep.subr.bf16.mxu0 0
        %4648 = vmatpush1.bf16.msra.mxu0 %v4635
        %4649 = vmatprep.subr.bf16.mxu0 0
        %4650 = vmatpush1.bf16.msra.mxu0 0
        %4651 = vmatprep.subr.bf16.mxu0 0
        %4652 = vmatpush1.bf16.msra.mxu0 0
        %4653 = vmatprep.subr.bf16.mxu0 0
        %4654 = vmatpush1.bf16.msra.mxu0 0
        %4655 = vmatprep.subr.bf16.mxu0 0
        %4656 = vmatpush1.bf16.msra.mxu0 0
        %4657 = vmatprep.subr.bf16.mxu0 0
        %4658 = vmatpush1.bf16.msra.mxu0 0
        %4659 = vmatprep.subr.bf16.mxu0 0
        %4660 = vmatpush1.bf16.msra.mxu0 0
        %4661 = vmatprep.subr.bf16.mxu0 0
        %4662 = vmatpush1.bf16.msra.mxu0 0
        %4663 = vmatprep.subr.bf16.mxu0 0
        %4664 = vmatpush1.bf16.msra.mxu0 0
        %4665 = vmatprep.subr.bf16.mxu0 0
        %4666 = vmatpush1.bf16.msra.mxu0 0
        %4667 = vmatprep.subr.bf16.mxu0 0
        %4668 = vmatpush1.bf16.msra.mxu0 0
        %4669 = vmatprep.mubr.bf16.mxu0 0
        %4670 = vmatmul.mubr.bf16.gmra.mrb[0].mxu0 %v4632
        %v4671 = vpop.f32.mrb[0].mxu0
        %v4672 = vadd.f32 %v4596, %v4671
        %v4673 = vpop.f32.mrb[0].mxu0
        %v4674 = vpop.f32.mrb[0].mxu0
        %v4675 = vpop.f32.mrb[0].mxu0
        %4676 = vdwg.mxu0
        %4677 = vst [vmem:[%s603] sm:$0xff] %v4672
        %s4678 = sand.u32 %s313, 1
        %s4679 = scalar_lea.sflag [#allocation4], %s4678
        %s4680 = sand.u32 %s313, 1
        %s4681 = smul.addr %s4680, 8
        %s4682 = scalar_lea.vmem [#allocation3], %s4681
        // Predicated region
        $region114: #{net_forward.1} parent=108 // pred_check
          %p4683 = pneg %p323
        $region115: #{net_forward.1} parent=108 // pred_check_branch
          %4685 = sbr.rel (%p4683) target = $region117
        $region116: #{net_forward.1} parent=108 // pred_region
          %s4687 = ssub.s32 128, 128
          %4688 = vsyncadd %s4679, %s4687
          %s4689 = smul.addr %s27, 128
          %s4690 = scalar_lea.hbm %s13, %s4689
          %s4692 = sshll.u32 %s4682, 4
          %s4693 = int_to_ptr.vmem [resolvable:$true] %s4692
          %4695 = dma.vmem_to_hbm [thread:$0]  %s4693, 128, %s4690, %s4679
        $region117: #{net_forward.1} parent=108 // pred_fallthru
          _
      $region109: #{net_forward.1} parent=5 // pred_fallthru
        _
      %p4696 = scmp.le.s32.totalorder 2, %s22
      // Predicated region
      $region118: #{net_forward.1} parent=5 // pred_check
        %p4697 = pneg %p4696
      $region119: #{net_forward.1} parent=5 // pred_check_branch
        %4699 = sbr.rel (%p4697) target = $region121
      $region120: #{net_forward.1} parent=5 // pred_region
        %s4700 = ssub.s32 %s22, 2
        // Predicated region
        $region122: #{net_forward.1} parent=120 // pred_check
          %p4701 = pneg %p329
        $region123: #{net_forward.1} parent=120 // pred_check_branch
          %4703 = sbr.rel (%p4701) target = $region125
        $region124: #{net_forward.1} parent=120 // pred_region
          %s4704 = sand.u32 %s314, 1
          %s4705 = scalar_lea.sflag [#allocation4], %s4704
          %s4706 = sand.u32 %s314, 1
          %s4707 = smul.addr %s4706, 8
          %s4708 = scalar_lea.vmem [#allocation3], %s4707
          %4709 = dma.done %s4705, 128
        $region125: #{net_forward.1} parent=120 // pred_fallthru
          _
      $region121: #{net_forward.1} parent=5 // pred_fallthru
        _
    $region6: #{net_forward.1} parent=1 // loop_footer
      %s26 = sadd.s32 1, %s22
    $region7: #{net_forward.1} parent=1 // loop_footer_branch
      %21 = sbr.rel target = $region3
    $region8: #{net_forward.1} parent=1 // loop_exit
      _
    %4710 = vsyncpa [#allocation4], 1
    %s4711 = scalar_lea.sflag [#allocation4], 1
    %4712 = vsyncpa %s4711, 1

</llo_original>
